<compile_context>
chip_gen: v6e
topology: v6e:2x2x1
jax: 0.10.0
libtpu: 0.0.40
codegen_flags: <defaults>
</compile_context>

<pallas_src>
import jax
import jax.numpy as jnp
from jax.experimental import pallas as pl
from jax.experimental.pallas import tpu as pltpu


_LANE = 128   # TPU lane width
_SUB = 128    # in-kernel row subchunk (multiple of 16; keeps intermediates small)
_KP = 384     # arg vocab 257 padded up to a lane multiple (padded LUT rows are zero)
_CMD_PAD = 8  # command vocab 6 padded to the sublane granule


# ---------------------------------------------------------------------------
# Pallas kernel
# ---------------------------------------------------------------------------
def _make_kernel(tm, sub, pos_pad, d_pad):
    n_sub = tm // sub
    assert n_sub * sub == tm

    def kernel(idx_ref, lut_ref, cmd_ref, pos_ref, o_ref):
        # idx_ref : (tm, 18)  int32  -- cols 0..15 = args+1, 16 = command, 17 = position
        # lut_ref : (16, _KP, d_pad) bf16  -- folded arg_embed @ embed_fcn per slot
        # cmd_ref : (_CMD_PAD, d_pad) f32  -- command_embed.weight + embed_fcn.bias
        # pos_ref : (pos_pad, d_pad)  f32  -- pos_embed.weight
        # o_ref   : (tm, d_pad)       f32
        cmd_tab = cmd_ref[...]
        pos_tab = pos_ref[...]

        for r in range(n_sub):                           # static unroll over subchunks
            rows = pl.ds(r * sub, sub)
            idx = idx_ref[rows, :]                       # (sub, 18) int32

            # --- exact f32 reconstruction of cmd_embed + fcn_bias + pos_embed ---
            cmd_oh = jnp.where(
                jax.lax.broadcasted_iota(jnp.int32, (sub, _CMD_PAD), 1) == idx[:, 16:17],
                1.0, 0.0)
            pos_oh = jnp.where(
                jax.lax.broadcasted_iota(jnp.int32, (sub, pos_pad), 1) == idx[:, 17:18],
                1.0, 0.0)
            acc = jnp.dot(cmd_oh, cmd_tab, preferred_element_type=jnp.float32)
            acc = acc + jnp.dot(pos_oh, pos_tab, preferred_element_type=jnp.float32)

            # --- linear layer via 16 folded-LUT one-hot matmuls (bf16 in, f32 acc) ---
            k_iota = jax.lax.broadcasted_iota(jnp.int32, (sub, _KP), 1)
            for s in range(16):
                oh = jnp.where(k_iota == idx[:, s:s + 1], 1.0, 0.0).astype(jnp.bfloat16)
                acc = acc + jnp.dot(oh, lut_ref[s], preferred_element_type=jnp.float32)

            o_ref[rows, :] = acc

    return kernel


def _choose_row_tile(m, d_pad, pos_pad, vmem_budget=24 * 1024 * 1024):
    """Row tile: multiple of 16, up to 1024, no forced >=2-grid-step rule."""
    if m <= _SUB:
        # Small M: a single full-size block (review: don't split tiny problems).
        return max(16, ((m + 15) // 16) * 16)
    resident = 2 * (16 * _KP * d_pad * 2          # bf16 LUT (double-buffered)
                    + _CMD_PAD * d_pad * 4        # cmd table
                    + pos_pad * d_pad * 4)        # pos table
    for tm in (1024, 512, 256, 128):
        step = resident + 2 * tm * _LANE * 4 + 2 * tm * d_pad * 4   # idx (lane-padded) + out
        if step <= vmem_budget:
            return tm
    return _SUB


# ---------------------------------------------------------------------------
# Parameter construction (deterministic, mirrors CADEmbedding.__init__ shapes)
# ---------------------------------------------------------------------------
def init_params(key, d_model, seq_len):
    k_cmd, k_arg, k_fw, k_fb, k_pos = jax.random.split(key, 5)
    args_dim = 256 + 1
    arg_w = jax.random.normal(k_arg, (args_dim, 64), dtype=jnp.float32)
    arg_w = arg_w.at[0].set(0.0)  # padding_idx=0
    params = dict(
        cmd_w=jax.random.normal(k_cmd, (6, d_model), dtype=jnp.float32),
        arg_w=arg_w,
        # PyTorch Linear stores (out, in); we keep the transposed (in, out) form.
        fcn_w_t=jax.random.normal(k_fw, (64 * 16, d_model), dtype=jnp.float32)
        * (1.0 / jnp.sqrt(64.0 * 16.0)),
        fcn_b=jax.random.normal(k_fb, (d_model,), dtype=jnp.float32) * 0.01,
        # kaiming_normal(fan_in) over a (max_len, d_model) table
        pos_w=jax.random.normal(k_pos, (seq_len + 2, d_model), dtype=jnp.float32)
        * jnp.sqrt(2.0 / d_model),
    )
    return params


def precompute_tables(params):
    """One-time table prep (fold + cast + pad); reuse across forward calls."""
    d_model = params["cmd_w"].shape[1]
    d_pad = max(_LANE, ((d_model + _LANE - 1) // _LANE) * _LANE)

    # Fold embed_fcn into 16 per-slot (257, d) lookup tables (exact f32 fold,
    # then a single bf16 rounding of the folded product).
    w3 = params["fcn_w_t"].reshape(16, 64, d_model)
    lut = jnp.einsum("vk,skd->svd", params["arg_w"], w3)            # (16, 257, d) f32
    lut = jnp.pad(lut, ((0, 0), (0, _KP - 257), (0, d_pad - d_model)))
    lut = lut.astype(jnp.bfloat16)                                   # (16, _KP, d_pad)

    # Command table with the fcn bias folded in (kept exact f32).
    cmd_tab = params["cmd_w"] + params["fcn_b"][None, :]
    cmd_tab = jnp.pad(cmd_tab, ((0, _CMD_PAD - 6), (0, d_pad - d_model)))

    # Positional table (full max_len rows; indexed by s = row // N).
    max_len = params["pos_w"].shape[0]
    pos_pad = ((max_len + 7) // 8) * 8
    pos_tab = jnp.pad(params["pos_w"], ((0, pos_pad - max_len), (0, d_pad - d_model)))

    return dict(lut=lut, cmd_tab=cmd_tab, pos_tab=pos_tab,
                d_model=d_model, d_pad=d_pad, pos_pad=pos_pad)


# ---------------------------------------------------------------------------
# Forward pass
# ---------------------------------------------------------------------------
def cad_embedding_forward(commands, args, tables):
    S, N = commands.shape
    d_model = tables["d_model"]
    d_pad = tables["d_pad"]
    pos_pad = tables["pos_pad"]
    M = S * N

    # (M, 18) int32 index stream: 16 arg slots | command | position (72 B/row).
    idx = jnp.concatenate(
        [
            (args.reshape(M, 16) + 1).astype(jnp.int32),
            commands.reshape(M, 1).astype(jnp.int32),
            (jnp.arange(M, dtype=jnp.int32) // N).reshape(M, 1),
        ],
        axis=1,
    )

    tm = _choose_row_tile(M, d_pad, pos_pad)
    sub = min(_SUB, tm)
    m_pad = ((M + tm - 1) // tm) * tm
    if m_pad != M:
        idx = jnp.pad(idx, ((0, m_pad - M), (0, 0)))   # index-0 rows, sliced off below

    grid = (m_pad // tm,)
    kernel = _make_kernel(tm, sub, pos_pad, d_pad)

    out = pl.pallas_call(
        kernel,
        out_shape=jax.ShapeDtypeStruct((m_pad, d_pad), jnp.float32),
        grid_spec=pltpu.PrefetchScalarGridSpec(
            num_scalar_prefetch=0,
            grid=grid,
            in_specs=[
                pl.BlockSpec((tm, 18), lambda i: (i, 0)),            # index stream
                pl.BlockSpec((16, _KP, d_pad), lambda i: (0, 0, 0)),  # folded LUT (resident)
                pl.BlockSpec((_CMD_PAD, d_pad), lambda i: (0, 0)),    # cmd + bias (resident)
                pl.BlockSpec((pos_pad, d_pad), lambda i: (0, 0)),     # pos table (resident)
            ],
            out_specs=pl.BlockSpec((tm, d_pad), lambda i: (i, 0)),
        ),
        compiler_params=pltpu.CompilerParams(
            dimension_semantics=("parallel",),   # lets v7x megacore split the row grid
            vmem_limit_bytes=32 * 1024 * 1024,
        ),
    )(idx, tables["lut"], tables["cmd_tab"], tables["pos_tab"])

    out = out[:M, :d_model]
    return out.reshape(S, N, d_model)


# pure-JAX f32 reference for correctness checking
def cad_embedding_reference(commands, args, params):
    S, N = commands.shape
    cmd_emb = jnp.take(params["cmd_w"], commands.astype(jnp.int32), axis=0)
    arg_emb = jnp.take(params["arg_w"], (args + 1).astype(jnp.int32), axis=0)
    arg_flat = arg_emb.reshape(S, N, 64 * 16)
    lin = arg_flat @ params["fcn_w_t"] + params["fcn_b"]
    src = cmd_emb + lin
    src = src + params["pos_w"][:S][:, None, :]
    return src


if __name__ == "__main__":
    # Small shapes consistent with the module's forward:
    #   commands: (S, N) int, values in [0, 6)
    #   args:     (S, N, 16) int, values in [-1, 255]  (arg_embed indexes args+1)
    S, N, d_model, seq_len = 8, 2, 32, 8

    key = jax.random.PRNGKey(0)
    k_params, k_cmd, k_args = jax.random.split(key, 3)

    params = init_params(k_params, d_model, seq_len)
    tables = precompute_tables(params)   # one-time fold/cast/pad (review item)

    commands = jax.random.randint(k_cmd, (S, N), 0, 6, dtype=jnp.int32)
    args = jax.random.randint(k_args, (S, N, 16), -1, 256, dtype=jnp.int32)

    out = cad_embedding_forward(commands, args, tables)
    out = jax.block_until_ready(out)

    ref = cad_embedding_reference(commands, args, params)
    assert out.shape == (S, N, d_model)
    # Only approximation is the single bf16 rounding of the folded LUT -> tight tolerance.
    assert jnp.allclose(out, ref, atol=3e-2, rtol=3e-2), "mismatch vs JAX reference"

    print("KERNEL_OK")
</pallas_src>

<mosaic_0001>
module attributes {stable_mosaic.version = 11 : i64} {
  func.func @kernel(%arg0: i32, %arg1: memref<16x18xi32, #tpu.memory_space<vmem>>, %arg2: memref<16x384x128xbf16, #tpu.memory_space<vmem>>, %arg3: memref<8x128xf32, #tpu.memory_space<vmem>>, %arg4: memref<16x128xf32, #tpu.memory_space<vmem>>, %arg5: memref<16x128xf32, #tpu.memory_space<vmem>>) attributes {dimension_semantics = [#tpu.dimension_semantics<parallel>], iteration_bounds = array<i64: 1>, scalar_prefetch = 0 : i64, scratch_operands = 0 : i64, tpu.core_type = #tpu.core_type<tc>, window_params = [{transform_indices = @transform_0, window_bounds = array<i64: 16, 18>}, {pipeline_mode = #tpu.pipeline_mode<synchronous>, transform_indices = @transform_1, window_bounds = array<i64: 16, 384, 128>}, {pipeline_mode = #tpu.pipeline_mode<synchronous>, transform_indices = @transform_2, window_bounds = array<i64: 8, 128>}, {pipeline_mode = #tpu.pipeline_mode<synchronous>, transform_indices = @transform_3, window_bounds = array<i64: 16, 128>}, {transform_indices = @transform_4, window_bounds = array<i64: 16, 128>}]} {
    %c0 = arith.constant 0 : index
    %c0_0 = arith.constant 0 : index
    %0 = vector.load %arg3[%c0, %c0_0] : memref<8x128xf32, #tpu.memory_space<vmem>>, vector<8x128xf32>
    %c0_1 = arith.constant 0 : index
    %c0_2 = arith.constant 0 : index
    %1 = vector.load %arg4[%c0_1, %c0_2] : memref<16x128xf32, #tpu.memory_space<vmem>>, vector<16x128xf32>
    %c0_3 = arith.constant 0 : index
    %c0_4 = arith.constant 0 : index
    %2 = vector.load %arg1[%c0_3, %c0_4] : memref<16x18xi32, #tpu.memory_space<vmem>>, vector<16x18xi32>
    %3 = tpu.iota {dimensions = array<i32: 1>} : vector<16x8xi32>
    %4 = vector.extract_strided_slice %2 {offsets = [0, 16], sizes = [16, 1], strides = [1, 1]} : vector<16x18xi32> to vector<16x1xi32>
    %5 = vector.broadcast %4 : vector<16x1xi32> to vector<16x8xi32>
    %6 = arith.cmpi eq, %3, %5 : vector<16x8xi32>
    %cst = arith.constant 1.000000e+00 : f32
    %cst_5 = arith.constant 0.000000e+00 : f32
    %7 = vector.broadcast %cst : f32 to vector<16x8xf32>
    %8 = vector.broadcast %cst_5 : f32 to vector<16x8xf32>
    %9 = arith.select %6, %7, %8 : vector<16x8xi1>, vector<16x8xf32>
    %10 = tpu.iota {dimensions = array<i32: 1>} : vector<16x16xi32>
    %11 = vector.extract_strided_slice %2 {offsets = [0, 17], sizes = [16, 1], strides = [1, 1]} : vector<16x18xi32> to vector<16x1xi32>
    %12 = vector.broadcast %11 : vector<16x1xi32> to vector<16x16xi32>
    %13 = arith.cmpi eq, %10, %12 : vector<16x16xi32>
    %cst_6 = arith.constant 1.000000e+00 : f32
    %cst_7 = arith.constant 0.000000e+00 : f32
    %14 = vector.broadcast %cst_6 : f32 to vector<16x16xf32>
    %15 = vector.broadcast %cst_7 : f32 to vector<16x16xf32>
    %16 = arith.select %13, %14, %15 : vector<16x16xi1>, vector<16x16xf32>
    %cst_8 = arith.constant dense<0.000000e+00> : vector<16x128xf32>
    %17 = tpu.matmul %9, %0, %cst_8 {dimension_numbers = #tpu.dot_dimension_numbers<[1], [0], [0], [1], [0, 0, 1, 1], [], []>} : vector<16x8xf32>, vector<8x128xf32>, vector<16x128xf32> -> vector<16x128xf32>
    %cst_9 = arith.constant dense<0.000000e+00> : vector<16x128xf32>
    %18 = tpu.matmul %16, %1, %cst_9 {dimension_numbers = #tpu.dot_dimension_numbers<[1], [0], [0], [1], [0, 0, 1, 1], [], []>} : vector<16x16xf32>, vector<16x128xf32>, vector<16x128xf32> -> vector<16x128xf32>
    %19 = arith.addf %17, %18 : vector<16x128xf32>
    %20 = tpu.iota {dimensions = array<i32: 1>} : vector<16x384xi32>
    %21 = vector.extract_strided_slice %2 {offsets = [0, 0], sizes = [16, 1], strides = [1, 1]} : vector<16x18xi32> to vector<16x1xi32>
    %22 = vector.broadcast %21 : vector<16x1xi32> to vector<16x384xi32>
    %23 = arith.cmpi eq, %20, %22 : vector<16x384xi32>
    %cst_10 = arith.constant 1.000000e+00 : f32
    %cst_11 = arith.constant 0.000000e+00 : f32
    %24 = vector.broadcast %cst_10 : f32 to vector<16x384xf32>
    %25 = vector.broadcast %cst_11 : f32 to vector<16x384xf32>
    %26 = arith.select %23, %24, %25 : vector<16x384xi1>, vector<16x384xf32>
    %27 = arith.truncf %26 : vector<16x384xf32> to vector<16x384xbf16>
    %c0_12 = arith.constant 0 : index
    %c0_13 = arith.constant 0 : index
    %c0_14 = arith.constant 0 : index
    %28 = vector.load %arg2[%c0_12, %c0_13, %c0_14] : memref<16x384x128xbf16, #tpu.memory_space<vmem>>, vector<1x384x128xbf16>
    %29 = vector.shape_cast %28 : vector<1x384x128xbf16> to vector<384x128xbf16>
    %cst_15 = arith.constant dense<0.000000e+00> : vector<16x128xf32>
    %30 = tpu.matmul %27, %29, %cst_15 {dimension_numbers = #tpu.dot_dimension_numbers<[1], [0], [0], [1], [0, 0, 1, 1], [], []>} : vector<16x384xbf16>, vector<384x128xbf16>, vector<16x128xf32> -> vector<16x128xf32>
    %31 = arith.addf %19, %30 : vector<16x128xf32>
    %32 = vector.extract_strided_slice %2 {offsets = [0, 1], sizes = [16, 1], strides = [1, 1]} : vector<16x18xi32> to vector<16x1xi32>
    %33 = vector.broadcast %32 : vector<16x1xi32> to vector<16x384xi32>
    %34 = arith.cmpi eq, %20, %33 : vector<16x384xi32>
    %cst_16 = arith.constant 1.000000e+00 : f32
    %cst_17 = arith.constant 0.000000e+00 : f32
    %35 = vector.broadcast %cst_16 : f32 to vector<16x384xf32>
    %36 = vector.broadcast %cst_17 : f32 to vector<16x384xf32>
    %37 = arith.select %34, %35, %36 : vector<16x384xi1>, vector<16x384xf32>
    %38 = arith.truncf %37 : vector<16x384xf32> to vector<16x384xbf16>
    %c1 = arith.constant 1 : index
    %c0_18 = arith.constant 0 : index
    %c0_19 = arith.constant 0 : index
    %39 = vector.load %arg2[%c1, %c0_18, %c0_19] : memref<16x384x128xbf16, #tpu.memory_space<vmem>>, vector<1x384x128xbf16>
    %40 = vector.shape_cast %39 : vector<1x384x128xbf16> to vector<384x128xbf16>
    %cst_20 = arith.constant dense<0.000000e+00> : vector<16x128xf32>
    %41 = tpu.matmul %38, %40, %cst_20 {dimension_numbers = #tpu.dot_dimension_numbers<[1], [0], [0], [1], [0, 0, 1, 1], [], []>} : vector<16x384xbf16>, vector<384x128xbf16>, vector<16x128xf32> -> vector<16x128xf32>
    %42 = arith.addf %31, %41 : vector<16x128xf32>
    %43 = vector.extract_strided_slice %2 {offsets = [0, 2], sizes = [16, 1], strides = [1, 1]} : vector<16x18xi32> to vector<16x1xi32>
    %44 = vector.broadcast %43 : vector<16x1xi32> to vector<16x384xi32>
    %45 = arith.cmpi eq, %20, %44 : vector<16x384xi32>
    %cst_21 = arith.constant 1.000000e+00 : f32
    %cst_22 = arith.constant 0.000000e+00 : f32
    %46 = vector.broadcast %cst_21 : f32 to vector<16x384xf32>
    %47 = vector.broadcast %cst_22 : f32 to vector<16x384xf32>
    %48 = arith.select %45, %46, %47 : vector<16x384xi1>, vector<16x384xf32>
    %49 = arith.truncf %48 : vector<16x384xf32> to vector<16x384xbf16>
    %c2 = arith.constant 2 : index
    %c0_23 = arith.constant 0 : index
    %c0_24 = arith.constant 0 : index
    %50 = vector.load %arg2[%c2, %c0_23, %c0_24] : memref<16x384x128xbf16, #tpu.memory_space<vmem>>, vector<1x384x128xbf16>
    %51 = vector.shape_cast %50 : vector<1x384x128xbf16> to vector<384x128xbf16>
    %cst_25 = arith.constant dense<0.000000e+00> : vector<16x128xf32>
    %52 = tpu.matmul %49, %51, %cst_25 {dimension_numbers = #tpu.dot_dimension_numbers<[1], [0], [0], [1], [0, 0, 1, 1], [], []>} : vector<16x384xbf16>, vector<384x128xbf16>, vector<16x128xf32> -> vector<16x128xf32>
    %53 = arith.addf %42, %52 : vector<16x128xf32>
    %54 = vector.extract_strided_slice %2 {offsets = [0, 3], sizes = [16, 1], strides = [1, 1]} : vector<16x18xi32> to vector<16x1xi32>
    %55 = vector.broadcast %54 : vector<16x1xi32> to vector<16x384xi32>
    %56 = arith.cmpi eq, %20, %55 : vector<16x384xi32>
    %cst_26 = arith.constant 1.000000e+00 : f32
    %cst_27 = arith.constant 0.000000e+00 : f32
    %57 = vector.broadcast %cst_26 : f32 to vector<16x384xf32>
    %58 = vector.broadcast %cst_27 : f32 to vector<16x384xf32>
    %59 = arith.select %56, %57, %58 : vector<16x384xi1>, vector<16x384xf32>
    %60 = arith.truncf %59 : vector<16x384xf32> to vector<16x384xbf16>
    %c3 = arith.constant 3 : index
    %c0_28 = arith.constant 0 : index
    %c0_29 = arith.constant 0 : index
    %61 = vector.load %arg2[%c3, %c0_28, %c0_29] : memref<16x384x128xbf16, #tpu.memory_space<vmem>>, vector<1x384x128xbf16>
    %62 = vector.shape_cast %61 : vector<1x384x128xbf16> to vector<384x128xbf16>
    %cst_30 = arith.constant dense<0.000000e+00> : vector<16x128xf32>
    %63 = tpu.matmul %60, %62, %cst_30 {dimension_numbers = #tpu.dot_dimension_numbers<[1], [0], [0], [1], [0, 0, 1, 1], [], []>} : vector<16x384xbf16>, vector<384x128xbf16>, vector<16x128xf32> -> vector<16x128xf32>
    %64 = arith.addf %53, %63 : vector<16x128xf32>
    %65 = vector.extract_strided_slice %2 {offsets = [0, 4], sizes = [16, 1], strides = [1, 1]} : vector<16x18xi32> to vector<16x1xi32>
    %66 = vector.broadcast %65 : vector<16x1xi32> to vector<16x384xi32>
    %67 = arith.cmpi eq, %20, %66 : vector<16x384xi32>
    %cst_31 = arith.constant 1.000000e+00 : f32
    %cst_32 = arith.constant 0.000000e+00 : f32
    %68 = vector.broadcast %cst_31 : f32 to vector<16x384xf32>
    %69 = vector.broadcast %cst_32 : f32 to vector<16x384xf32>
    %70 = arith.select %67, %68, %69 : vector<16x384xi1>, vector<16x384xf32>
    %71 = arith.truncf %70 : vector<16x384xf32> to vector<16x384xbf16>
    %c4 = arith.constant 4 : index
    %c0_33 = arith.constant 0 : index
    %c0_34 = arith.constant 0 : index
    %72 = vector.load %arg2[%c4, %c0_33, %c0_34] : memref<16x384x128xbf16, #tpu.memory_space<vmem>>, vector<1x384x128xbf16>
    %73 = vector.shape_cast %72 : vector<1x384x128xbf16> to vector<384x128xbf16>
    %cst_35 = arith.constant dense<0.000000e+00> : vector<16x128xf32>
    %74 = tpu.matmul %71, %73, %cst_35 {dimension_numbers = #tpu.dot_dimension_numbers<[1], [0], [0], [1], [0, 0, 1, 1], [], []>} : vector<16x384xbf16>, vector<384x128xbf16>, vector<16x128xf32> -> vector<16x128xf32>
    %75 = arith.addf %64, %74 : vector<16x128xf32>
    %76 = vector.extract_strided_slice %2 {offsets = [0, 5], sizes = [16, 1], strides = [1, 1]} : vector<16x18xi32> to vector<16x1xi32>
    %77 = vector.broadcast %76 : vector<16x1xi32> to vector<16x384xi32>
    %78 = arith.cmpi eq, %20, %77 : vector<16x384xi32>
    %cst_36 = arith.constant 1.000000e+00 : f32
    %cst_37 = arith.constant 0.000000e+00 : f32
    %79 = vector.broadcast %cst_36 : f32 to vector<16x384xf32>
    %80 = vector.broadcast %cst_37 : f32 to vector<16x384xf32>
    %81 = arith.select %78, %79, %80 : vector<16x384xi1>, vector<16x384xf32>
    %82 = arith.truncf %81 : vector<16x384xf32> to vector<16x384xbf16>
    %c5 = arith.constant 5 : index
    %c0_38 = arith.constant 0 : index
    %c0_39 = arith.constant 0 : index
    %83 = vector.load %arg2[%c5, %c0_38, %c0_39] : memref<16x384x128xbf16, #tpu.memory_space<vmem>>, vector<1x384x128xbf16>
    %84 = vector.shape_cast %83 : vector<1x384x128xbf16> to vector<384x128xbf16>
    %cst_40 = arith.constant dense<0.000000e+00> : vector<16x128xf32>
    %85 = tpu.matmul %82, %84, %cst_40 {dimension_numbers = #tpu.dot_dimension_numbers<[1], [0], [0], [1], [0, 0, 1, 1], [], []>} : vector<16x384xbf16>, vector<384x128xbf16>, vector<16x128xf32> -> vector<16x128xf32>
    %86 = arith.addf %75, %85 : vector<16x128xf32>
    %87 = vector.extract_strided_slice %2 {offsets = [0, 6], sizes = [16, 1], strides = [1, 1]} : vector<16x18xi32> to vector<16x1xi32>
    %88 = vector.broadcast %87 : vector<16x1xi32> to vector<16x384xi32>
    %89 = arith.cmpi eq, %20, %88 : vector<16x384xi32>
    %cst_41 = arith.constant 1.000000e+00 : f32
    %cst_42 = arith.constant 0.000000e+00 : f32
    %90 = vector.broadcast %cst_41 : f32 to vector<16x384xf32>
    %91 = vector.broadcast %cst_42 : f32 to vector<16x384xf32>
    %92 = arith.select %89, %90, %91 : vector<16x384xi1>, vector<16x384xf32>
    %93 = arith.truncf %92 : vector<16x384xf32> to vector<16x384xbf16>
    %c6 = arith.constant 6 : index
    %c0_43 = arith.constant 0 : index
    %c0_44 = arith.constant 0 : index
    %94 = vector.load %arg2[%c6, %c0_43, %c0_44] : memref<16x384x128xbf16, #tpu.memory_space<vmem>>, vector<1x384x128xbf16>
    %95 = vector.shape_cast %94 : vector<1x384x128xbf16> to vector<384x128xbf16>
    %cst_45 = arith.constant dense<0.000000e+00> : vector<16x128xf32>
    %96 = tpu.matmul %93, %95, %cst_45 {dimension_numbers = #tpu.dot_dimension_numbers<[1], [0], [0], [1], [0, 0, 1, 1], [], []>} : vector<16x384xbf16>, vector<384x128xbf16>, vector<16x128xf32> -> vector<16x128xf32>
    %97 = arith.addf %86, %96 : vector<16x128xf32>
    %98 = vector.extract_strided_slice %2 {offsets = [0, 7], sizes = [16, 1], strides = [1, 1]} : vector<16x18xi32> to vector<16x1xi32>
    %99 = vector.broadcast %98 : vector<16x1xi32> to vector<16x384xi32>
    %100 = arith.cmpi eq, %20, %99 : vector<16x384xi32>
    %cst_46 = arith.constant 1.000000e+00 : f32
    %cst_47 = arith.constant 0.000000e+00 : f32
    %101 = vector.broadcast %cst_46 : f32 to vector<16x384xf32>
    %102 = vector.broadcast %cst_47 : f32 to vector<16x384xf32>
    %103 = arith.select %100, %101, %102 : vector<16x384xi1>, vector<16x384xf32>
    %104 = arith.truncf %103 : vector<16x384xf32> to vector<16x384xbf16>
    %c7 = arith.constant 7 : index
    %c0_48 = arith.constant 0 : index
    %c0_49 = arith.constant 0 : index
    %105 = vector.load %arg2[%c7, %c0_48, %c0_49] : memref<16x384x128xbf16, #tpu.memory_space<vmem>>, vector<1x384x128xbf16>
    %106 = vector.shape_cast %105 : vector<1x384x128xbf16> to vector<384x128xbf16>
    %cst_50 = arith.constant dense<0.000000e+00> : vector<16x128xf32>
    %107 = tpu.matmul %104, %106, %cst_50 {dimension_numbers = #tpu.dot_dimension_numbers<[1], [0], [0], [1], [0, 0, 1, 1], [], []>} : vector<16x384xbf16>, vector<384x128xbf16>, vector<16x128xf32> -> vector<16x128xf32>
    %108 = arith.addf %97, %107 : vector<16x128xf32>
    %109 = vector.extract_strided_slice %2 {offsets = [0, 8], sizes = [16, 1], strides = [1, 1]} : vector<16x18xi32> to vector<16x1xi32>
    %110 = vector.broadcast %109 : vector<16x1xi32> to vector<16x384xi32>
    %111 = arith.cmpi eq, %20, %110 : vector<16x384xi32>
    %cst_51 = arith.constant 1.000000e+00 : f32
    %cst_52 = arith.constant 0.000000e+00 : f32
    %112 = vector.broadcast %cst_51 : f32 to vector<16x384xf32>
    %113 = vector.broadcast %cst_52 : f32 to vector<16x384xf32>
    %114 = arith.select %111, %112, %113 : vector<16x384xi1>, vector<16x384xf32>
    %115 = arith.truncf %114 : vector<16x384xf32> to vector<16x384xbf16>
    %c8 = arith.constant 8 : index
    %c0_53 = arith.constant 0 : index
    %c0_54 = arith.constant 0 : index
    %116 = vector.load %arg2[%c8, %c0_53, %c0_54] : memref<16x384x128xbf16, #tpu.memory_space<vmem>>, vector<1x384x128xbf16>
    %117 = vector.shape_cast %116 : vector<1x384x128xbf16> to vector<384x128xbf16>
    %cst_55 = arith.constant dense<0.000000e+00> : vector<16x128xf32>
    %118 = tpu.matmul %115, %117, %cst_55 {dimension_numbers = #tpu.dot_dimension_numbers<[1], [0], [0], [1], [0, 0, 1, 1], [], []>} : vector<16x384xbf16>, vector<384x128xbf16>, vector<16x128xf32> -> vector<16x128xf32>
    %119 = arith.addf %108, %118 : vector<16x128xf32>
    %120 = vector.extract_strided_slice %2 {offsets = [0, 9], sizes = [16, 1], strides = [1, 1]} : vector<16x18xi32> to vector<16x1xi32>
    %121 = vector.broadcast %120 : vector<16x1xi32> to vector<16x384xi32>
    %122 = arith.cmpi eq, %20, %121 : vector<16x384xi32>
    %cst_56 = arith.constant 1.000000e+00 : f32
    %cst_57 = arith.constant 0.000000e+00 : f32
    %123 = vector.broadcast %cst_56 : f32 to vector<16x384xf32>
    %124 = vector.broadcast %cst_57 : f32 to vector<16x384xf32>
    %125 = arith.select %122, %123, %124 : vector<16x384xi1>, vector<16x384xf32>
    %126 = arith.truncf %125 : vector<16x384xf32> to vector<16x384xbf16>
    %c9 = arith.constant 9 : index
    %c0_58 = arith.constant 0 : index
    %c0_59 = arith.constant 0 : index
    %127 = vector.load %arg2[%c9, %c0_58, %c0_59] : memref<16x384x128xbf16, #tpu.memory_space<vmem>>, vector<1x384x128xbf16>
    %128 = vector.shape_cast %127 : vector<1x384x128xbf16> to vector<384x128xbf16>
    %cst_60 = arith.constant dense<0.000000e+00> : vector<16x128xf32>
    %129 = tpu.matmul %126, %128, %cst_60 {dimension_numbers = #tpu.dot_dimension_numbers<[1], [0], [0], [1], [0, 0, 1, 1], [], []>} : vector<16x384xbf16>, vector<384x128xbf16>, vector<16x128xf32> -> vector<16x128xf32>
    %130 = arith.addf %119, %129 : vector<16x128xf32>
    %131 = vector.extract_strided_slice %2 {offsets = [0, 10], sizes = [16, 1], strides = [1, 1]} : vector<16x18xi32> to vector<16x1xi32>
    %132 = vector.broadcast %131 : vector<16x1xi32> to vector<16x384xi32>
    %133 = arith.cmpi eq, %20, %132 : vector<16x384xi32>
    %cst_61 = arith.constant 1.000000e+00 : f32
    %cst_62 = arith.constant 0.000000e+00 : f32
    %134 = vector.broadcast %cst_61 : f32 to vector<16x384xf32>
    %135 = vector.broadcast %cst_62 : f32 to vector<16x384xf32>
    %136 = arith.select %133, %134, %135 : vector<16x384xi1>, vector<16x384xf32>
    %137 = arith.truncf %136 : vector<16x384xf32> to vector<16x384xbf16>
    %c10 = arith.constant 10 : index
    %c0_63 = arith.constant 0 : index
    %c0_64 = arith.constant 0 : index
    %138 = vector.load %arg2[%c10, %c0_63, %c0_64] : memref<16x384x128xbf16, #tpu.memory_space<vmem>>, vector<1x384x128xbf16>
    %139 = vector.shape_cast %138 : vector<1x384x128xbf16> to vector<384x128xbf16>
    %cst_65 = arith.constant dense<0.000000e+00> : vector<16x128xf32>
    %140 = tpu.matmul %137, %139, %cst_65 {dimension_numbers = #tpu.dot_dimension_numbers<[1], [0], [0], [1], [0, 0, 1, 1], [], []>} : vector<16x384xbf16>, vector<384x128xbf16>, vector<16x128xf32> -> vector<16x128xf32>
    %141 = arith.addf %130, %140 : vector<16x128xf32>
    %142 = vector.extract_strided_slice %2 {offsets = [0, 11], sizes = [16, 1], strides = [1, 1]} : vector<16x18xi32> to vector<16x1xi32>
    %143 = vector.broadcast %142 : vector<16x1xi32> to vector<16x384xi32>
    %144 = arith.cmpi eq, %20, %143 : vector<16x384xi32>
    %cst_66 = arith.constant 1.000000e+00 : f32
    %cst_67 = arith.constant 0.000000e+00 : f32
    %145 = vector.broadcast %cst_66 : f32 to vector<16x384xf32>
    %146 = vector.broadcast %cst_67 : f32 to vector<16x384xf32>
    %147 = arith.select %144, %145, %146 : vector<16x384xi1>, vector<16x384xf32>
    %148 = arith.truncf %147 : vector<16x384xf32> to vector<16x384xbf16>
    %c11 = arith.constant 11 : index
    %c0_68 = arith.constant 0 : index
    %c0_69 = arith.constant 0 : index
    %149 = vector.load %arg2[%c11, %c0_68, %c0_69] : memref<16x384x128xbf16, #tpu.memory_space<vmem>>, vector<1x384x128xbf16>
    %150 = vector.shape_cast %149 : vector<1x384x128xbf16> to vector<384x128xbf16>
    %cst_70 = arith.constant dense<0.000000e+00> : vector<16x128xf32>
    %151 = tpu.matmul %148, %150, %cst_70 {dimension_numbers = #tpu.dot_dimension_numbers<[1], [0], [0], [1], [0, 0, 1, 1], [], []>} : vector<16x384xbf16>, vector<384x128xbf16>, vector<16x128xf32> -> vector<16x128xf32>
    %152 = arith.addf %141, %151 : vector<16x128xf32>
    %153 = vector.extract_strided_slice %2 {offsets = [0, 12], sizes = [16, 1], strides = [1, 1]} : vector<16x18xi32> to vector<16x1xi32>
    %154 = vector.broadcast %153 : vector<16x1xi32> to vector<16x384xi32>
    %155 = arith.cmpi eq, %20, %154 : vector<16x384xi32>
    %cst_71 = arith.constant 1.000000e+00 : f32
    %cst_72 = arith.constant 0.000000e+00 : f32
    %156 = vector.broadcast %cst_71 : f32 to vector<16x384xf32>
    %157 = vector.broadcast %cst_72 : f32 to vector<16x384xf32>
    %158 = arith.select %155, %156, %157 : vector<16x384xi1>, vector<16x384xf32>
    %159 = arith.truncf %158 : vector<16x384xf32> to vector<16x384xbf16>
    %c12 = arith.constant 12 : index
    %c0_73 = arith.constant 0 : index
    %c0_74 = arith.constant 0 : index
    %160 = vector.load %arg2[%c12, %c0_73, %c0_74] : memref<16x384x128xbf16, #tpu.memory_space<vmem>>, vector<1x384x128xbf16>
    %161 = vector.shape_cast %160 : vector<1x384x128xbf16> to vector<384x128xbf16>
    %cst_75 = arith.constant dense<0.000000e+00> : vector<16x128xf32>
    %162 = tpu.matmul %159, %161, %cst_75 {dimension_numbers = #tpu.dot_dimension_numbers<[1], [0], [0], [1], [0, 0, 1, 1], [], []>} : vector<16x384xbf16>, vector<384x128xbf16>, vector<16x128xf32> -> vector<16x128xf32>
    %163 = arith.addf %152, %162 : vector<16x128xf32>
    %164 = vector.extract_strided_slice %2 {offsets = [0, 13], sizes = [16, 1], strides = [1, 1]} : vector<16x18xi32> to vector<16x1xi32>
    %165 = vector.broadcast %164 : vector<16x1xi32> to vector<16x384xi32>
    %166 = arith.cmpi eq, %20, %165 : vector<16x384xi32>
    %cst_76 = arith.constant 1.000000e+00 : f32
    %cst_77 = arith.constant 0.000000e+00 : f32
    %167 = vector.broadcast %cst_76 : f32 to vector<16x384xf32>
    %168 = vector.broadcast %cst_77 : f32 to vector<16x384xf32>
    %169 = arith.select %166, %167, %168 : vector<16x384xi1>, vector<16x384xf32>
    %170 = arith.truncf %169 : vector<16x384xf32> to vector<16x384xbf16>
    %c13 = arith.constant 13 : index
    %c0_78 = arith.constant 0 : index
    %c0_79 = arith.constant 0 : index
    %171 = vector.load %arg2[%c13, %c0_78, %c0_79] : memref<16x384x128xbf16, #tpu.memory_space<vmem>>, vector<1x384x128xbf16>
    %172 = vector.shape_cast %171 : vector<1x384x128xbf16> to vector<384x128xbf16>
    %cst_80 = arith.constant dense<0.000000e+00> : vector<16x128xf32>
    %173 = tpu.matmul %170, %172, %cst_80 {dimension_numbers = #tpu.dot_dimension_numbers<[1], [0], [0], [1], [0, 0, 1, 1], [], []>} : vector<16x384xbf16>, vector<384x128xbf16>, vector<16x128xf32> -> vector<16x128xf32>
    %174 = arith.addf %163, %173 : vector<16x128xf32>
    %175 = vector.extract_strided_slice %2 {offsets = [0, 14], sizes = [16, 1], strides = [1, 1]} : vector<16x18xi32> to vector<16x1xi32>
    %176 = vector.broadcast %175 : vector<16x1xi32> to vector<16x384xi32>
    %177 = arith.cmpi eq, %20, %176 : vector<16x384xi32>
    %cst_81 = arith.constant 1.000000e+00 : f32
    %cst_82 = arith.constant 0.000000e+00 : f32
    %178 = vector.broadcast %cst_81 : f32 to vector<16x384xf32>
    %179 = vector.broadcast %cst_82 : f32 to vector<16x384xf32>
    %180 = arith.select %177, %178, %179 : vector<16x384xi1>, vector<16x384xf32>
    %181 = arith.truncf %180 : vector<16x384xf32> to vector<16x384xbf16>
    %c14 = arith.constant 14 : index
    %c0_83 = arith.constant 0 : index
    %c0_84 = arith.constant 0 : index
    %182 = vector.load %arg2[%c14, %c0_83, %c0_84] : memref<16x384x128xbf16, #tpu.memory_space<vmem>>, vector<1x384x128xbf16>
    %183 = vector.shape_cast %182 : vector<1x384x128xbf16> to vector<384x128xbf16>
    %cst_85 = arith.constant dense<0.000000e+00> : vector<16x128xf32>
    %184 = tpu.matmul %181, %183, %cst_85 {dimension_numbers = #tpu.dot_dimension_numbers<[1], [0], [0], [1], [0, 0, 1, 1], [], []>} : vector<16x384xbf16>, vector<384x128xbf16>, vector<16x128xf32> -> vector<16x128xf32>
    %185 = arith.addf %174, %184 : vector<16x128xf32>
    %186 = vector.extract_strided_slice %2 {offsets = [0, 15], sizes = [16, 1], strides = [1, 1]} : vector<16x18xi32> to vector<16x1xi32>
    %187 = vector.broadcast %186 : vector<16x1xi32> to vector<16x384xi32>
    %188 = arith.cmpi eq, %20, %187 : vector<16x384xi32>
    %cst_86 = arith.constant 1.000000e+00 : f32
    %cst_87 = arith.constant 0.000000e+00 : f32
    %189 = vector.broadcast %cst_86 : f32 to vector<16x384xf32>
    %190 = vector.broadcast %cst_87 : f32 to vector<16x384xf32>
    %191 = arith.select %188, %189, %190 : vector<16x384xi1>, vector<16x384xf32>
    %192 = arith.truncf %191 : vector<16x384xf32> to vector<16x384xbf16>
    %c15 = arith.constant 15 : index
    %c0_88 = arith.constant 0 : index
    %c0_89 = arith.constant 0 : index
    %193 = vector.load %arg2[%c15, %c0_88, %c0_89] : memref<16x384x128xbf16, #tpu.memory_space<vmem>>, vector<1x384x128xbf16>
    %194 = vector.shape_cast %193 : vector<1x384x128xbf16> to vector<384x128xbf16>
    %cst_90 = arith.constant dense<0.000000e+00> : vector<16x128xf32>
    %195 = tpu.matmul %192, %194, %cst_90 {dimension_numbers = #tpu.dot_dimension_numbers<[1], [0], [0], [1], [0, 0, 1, 1], [], []>} : vector<16x384xbf16>, vector<384x128xbf16>, vector<16x128xf32> -> vector<16x128xf32>
    %196 = arith.addf %185, %195 : vector<16x128xf32>
    %c0_91 = arith.constant 0 : index
    %c0_92 = arith.constant 0 : index
    %197 = vector.load %arg5[%c0_91, %c0_92] : memref<16x128xf32, #tpu.memory_space<vmem>>, vector<16x128xf32>
    tpu.vector_store %arg5[%c0_91, %c0_92], %196 {strides = array<i32>} : memref<16x128xf32, #tpu.memory_space<vmem>>, vector<16x128xf32>,
    return
  }
  func.func @transform_0(%arg0: i32) -> (i32, i32) {
    %c0_i32 = arith.constant 0 : i32
    %c0_i32_0 = arith.constant 0 : i32
    return %arg0, %c0_i32 : i32, i32
  }
  func.func @transform_1(%arg0: i32) -> (i32, i32, i32) {
    %c0_i32 = arith.constant 0 : i32
    %c0_i32_0 = arith.constant 0 : i32
    %c0_i32_1 = arith.constant 0 : i32
    %c0_i32_2 = arith.constant 0 : i32
    return %c0_i32, %c0_i32_0, %c0_i32_1 : i32, i32, i32
  }
  func.func @transform_2(%arg0: i32) -> (i32, i32) {
    %c0_i32 = arith.constant 0 : i32
    %c0_i32_0 = arith.constant 0 : i32
    %c0_i32_1 = arith.constant 0 : i32
    return %c0_i32, %c0_i32_0 : i32, i32
  }
  func.func @transform_3(%arg0: i32) -> (i32, i32) {
    %c0_i32 = arith.constant 0 : i32
    %c0_i32_0 = arith.constant 0 : i32
    %c0_i32_1 = arith.constant 0 : i32
    return %c0_i32, %c0_i32_0 : i32, i32
  }
  func.func @transform_4(%arg0: i32) -> (i32, i32) {
    %c0_i32 = arith.constant 0 : i32
    %c0_i32_0 = arith.constant 0 : i32
    return %arg0, %c0_i32 : i32, i32
  }
}

</mosaic_0001>

<llo_original>
// kernel: tpu_custom_call.1
$region0: #{tpu_custom_call.1}
  #allocation0 [shape = 'u32[]', space=smem, size = 0x4, offset = 0x4, fixed_abs, tag = 'smem constant byte address 0x4 - core index']
  #allocation1 [shape = 'u32[144,128]{1,0:T(1,128)}', space=vmem, size = 0x12000, scoped, tag = 'internal scratch']
  %s0 = inlined_call_operand.hbm [shape: s32[16,18], index: 0, kind: input, shape index: {}]
  %s1 = inlined_call_operand.hbm [shape: bf16[16,384,128], index: 1, kind: input, shape index: {}]
  %s2 = inlined_call_operand.hbm [shape: f32[8,128], index: 2, kind: input, shape index: {}]
  %s3 = inlined_call_operand.hbm [shape: f32[16,128], index: 3, kind: input, shape index: {}]
  %s4 = inlined_call_operand.hbm [shape: f32[16,128], index: 4, kind: output, shape index: {}]
  %s5 = sld [smem:[#allocation0]]
  $region42: #{tpu_custom_call.1} parent=0
    _
  %s7 = ssub.s32 1, %s5
  %s8 = scalar_select 0, %s7, %s5
  $region1: #{tpu_custom_call.1} parent=0
    #allocation2 [shape = 'u8[8192]{0}', space=vmem, size = 0x2000, scoped, tag = 'input window, operand 0, single buffered']
    #allocation3 [shape = 's32[1]{0}', space=sflag, size = 0x4, scoped, tag = 'scoped memory for tpu_custom_call.1']
    #allocation4 [shape = 's32[1]{0}', space=sflag, size = 0x4, scoped, tag = 'scoped memory for tpu_custom_call.1']
    #allocation5 [shape = 'u8[1572864]{0}', space=vmem, size = 0x180000, scoped, tag = 'input window, operand 1, single buffered']
    #allocation6 [shape = 's32[1]{0}', space=sflag, size = 0x4, scoped, tag = 'scoped memory for tpu_custom_call.1']
    #allocation7 [shape = 'u8[4096]{0}', space=vmem, size = 0x1000, scoped, tag = 'input window, operand 2, single buffered']
    #allocation8 [shape = 'u8[8192]{0}', space=vmem, size = 0x2000, scoped, tag = 'input window, operand 3, single buffered']
    #allocation9 [shape = 's32[1]{0}', space=sflag, size = 0x4, scoped, tag = 'scoped memory for tpu_custom_call.1']
    #allocation10 [shape = 'u8[8192]{0}', space=vmem, size = 0x2000, scoped, tag = 'output window, operand 0, single buffered']
    %9 = vsyncpa [#allocation3], 0
    %10 = vsyncpa [#allocation6], 0
    %11 = vsyncpa [#allocation9], 0
    %12 = vsyncpa [#allocation4], 0
    // Predicated region
    $region2: #{tpu_custom_call.1} parent=1 // pred_check
      _
    $region3: #{tpu_custom_call.1} parent=1 // pred_check_branch
      %14 = sbr.rel (0) target = $region5
    $region4: #{tpu_custom_call.1} parent=1 // pred_region
      %s16 = ssub.s32 256, 256
      %17 = vsyncadd [#allocation3], %s16
      %s18 = sshll.u32 [#allocation2], 4
      %s19 = int_to_ptr.vmem [resolvable:$true] %s18
      %24 = dma.hbm_to_vmem [thread:$0]  %s0, 256, %s19, [#allocation3], 128, 128, 8
    $region5: #{tpu_custom_call.1} parent=1 // pred_fallthru
      _
    // Predicated region
    $region6: #{tpu_custom_call.1} parent=1 // pred_check
      _
    $region7: #{tpu_custom_call.1} parent=1 // pred_check_branch
      %26 = sbr.rel (0) target = $region9
    $region8: #{tpu_custom_call.1} parent=1 // pred_region
      %s28 = ssub.s32 49152, 49152
      %29 = vsyncadd [#allocation6], %s28
      %s30 = sshll.u32 [#allocation5], 4
      %s31 = int_to_ptr.vmem [resolvable:$true] %s30
      %36 = dma.hbm_to_vmem [thread:$0]  %s1, 49152, %s31, [#allocation6], 64, 64, 4
    $region9: #{tpu_custom_call.1} parent=1 // pred_fallthru
      _
    // Predicated region
    $region10: #{tpu_custom_call.1} parent=1 // pred_check
      _
    $region11: #{tpu_custom_call.1} parent=1 // pred_check_branch
      %38 = sbr.rel (0) target = $region13
    $region12: #{tpu_custom_call.1} parent=1 // pred_region
      %s40 = ssub.s32 128, 128
      %41 = vsyncadd [#allocation6], %s40
      %s43 = sshll.u32 [#allocation7], 4
      %s44 = int_to_ptr.vmem [resolvable:$true] %s43
      %46 = dma.hbm_to_vmem [thread:$0]  %s2, 128, %s44, [#allocation6]
    $region13: #{tpu_custom_call.1} parent=1 // pred_fallthru
      _
    // Predicated region
    $region14: #{tpu_custom_call.1} parent=1 // pred_check
      _
    $region15: #{tpu_custom_call.1} parent=1 // pred_check_branch
      %48 = sbr.rel (0) target = $region17
    $region16: #{tpu_custom_call.1} parent=1 // pred_region
      %s50 = ssub.s32 256, 256
      %51 = vsyncadd [#allocation9], %s50
      %s52 = sshll.u32 [#allocation8], 4
      %s53 = int_to_ptr.vmem [resolvable:$true] %s52
      %58 = dma.hbm_to_vmem [thread:$0]  %s3, 256, %s53, [#allocation9], 128, 128, 8
    $region17: #{tpu_custom_call.1} parent=1 // pred_fallthru
      _
    // Predicated region
    $region18: #{tpu_custom_call.1} parent=1 // pred_check
      _
    $region19: #{tpu_custom_call.1} parent=1 // pred_check_branch
      %60 = sbr.rel (0) target = $region21
    $region20: #{tpu_custom_call.1} parent=1 // pred_region
      %61 = dma.done [#allocation3], 256
    $region21: #{tpu_custom_call.1} parent=1 // pred_fallthru
      _
    // Predicated region
    $region22: #{tpu_custom_call.1} parent=1 // pred_check
      _
    $region23: #{tpu_custom_call.1} parent=1 // pred_check_branch
      %63 = sbr.rel (0) target = $region25
    $region24: #{tpu_custom_call.1} parent=1 // pred_region
      %64 = dma.done [#allocation6], 49152
    $region25: #{tpu_custom_call.1} parent=1 // pred_fallthru
      _
    // Predicated region
    $region26: #{tpu_custom_call.1} parent=1 // pred_check
      _
    $region27: #{tpu_custom_call.1} parent=1 // pred_check_branch
      %66 = sbr.rel (0) target = $region29
    $region28: #{tpu_custom_call.1} parent=1 // pred_region
      %67 = dma.done [#allocation6], 128
    $region29: #{tpu_custom_call.1} parent=1 // pred_fallthru
      _
    // Predicated region
    $region30: #{tpu_custom_call.1} parent=1 // pred_check
      _
    $region31: #{tpu_custom_call.1} parent=1 // pred_check_branch
      %69 = sbr.rel (0) target = $region33
    $region32: #{tpu_custom_call.1} parent=1 // pred_region
      %70 = dma.done [#allocation9], 256
    $region33: #{tpu_custom_call.1} parent=1 // pred_fallthru
      _
    %v72 = vld [vmem:[#allocation7] sm:$0xff]
    %v73 = vld [vmem:[#allocation8] sm:$0xff]
    %v74 = vld [vmem:[#allocation8 + $0x8] sm:$0xff]
    %v75 = vld [vmem:[#allocation2] sm:$0xff]
    %v76 = vld [vmem:[#allocation2 + $0x8] sm:$0xff]
    %v77 = vlaneseq
    %v78 = vand.u32 %v77, 127
    %79 = vset.pattern.permute.xlu0 16
    %80 = vperm.xlu0 %79, %v75
    %v81 = vpop.permute.xlu0 %80
    %82 = vset.pattern.permute.xlu0 16
    %83 = vperm.xlu0 %82, %v76
    %v84 = vpop.permute.xlu0 %83
    %vm85 = vcmp.eq.s32.totalorder %v78, %v81
    %vm86 = vcmp.eq.s32.totalorder %v78, %v84
    %v87 = vsel %vm85, 1.0, 0.0
    %v88 = vsel %vm86, 1.0, 0.0
    %89 = vset.pattern.permute.xlu0 17
    %90 = vperm.xlu0 %89, %v75
    %v91 = vpop.permute.xlu0 %90
    %92 = vset.pattern.permute.xlu0 17
    %93 = vperm.xlu0 %92, %v76
    %v94 = vpop.permute.xlu0 %93
    %vm95 = vcmp.eq.s32.totalorder %v78, %v91
    %vm96 = vcmp.eq.s32.totalorder %v78, %v94
    %v97 = vsel %vm95, 1.0, 0.0
    %v98 = vsel %vm96, 1.0, 0.0
    %vm99 = vcmask 130048
    %v101 = vsel %vm99, %v97, 0
    %v104 = vsel %vm99, %v98, 0
    %106 = vmatprep.subr.mxu0 0.0
    %107 = vmatpush1.msra.mxu0 0.0
    %108 = vmatprep.subr.mxu0 0.0
    %109 = vmatpush1.msra.mxu0 0.0
    %110 = vmatprep.subr.mxu0 0.0
    %111 = vmatpush1.msra.mxu0 0.0
    %112 = vmatprep.subr.mxu0 0.0
    %113 = vmatpush1.msra.mxu0 0.0
    %114 = vmatprep.subr.mxu0 0.0
    %115 = vmatpush1.msra.mxu0 0.0
    %116 = vmatprep.subr.mxu0 0.0
    %117 = vmatpush1.msra.mxu0 0.0
    %118 = vmatprep.subr.mxu0 0.0
    %119 = vmatpush1.msra.mxu0 0.0
    %120 = vmatprep.subr.mxu0 0.0
    %121 = vmatpush1.msra.mxu0 0.0
    %122 = vmatprep.subr.mxu0 0.0
    %123 = vmatpush1.msra.mxu0 0.0
    %124 = vmatprep.subr.mxu0 0.0
    %125 = vmatpush1.msra.mxu0 0.0
    %126 = vmatprep.subr.mxu0 0.0
    %127 = vmatpush1.msra.mxu0 0.0
    %128 = vmatprep.subr.mxu0 0.0
    %129 = vmatpush1.msra.mxu0 0.0
    %130 = vmatprep.subr.mxu0 0.0
    %131 = vmatpush1.msra.mxu0 0.0
    %132 = vmatprep.subr.mxu0 0.0
    %133 = vmatpush1.msra.mxu0 0.0
    %134 = vmatprep.subr.mxu0 0.0
    %135 = vmatpush1.msra.mxu0 %v74
    %136 = vmatprep.subr.mxu0 0.0
    %137 = vmatpush1.msra.mxu0 %v73
    %138 = vmatprep.subr.mxu0 0.0
    %139 = vmatpush2.msra.mxu0 0.0
    %140 = vmatprep.subr.mxu0 0.0
    %141 = vmatpush2.msra.mxu0 0.0
    %142 = vmatprep.subr.mxu0 0.0
    %143 = vmatpush2.msra.mxu0 0.0
    %144 = vmatprep.subr.mxu0 0.0
    %145 = vmatpush2.msra.mxu0 0.0
    %146 = vmatprep.subr.mxu0 0.0
    %147 = vmatpush2.msra.mxu0 0.0
    %148 = vmatprep.subr.mxu0 0.0
    %149 = vmatpush2.msra.mxu0 0.0
    %150 = vmatprep.subr.mxu0 0.0
    %151 = vmatpush2.msra.mxu0 0.0
    %152 = vmatprep.subr.mxu0 0.0
    %153 = vmatpush2.msra.mxu0 0.0
    %154 = vmatprep.subr.mxu0 0.0
    %155 = vmatpush2.msra.mxu0 0.0
    %156 = vmatprep.subr.mxu0 0.0
    %157 = vmatpush2.msra.mxu0 0.0
    %158 = vmatprep.subr.mxu0 0.0
    %159 = vmatpush2.msra.mxu0 0.0
    %160 = vmatprep.subr.mxu0 0.0
    %161 = vmatpush2.msra.mxu0 0.0
    %162 = vmatprep.subr.mxu0 0.0
    %163 = vmatpush2.msra.mxu0 0.0
    %164 = vmatprep.subr.mxu0 0.0
    %165 = vmatpush2.msra.mxu0 0.0
    %166 = vmatprep.subr.mxu0 0.0
    %167 = vmatpush2.msra.mxu0 0.0
    %168 = vmatprep.subr.mxu0 0.0
    %169 = vmatpush2.msra.mxu0 0.0
    %170 = vmatprep.mubr.f32.mxu0 0.0
    %171 = vmatmul.mubr.f32.gmra.mxu0 %v101
    %v172 = vpop.f32.mrf.mxu0
    %v173 = vadd.f32 0.0, %v172
    %v174 = vpop.f32.mrf.mxu0
    %175 = vmatprep.mubr.f32.mxu0 0.0
    %176 = vmatmul.mubr.f32.gmra.mxu0 %v104
    %v177 = vpop.f32.mrf.mxu0
    %v178 = vadd.f32 0.0, %v177
    %v179 = vpop.f32.mrf.mxu0
    %180 = vdwg.mxu0
    %vm181 = vcmask 64512
    %v183 = vsel %vm181, %v87, 0
    %v186 = vsel %vm181, %v88, 0
    %188 = vmatprep.subr.mxu0 0.0
    %189 = vmatpush1.msra.mxu0 0.0
    %190 = vmatprep.subr.mxu0 0.0
    %191 = vmatpush1.msra.mxu0 0.0
    %192 = vmatprep.subr.mxu0 0.0
    %193 = vmatpush1.msra.mxu0 0.0
    %194 = vmatprep.subr.mxu0 0.0
    %195 = vmatpush1.msra.mxu0 0.0
    %196 = vmatprep.subr.mxu0 0.0
    %197 = vmatpush1.msra.mxu0 0.0
    %198 = vmatprep.subr.mxu0 0.0
    %199 = vmatpush1.msra.mxu0 0.0
    %200 = vmatprep.subr.mxu0 0.0
    %201 = vmatpush1.msra.mxu0 0.0
    %202 = vmatprep.subr.mxu0 0.0
    %203 = vmatpush1.msra.mxu0 0.0
    %204 = vmatprep.subr.mxu0 0.0
    %205 = vmatpush1.msra.mxu0 0.0
    %206 = vmatprep.subr.mxu0 0.0
    %207 = vmatpush1.msra.mxu0 0.0
    %208 = vmatprep.subr.mxu0 0.0
    %209 = vmatpush1.msra.mxu0 0.0
    %210 = vmatprep.subr.mxu0 0.0
    %211 = vmatpush1.msra.mxu0 0.0
    %212 = vmatprep.subr.mxu0 0.0
    %213 = vmatpush1.msra.mxu0 0.0
    %214 = vmatprep.subr.mxu0 0.0
    %215 = vmatpush1.msra.mxu0 0.0
    %216 = vmatprep.subr.mxu0 0.0
    %217 = vmatpush1.msra.mxu0 0.0
    %218 = vmatprep.subr.mxu0 0.0
    %219 = vmatpush1.msra.mxu0 %v72
    %220 = vmatprep.subr.mxu0 0.0
    %221 = vmatpush2.msra.mxu0 0.0
    %222 = vmatprep.subr.mxu0 0.0
    %223 = vmatpush2.msra.mxu0 0.0
    %224 = vmatprep.subr.mxu0 0.0
    %225 = vmatpush2.msra.mxu0 0.0
    %226 = vmatprep.subr.mxu0 0.0
    %227 = vmatpush2.msra.mxu0 0.0
    %228 = vmatprep.subr.mxu0 0.0
    %229 = vmatpush2.msra.mxu0 0.0
    %230 = vmatprep.subr.mxu0 0.0
    %231 = vmatpush2.msra.mxu0 0.0
    %232 = vmatprep.subr.mxu0 0.0
    %233 = vmatpush2.msra.mxu0 0.0
    %234 = vmatprep.subr.mxu0 0.0
    %235 = vmatpush2.msra.mxu0 0.0
    %236 = vmatprep.subr.mxu0 0.0
    %237 = vmatpush2.msra.mxu0 0.0
    %238 = vmatprep.subr.mxu0 0.0
    %239 = vmatpush2.msra.mxu0 0.0
    %240 = vmatprep.subr.mxu0 0.0
    %241 = vmatpush2.msra.mxu0 0.0
    %242 = vmatprep.subr.mxu0 0.0
    %243 = vmatpush2.msra.mxu0 0.0
    %244 = vmatprep.subr.mxu0 0.0
    %245 = vmatpush2.msra.mxu0 0.0
    %246 = vmatprep.subr.mxu0 0.0
    %247 = vmatpush2.msra.mxu0 0.0
    %248 = vmatprep.subr.mxu0 0.0
    %249 = vmatpush2.msra.mxu0 0.0
    %250 = vmatprep.subr.mxu0 0.0
    %251 = vmatpush2.msra.mxu0 0.0
    %252 = vmatprep.mubr.f32.mxu0 0.0
    %253 = vmatmul.mubr.f32.gmra.mxu0 %v183
    %v254 = vpop.f32.mrf.mxu0
    %v255 = vadd.f32 %v173, %v254
    %v256 = vpop.f32.mrf.mxu0
    %257 = vmatprep.mubr.f32.mxu0 0.0
    %258 = vmatmul.mubr.f32.gmra.mxu0 %v186
    %v259 = vpop.f32.mrf.mxu0
    %v260 = vadd.f32 %v178, %v259
    %v261 = vpop.f32.mrf.mxu0
    %262 = vdwg.mxu0
    %v263 = vadd.s32 %v78, 128
    %v264 = vadd.s32 %v78, 256
    %265 = vset.pattern.permute.xlu0 0
    %266 = vperm.xlu0 %265, %v75
    %v267 = vpop.permute.xlu0 %266
    %268 = vset.pattern.permute.xlu0 0
    %269 = vperm.xlu0 %268, %v76
    %v270 = vpop.permute.xlu0 %269
    %vm271 = vcmp.eq.s32.totalorder %v78, %v267
    %vm272 = vcmp.eq.s32.totalorder %v263, %v267
    %vm273 = vcmp.eq.s32.totalorder %v264, %v267
    %vm274 = vcmp.eq.s32.totalorder %v78, %v270
    %vm275 = vcmp.eq.s32.totalorder %v263, %v270
    %vm276 = vcmp.eq.s32.totalorder %v264, %v270
    %v277 = vsel %vm271, 1.0, 0.0
    %v278 = vsel %vm272, 1.0, 0.0
    %v279 = vsel %vm273, 1.0, 0.0
    %v280 = vsel %vm274, 1.0, 0.0
    %v281 = vsel %vm275, 1.0, 0.0
    %v282 = vsel %vm276, 1.0, 0.0
    %v283 = vpack.c.bf16 %v280, %v277
    %v284 = vpack.c.bf16 %v281, %v278
    %v285 = vpack.c.bf16 %v282, %v279
    %v286 = vld [vmem:[#allocation5] sm:$0xf]
    %v287 = vld [vmem:[#allocation5 + $0x4] sm:$0xf]
    %v288 = vld [vmem:[#allocation5 + $0x8] sm:$0xf]
    %v289 = vld [vmem:[#allocation5 + $0xc] sm:$0xf]
    %v290 = vld [vmem:[#allocation5 + $0x10] sm:$0xf]
    %v291 = vld [vmem:[#allocation5 + $0x14] sm:$0xf]
    %v292 = vld [vmem:[#allocation5 + $0x18] sm:$0xf]
    %v293 = vld [vmem:[#allocation5 + $0x1c] sm:$0xf]
    %v294 = vld [vmem:[#allocation5 + $0x20] sm:$0xf]
    %v295 = vld [vmem:[#allocation5 + $0x24] sm:$0xf]
    %v296 = vld [vmem:[#allocation5 + $0x28] sm:$0xf]
    %v297 = vld [vmem:[#allocation5 + $0x2c] sm:$0xf]
    %v298 = vld [vmem:[#allocation5 + $0x30] sm:$0xf]
    %v299 = vld [vmem:[#allocation5 + $0x34] sm:$0xf]
    %v300 = vld [vmem:[#allocation5 + $0x38] sm:$0xf]
    %v301 = vld [vmem:[#allocation5 + $0x3c] sm:$0xf]
    %v302 = vld [vmem:[#allocation5 + $0x40] sm:$0xf]
    %v303 = vld [vmem:[#allocation5 + $0x44] sm:$0xf]
    %v304 = vld [vmem:[#allocation5 + $0x48] sm:$0xf]
    %v305 = vld [vmem:[#allocation5 + $0x4c] sm:$0xf]
    %v306 = vld [vmem:[#allocation5 + $0x50] sm:$0xf]
    %v307 = vld [vmem:[#allocation5 + $0x54] sm:$0xf]
    %v308 = vld [vmem:[#allocation5 + $0x58] sm:$0xf]
    %v309 = vld [vmem:[#allocation5 + $0x5c] sm:$0xf]
    %v310 = vld [vmem:[#allocation5 + $0x60] sm:$0xf]
    %v311 = vld [vmem:[#allocation5 + $0x64] sm:$0xf]
    %v312 = vld [vmem:[#allocation5 + $0x68] sm:$0xf]
    %v313 = vld [vmem:[#allocation5 + $0x6c] sm:$0xf]
    %v314 = vld [vmem:[#allocation5 + $0x70] sm:$0xf]
    %v315 = vld [vmem:[#allocation5 + $0x74] sm:$0xf]
    %v316 = vld [vmem:[#allocation5 + $0x78] sm:$0xf]
    %v317 = vld [vmem:[#allocation5 + $0x7c] sm:$0xf]
    %v318 = vld [vmem:[#allocation5 + $0x80] sm:$0xf]
    %v319 = vld [vmem:[#allocation5 + $0x84] sm:$0xf]
    %v320 = vld [vmem:[#allocation5 + $0x88] sm:$0xf]
    %v321 = vld [vmem:[#allocation5 + $0x8c] sm:$0xf]
    %v322 = vld [vmem:[#allocation5 + $0x90] sm:$0xf]
    %v323 = vld [vmem:[#allocation5 + $0x94] sm:$0xf]
    %v324 = vld [vmem:[#allocation5 + $0x98] sm:$0xf]
    %v325 = vld [vmem:[#allocation5 + $0x9c] sm:$0xf]
    %v326 = vld [vmem:[#allocation5 + $0xa0] sm:$0xf]
    %v327 = vld [vmem:[#allocation5 + $0xa4] sm:$0xf]
    %v328 = vld [vmem:[#allocation5 + $0xa8] sm:$0xf]
    %v329 = vld [vmem:[#allocation5 + $0xac] sm:$0xf]
    %v330 = vld [vmem:[#allocation5 + $0xb0] sm:$0xf]
    %v331 = vld [vmem:[#allocation5 + $0xb4] sm:$0xf]
    %v332 = vld [vmem:[#allocation5 + $0xb8] sm:$0xf]
    %v333 = vld [vmem:[#allocation5 + $0xbc] sm:$0xf]
    %v382 = vunpack.c.l.b16 %v286
    %v383 = vunpack.c.l.b16 %v287
    %v384 = vunpack.c.l.b16 %v288
    %v385 = vunpack.c.l.b16 %v289
    %v386 = vunpack.c.l.b16 %v290
    %v387 = vunpack.c.l.b16 %v291
    %v388 = vunpack.c.l.b16 %v292
    %v389 = vunpack.c.l.b16 %v293
    %v390 = vunpack.c.l.b16 %v294
    %v391 = vunpack.c.l.b16 %v295
    %v392 = vunpack.c.l.b16 %v296
    %v393 = vunpack.c.l.b16 %v297
    %v394 = vunpack.c.l.b16 %v298
    %v395 = vunpack.c.l.b16 %v299
    %v396 = vunpack.c.l.b16 %v300
    %v397 = vunpack.c.l.b16 %v301
    %v398 = vunpack.c.l.b16 %v302
    %v399 = vunpack.c.l.b16 %v303
    %v400 = vunpack.c.l.b16 %v304
    %v401 = vunpack.c.l.b16 %v305
    %v402 = vunpack.c.l.b16 %v306
    %v403 = vunpack.c.l.b16 %v307
    %v404 = vunpack.c.l.b16 %v308
    %v405 = vunpack.c.l.b16 %v309
    %v406 = vunpack.c.l.b16 %v310
    %v407 = vunpack.c.l.b16 %v311
    %v408 = vunpack.c.l.b16 %v312
    %v409 = vunpack.c.l.b16 %v313
    %v410 = vunpack.c.l.b16 %v314
    %v411 = vunpack.c.l.b16 %v315
    %v412 = vunpack.c.l.b16 %v316
    %v413 = vunpack.c.l.b16 %v317
    %v414 = vunpack.c.l.b16 %v318
    %v415 = vunpack.c.l.b16 %v319
    %v416 = vunpack.c.l.b16 %v320
    %v417 = vunpack.c.l.b16 %v321
    %v418 = vunpack.c.l.b16 %v322
    %v419 = vunpack.c.l.b16 %v323
    %v420 = vunpack.c.l.b16 %v324
    %v421 = vunpack.c.l.b16 %v325
    %v422 = vunpack.c.l.b16 %v326
    %v423 = vunpack.c.l.b16 %v327
    %v424 = vunpack.c.l.b16 %v328
    %v425 = vunpack.c.l.b16 %v329
    %v426 = vunpack.c.l.b16 %v330
    %v427 = vunpack.c.l.b16 %v331
    %v428 = vunpack.c.l.b16 %v332
    %v429 = vunpack.c.l.b16 %v333
    %v430 = vpack.c.b16 %v383, %v382
    %v431 = vpack.c.b16 %v385, %v384
    %v432 = vpack.c.b16 %v387, %v386
    %v433 = vpack.c.b16 %v389, %v388
    %v434 = vpack.c.b16 %v391, %v390
    %v435 = vpack.c.b16 %v393, %v392
    %v436 = vpack.c.b16 %v395, %v394
    %v437 = vpack.c.b16 %v397, %v396
    %v438 = vpack.c.b16 %v399, %v398
    %v439 = vpack.c.b16 %v401, %v400
    %v440 = vpack.c.b16 %v403, %v402
    %v441 = vpack.c.b16 %v405, %v404
    %v442 = vpack.c.b16 %v407, %v406
    %v443 = vpack.c.b16 %v409, %v408
    %v444 = vpack.c.b16 %v411, %v410
    %v445 = vpack.c.b16 %v413, %v412
    %v446 = vpack.c.b16 %v415, %v414
    %v447 = vpack.c.b16 %v417, %v416
    %v448 = vpack.c.b16 %v419, %v418
    %v449 = vpack.c.b16 %v421, %v420
    %v450 = vpack.c.b16 %v423, %v422
    %v451 = vpack.c.b16 %v425, %v424
    %v452 = vpack.c.b16 %v427, %v426
    %v453 = vpack.c.b16 %v429, %v428
    %478 = vmatprep.subr.bf16.mxu0 0
    %479 = vmatpush1.bf16.msra.mxu0 %v437
    %480 = vmatprep.subr.bf16.mxu0 0
    %481 = vmatpush1.bf16.msra.mxu0 %v436
    %482 = vmatprep.subr.bf16.mxu0 0
    %483 = vmatpush1.bf16.msra.mxu0 %v435
    %484 = vmatprep.subr.bf16.mxu0 0
    %485 = vmatpush1.bf16.msra.mxu0 %v434
    %486 = vmatprep.subr.bf16.mxu0 0
    %487 = vmatpush1.bf16.msra.mxu0 %v433
    %488 = vmatprep.subr.bf16.mxu0 0
    %489 = vmatpush1.bf16.msra.mxu0 %v432
    %490 = vmatprep.subr.bf16.mxu0 0
    %491 = vmatpush1.bf16.msra.mxu0 %v431
    %492 = vmatprep.subr.bf16.mxu0 0
    %493 = vmatpush1.bf16.msra.mxu0 %v430
    %494 = vmatprep.subr.bf16.mxu0 0
    %495 = vmatpush2.bf16.msra.mxu0 %v445
    %496 = vmatprep.subr.bf16.mxu0 0
    %497 = vmatpush2.bf16.msra.mxu0 %v444
    %498 = vmatprep.subr.bf16.mxu0 0
    %499 = vmatpush2.bf16.msra.mxu0 %v443
    %500 = vmatprep.subr.bf16.mxu0 0
    %501 = vmatpush2.bf16.msra.mxu0 %v442
    %502 = vmatprep.subr.bf16.mxu0 0
    %503 = vmatpush2.bf16.msra.mxu0 %v441
    %504 = vmatprep.subr.bf16.mxu0 0
    %505 = vmatpush2.bf16.msra.mxu0 %v440
    %506 = vmatprep.subr.bf16.mxu0 0
    %507 = vmatpush2.bf16.msra.mxu0 %v439
    %508 = vmatprep.subr.bf16.mxu0 0
    %509 = vmatpush2.bf16.msra.mxu0 %v438
    %510 = vmatprep.mubr.bf16.mxu0 %v284
    %511 = vmatmul.mubr.bf16.gmra.mxu0 %v283
    %v512 = vpop.f32.mrf.mxu0
    %v513 = vadd.f32 0.0, %v512
    %v514 = vpop.f32.mrf.mxu0
    %v515 = vpop.f32.mrf.mxu0
    %v516 = vadd.f32 0.0, %v515
    %v517 = vpop.f32.mrf.mxu0
    %518 = vdwg.mxu0
    %519 = vmatprep.subr.bf16.mxu0 0
    %520 = vmatpush1.bf16.msra.mxu0 %v453
    %521 = vmatprep.subr.bf16.mxu0 0
    %522 = vmatpush1.bf16.msra.mxu0 %v452
    %523 = vmatprep.subr.bf16.mxu0 0
    %524 = vmatpush1.bf16.msra.mxu0 %v451
    %525 = vmatprep.subr.bf16.mxu0 0
    %526 = vmatpush1.bf16.msra.mxu0 %v450
    %527 = vmatprep.subr.bf16.mxu0 0
    %528 = vmatpush1.bf16.msra.mxu0 %v449
    %529 = vmatprep.subr.bf16.mxu0 0
    %530 = vmatpush1.bf16.msra.mxu0 %v448
    %531 = vmatprep.subr.bf16.mxu0 0
    %532 = vmatpush1.bf16.msra.mxu0 %v447
    %533 = vmatprep.subr.bf16.mxu0 0
    %534 = vmatpush1.bf16.msra.mxu0 %v446
    %535 = vmatprep.subr.bf16.mxu0 0
    %536 = vmatpush2.bf16.msra.mxu0 0
    %537 = vmatprep.subr.bf16.mxu0 0
    %538 = vmatpush2.bf16.msra.mxu0 0
    %539 = vmatprep.subr.bf16.mxu0 0
    %540 = vmatpush2.bf16.msra.mxu0 0
    %541 = vmatprep.subr.bf16.mxu0 0
    %542 = vmatpush2.bf16.msra.mxu0 0
    %543 = vmatprep.subr.bf16.mxu0 0
    %544 = vmatpush2.bf16.msra.mxu0 0
    %545 = vmatprep.subr.bf16.mxu0 0
    %546 = vmatpush2.bf16.msra.mxu0 0
    %547 = vmatprep.subr.bf16.mxu0 0
    %548 = vmatpush2.bf16.msra.mxu0 0
    %549 = vmatprep.subr.bf16.mxu0 0
    %550 = vmatpush2.bf16.msra.mxu0 0
    %551 = vmatprep.mubr.bf16.mxu0 0
    %552 = vmatmul.mubr.bf16.gmra.mxu0 %v285
    %v553 = vpop.f32.mrf.mxu0
    %v554 = vadd.f32 %v513, %v553
    %v555 = vpop.f32.mrf.mxu0
    %v556 = vpop.f32.mrf.mxu0
    %v557 = vadd.f32 %v516, %v556
    %v558 = vpop.f32.mrf.mxu0
    %559 = vdwg.mxu0
    %v560 = vadd.f32 %v255, %v554
    %v561 = vadd.f32 %v260, %v557
    %562 = vset.pattern.permute.xlu0 1
    %563 = vperm.xlu0 %562, %v75
    %v564 = vpop.permute.xlu0 %563
    %565 = vset.pattern.permute.xlu0 1
    %566 = vperm.xlu0 %565, %v76
    %v567 = vpop.permute.xlu0 %566
    %vm568 = vcmp.eq.s32.totalorder %v78, %v564
    %vm569 = vcmp.eq.s32.totalorder %v263, %v564
    %vm570 = vcmp.eq.s32.totalorder %v264, %v564
    %vm571 = vcmp.eq.s32.totalorder %v78, %v567
    %vm572 = vcmp.eq.s32.totalorder %v263, %v567
    %vm573 = vcmp.eq.s32.totalorder %v264, %v567
    %v574 = vsel %vm568, 1.0, 0.0
    %v575 = vsel %vm569, 1.0, 0.0
    %v576 = vsel %vm570, 1.0, 0.0
    %v577 = vsel %vm571, 1.0, 0.0
    %v578 = vsel %vm572, 1.0, 0.0
    %v579 = vsel %vm573, 1.0, 0.0
    %v580 = vpack.c.bf16 %v577, %v574
    %v581 = vpack.c.bf16 %v578, %v575
    %v582 = vpack.c.bf16 %v579, %v576
    %s583 = scalar_lea.vmem [#allocation5], 192
    %v584 = vld [vmem:[%s583] sm:$0xf]
    %v585 = vld [vmem:[%s583 + $0x4] sm:$0xf]
    %v586 = vld [vmem:[%s583 + $0x8] sm:$0xf]
    %v587 = vld [vmem:[%s583 + $0xc] sm:$0xf]
    %v588 = vld [vmem:[%s583 + $0x10] sm:$0xf]
    %v589 = vld [vmem:[%s583 + $0x14] sm:$0xf]
    %v590 = vld [vmem:[%s583 + $0x18] sm:$0xf]
    %v591 = vld [vmem:[%s583 + $0x1c] sm:$0xf]
    %v592 = vld [vmem:[%s583 + $0x20] sm:$0xf]
    %v593 = vld [vmem:[%s583 + $0x24] sm:$0xf]
    %v594 = vld [vmem:[%s583 + $0x28] sm:$0xf]
    %v595 = vld [vmem:[%s583 + $0x2c] sm:$0xf]
    %v596 = vld [vmem:[%s583 + $0x30] sm:$0xf]
    %v597 = vld [vmem:[%s583 + $0x34] sm:$0xf]
    %v598 = vld [vmem:[%s583 + $0x38] sm:$0xf]
    %v599 = vld [vmem:[%s583 + $0x3c] sm:$0xf]
    %v600 = vld [vmem:[%s583 + $0x40] sm:$0xf]
    %v601 = vld [vmem:[%s583 + $0x44] sm:$0xf]
    %v602 = vld [vmem:[%s583 + $0x48] sm:$0xf]
    %v603 = vld [vmem:[%s583 + $0x4c] sm:$0xf]
    %v604 = vld [vmem:[%s583 + $0x50] sm:$0xf]
    %v605 = vld [vmem:[%s583 + $0x54] sm:$0xf]
    %v606 = vld [vmem:[%s583 + $0x58] sm:$0xf]
    %v607 = vld [vmem:[%s583 + $0x5c] sm:$0xf]
    %v608 = vld [vmem:[%s583 + $0x60] sm:$0xf]
    %v609 = vld [vmem:[%s583 + $0x64] sm:$0xf]
    %v610 = vld [vmem:[%s583 + $0x68] sm:$0xf]
    %v611 = vld [vmem:[%s583 + $0x6c] sm:$0xf]
    %v612 = vld [vmem:[%s583 + $0x70] sm:$0xf]
    %v613 = vld [vmem:[%s583 + $0x74] sm:$0xf]
    %v614 = vld [vmem:[%s583 + $0x78] sm:$0xf]
    %v615 = vld [vmem:[%s583 + $0x7c] sm:$0xf]
    %v616 = vld [vmem:[%s583 + $0x80] sm:$0xf]
    %v617 = vld [vmem:[%s583 + $0x84] sm:$0xf]
    %v618 = vld [vmem:[%s583 + $0x88] sm:$0xf]
    %v619 = vld [vmem:[%s583 + $0x8c] sm:$0xf]
    %v620 = vld [vmem:[%s583 + $0x90] sm:$0xf]
    %v621 = vld [vmem:[%s583 + $0x94] sm:$0xf]
    %v622 = vld [vmem:[%s583 + $0x98] sm:$0xf]
    %v623 = vld [vmem:[%s583 + $0x9c] sm:$0xf]
    %v624 = vld [vmem:[%s583 + $0xa0] sm:$0xf]
    %v625 = vld [vmem:[%s583 + $0xa4] sm:$0xf]
    %v626 = vld [vmem:[%s583 + $0xa8] sm:$0xf]
    %v627 = vld [vmem:[%s583 + $0xac] sm:$0xf]
    %v628 = vld [vmem:[%s583 + $0xb0] sm:$0xf]
    %v629 = vld [vmem:[%s583 + $0xb4] sm:$0xf]
    %v630 = vld [vmem:[%s583 + $0xb8] sm:$0xf]
    %v631 = vld [vmem:[%s583 + $0xbc] sm:$0xf]
    %v680 = vunpack.c.l.b16 %v584
    %v681 = vunpack.c.l.b16 %v585
    %v682 = vunpack.c.l.b16 %v586
    %v683 = vunpack.c.l.b16 %v587
    %v684 = vunpack.c.l.b16 %v588
    %v685 = vunpack.c.l.b16 %v589
    %v686 = vunpack.c.l.b16 %v590
    %v687 = vunpack.c.l.b16 %v591
    %v688 = vunpack.c.l.b16 %v592
    %v689 = vunpack.c.l.b16 %v593
    %v690 = vunpack.c.l.b16 %v594
    %v691 = vunpack.c.l.b16 %v595
    %v692 = vunpack.c.l.b16 %v596
    %v693 = vunpack.c.l.b16 %v597
    %v694 = vunpack.c.l.b16 %v598
    %v695 = vunpack.c.l.b16 %v599
    %v696 = vunpack.c.l.b16 %v600
    %v697 = vunpack.c.l.b16 %v601
    %v698 = vunpack.c.l.b16 %v602
    %v699 = vunpack.c.l.b16 %v603
    %v700 = vunpack.c.l.b16 %v604
    %v701 = vunpack.c.l.b16 %v605
    %v702 = vunpack.c.l.b16 %v606
    %v703 = vunpack.c.l.b16 %v607
    %v704 = vunpack.c.l.b16 %v608
    %v705 = vunpack.c.l.b16 %v609
    %v706 = vunpack.c.l.b16 %v610
    %v707 = vunpack.c.l.b16 %v611
    %v708 = vunpack.c.l.b16 %v612
    %v709 = vunpack.c.l.b16 %v613
    %v710 = vunpack.c.l.b16 %v614
    %v711 = vunpack.c.l.b16 %v615
    %v712 = vunpack.c.l.b16 %v616
    %v713 = vunpack.c.l.b16 %v617
    %v714 = vunpack.c.l.b16 %v618
    %v715 = vunpack.c.l.b16 %v619
    %v716 = vunpack.c.l.b16 %v620
    %v717 = vunpack.c.l.b16 %v621
    %v718 = vunpack.c.l.b16 %v622
    %v719 = vunpack.c.l.b16 %v623
    %v720 = vunpack.c.l.b16 %v624
    %v721 = vunpack.c.l.b16 %v625
    %v722 = vunpack.c.l.b16 %v626
    %v723 = vunpack.c.l.b16 %v627
    %v724 = vunpack.c.l.b16 %v628
    %v725 = vunpack.c.l.b16 %v629
    %v726 = vunpack.c.l.b16 %v630
    %v727 = vunpack.c.l.b16 %v631
    %v728 = vpack.c.b16 %v681, %v680
    %v729 = vpack.c.b16 %v683, %v682
    %v730 = vpack.c.b16 %v685, %v684
    %v731 = vpack.c.b16 %v687, %v686
    %v732 = vpack.c.b16 %v689, %v688
    %v733 = vpack.c.b16 %v691, %v690
    %v734 = vpack.c.b16 %v693, %v692
    %v735 = vpack.c.b16 %v695, %v694
    %v736 = vpack.c.b16 %v697, %v696
    %v737 = vpack.c.b16 %v699, %v698
    %v738 = vpack.c.b16 %v701, %v700
    %v739 = vpack.c.b16 %v703, %v702
    %v740 = vpack.c.b16 %v705, %v704
    %v741 = vpack.c.b16 %v707, %v706
    %v742 = vpack.c.b16 %v709, %v708
    %v743 = vpack.c.b16 %v711, %v710
    %v744 = vpack.c.b16 %v713, %v712
    %v745 = vpack.c.b16 %v715, %v714
    %v746 = vpack.c.b16 %v717, %v716
    %v747 = vpack.c.b16 %v719, %v718
    %v748 = vpack.c.b16 %v721, %v720
    %v749 = vpack.c.b16 %v723, %v722
    %v750 = vpack.c.b16 %v725, %v724
    %v751 = vpack.c.b16 %v727, %v726
    %776 = vmatprep.subr.bf16.mxu0 0
    %777 = vmatpush1.bf16.msra.mxu0 %v735
    %778 = vmatprep.subr.bf16.mxu0 0
    %779 = vmatpush1.bf16.msra.mxu0 %v734
    %780 = vmatprep.subr.bf16.mxu0 0
    %781 = vmatpush1.bf16.msra.mxu0 %v733
    %782 = vmatprep.subr.bf16.mxu0 0
    %783 = vmatpush1.bf16.msra.mxu0 %v732
    %784 = vmatprep.subr.bf16.mxu0 0
    %785 = vmatpush1.bf16.msra.mxu0 %v731
    %786 = vmatprep.subr.bf16.mxu0 0
    %787 = vmatpush1.bf16.msra.mxu0 %v730
    %788 = vmatprep.subr.bf16.mxu0 0
    %789 = vmatpush1.bf16.msra.mxu0 %v729
    %790 = vmatprep.subr.bf16.mxu0 0
    %791 = vmatpush1.bf16.msra.mxu0 %v728
    %792 = vmatprep.subr.bf16.mxu0 0
    %793 = vmatpush2.bf16.msra.mxu0 %v743
    %794 = vmatprep.subr.bf16.mxu0 0
    %795 = vmatpush2.bf16.msra.mxu0 %v742
    %796 = vmatprep.subr.bf16.mxu0 0
    %797 = vmatpush2.bf16.msra.mxu0 %v741
    %798 = vmatprep.subr.bf16.mxu0 0
    %799 = vmatpush2.bf16.msra.mxu0 %v740
    %800 = vmatprep.subr.bf16.mxu0 0
    %801 = vmatpush2.bf16.msra.mxu0 %v739
    %802 = vmatprep.subr.bf16.mxu0 0
    %803 = vmatpush2.bf16.msra.mxu0 %v738
    %804 = vmatprep.subr.bf16.mxu0 0
    %805 = vmatpush2.bf16.msra.mxu0 %v737
    %806 = vmatprep.subr.bf16.mxu0 0
    %807 = vmatpush2.bf16.msra.mxu0 %v736
    %808 = vmatprep.mubr.bf16.mxu0 %v581
    %809 = vmatmul.mubr.bf16.gmra.mxu0 %v580
    %v810 = vpop.f32.mrf.mxu0
    %v811 = vadd.f32 0.0, %v810
    %v812 = vpop.f32.mrf.mxu0
    %v813 = vpop.f32.mrf.mxu0
    %v814 = vadd.f32 0.0, %v813
    %v815 = vpop.f32.mrf.mxu0
    %816 = vdwg.mxu0
    %817 = vmatprep.subr.bf16.mxu0 0
    %818 = vmatpush1.bf16.msra.mxu0 %v751
    %819 = vmatprep.subr.bf16.mxu0 0
    %820 = vmatpush1.bf16.msra.mxu0 %v750
    %821 = vmatprep.subr.bf16.mxu0 0
    %822 = vmatpush1.bf16.msra.mxu0 %v749
    %823 = vmatprep.subr.bf16.mxu0 0
    %824 = vmatpush1.bf16.msra.mxu0 %v748
    %825 = vmatprep.subr.bf16.mxu0 0
    %826 = vmatpush1.bf16.msra.mxu0 %v747
    %827 = vmatprep.subr.bf16.mxu0 0
    %828 = vmatpush1.bf16.msra.mxu0 %v746
    %829 = vmatprep.subr.bf16.mxu0 0
    %830 = vmatpush1.bf16.msra.mxu0 %v745
    %831 = vmatprep.subr.bf16.mxu0 0
    %832 = vmatpush1.bf16.msra.mxu0 %v744
    %833 = vmatprep.subr.bf16.mxu0 0
    %834 = vmatpush2.bf16.msra.mxu0 0
    %835 = vmatprep.subr.bf16.mxu0 0
    %836 = vmatpush2.bf16.msra.mxu0 0
    %837 = vmatprep.subr.bf16.mxu0 0
    %838 = vmatpush2.bf16.msra.mxu0 0
    %839 = vmatprep.subr.bf16.mxu0 0
    %840 = vmatpush2.bf16.msra.mxu0 0
    %841 = vmatprep.subr.bf16.mxu0 0
    %842 = vmatpush2.bf16.msra.mxu0 0
    %843 = vmatprep.subr.bf16.mxu0 0
    %844 = vmatpush2.bf16.msra.mxu0 0
    %845 = vmatprep.subr.bf16.mxu0 0
    %846 = vmatpush2.bf16.msra.mxu0 0
    %847 = vmatprep.subr.bf16.mxu0 0
    %848 = vmatpush2.bf16.msra.mxu0 0
    %849 = vmatprep.mubr.bf16.mxu0 0
    %850 = vmatmul.mubr.bf16.gmra.mxu0 %v582
    %v851 = vpop.f32.mrf.mxu0
    %v852 = vadd.f32 %v811, %v851
    %v853 = vpop.f32.mrf.mxu0
    %v854 = vpop.f32.mrf.mxu0
    %v855 = vadd.f32 %v814, %v854
    %v856 = vpop.f32.mrf.mxu0
    %857 = vdwg.mxu0
    %v858 = vadd.f32 %v560, %v852
    %v859 = vadd.f32 %v561, %v855
    %860 = vset.pattern.permute.xlu0 2
    %861 = vperm.xlu0 %860, %v75
    %v862 = vpop.permute.xlu0 %861
    %863 = vset.pattern.permute.xlu0 2
    %864 = vperm.xlu0 %863, %v76
    %v865 = vpop.permute.xlu0 %864
    %vm866 = vcmp.eq.s32.totalorder %v78, %v862
    %vm867 = vcmp.eq.s32.totalorder %v263, %v862
    %vm868 = vcmp.eq.s32.totalorder %v264, %v862
    %vm869 = vcmp.eq.s32.totalorder %v78, %v865
    %vm870 = vcmp.eq.s32.totalorder %v263, %v865
    %vm871 = vcmp.eq.s32.totalorder %v264, %v865
    %v872 = vsel %vm866, 1.0, 0.0
    %v873 = vsel %vm867, 1.0, 0.0
    %v874 = vsel %vm868, 1.0, 0.0
    %v875 = vsel %vm869, 1.0, 0.0
    %v876 = vsel %vm870, 1.0, 0.0
    %v877 = vsel %vm871, 1.0, 0.0
    %v878 = vpack.c.bf16 %v875, %v872
    %v879 = vpack.c.bf16 %v876, %v873
    %v880 = vpack.c.bf16 %v877, %v874
    %s881 = scalar_lea.vmem [#allocation5], 384
    %v882 = vld [vmem:[%s881] sm:$0xf]
    %v883 = vld [vmem:[%s881 + $0x4] sm:$0xf]
    %v884 = vld [vmem:[%s881 + $0x8] sm:$0xf]
    %v885 = vld [vmem:[%s881 + $0xc] sm:$0xf]
    %v886 = vld [vmem:[%s881 + $0x10] sm:$0xf]
    %v887 = vld [vmem:[%s881 + $0x14] sm:$0xf]
    %v888 = vld [vmem:[%s881 + $0x18] sm:$0xf]
    %v889 = vld [vmem:[%s881 + $0x1c] sm:$0xf]
    %v890 = vld [vmem:[%s881 + $0x20] sm:$0xf]
    %v891 = vld [vmem:[%s881 + $0x24] sm:$0xf]
    %v892 = vld [vmem:[%s881 + $0x28] sm:$0xf]
    %v893 = vld [vmem:[%s881 + $0x2c] sm:$0xf]
    %v894 = vld [vmem:[%s881 + $0x30] sm:$0xf]
    %v895 = vld [vmem:[%s881 + $0x34] sm:$0xf]
    %v896 = vld [vmem:[%s881 + $0x38] sm:$0xf]
    %v897 = vld [vmem:[%s881 + $0x3c] sm:$0xf]
    %v898 = vld [vmem:[%s881 + $0x40] sm:$0xf]
    %v899 = vld [vmem:[%s881 + $0x44] sm:$0xf]
    %v900 = vld [vmem:[%s881 + $0x48] sm:$0xf]
    %v901 = vld [vmem:[%s881 + $0x4c] sm:$0xf]
    %v902 = vld [vmem:[%s881 + $0x50] sm:$0xf]
    %v903 = vld [vmem:[%s881 + $0x54] sm:$0xf]
    %v904 = vld [vmem:[%s881 + $0x58] sm:$0xf]
    %v905 = vld [vmem:[%s881 + $0x5c] sm:$0xf]
    %v906 = vld [vmem:[%s881 + $0x60] sm:$0xf]
    %v907 = vld [vmem:[%s881 + $0x64] sm:$0xf]
    %v908 = vld [vmem:[%s881 + $0x68] sm:$0xf]
    %v909 = vld [vmem:[%s881 + $0x6c] sm:$0xf]
    %v910 = vld [vmem:[%s881 + $0x70] sm:$0xf]
    %v911 = vld [vmem:[%s881 + $0x74] sm:$0xf]
    %v912 = vld [vmem:[%s881 + $0x78] sm:$0xf]
    %v913 = vld [vmem:[%s881 + $0x7c] sm:$0xf]
    %v914 = vld [vmem:[%s881 + $0x80] sm:$0xf]
    %v915 = vld [vmem:[%s881 + $0x84] sm:$0xf]
    %v916 = vld [vmem:[%s881 + $0x88] sm:$0xf]
    %v917 = vld [vmem:[%s881 + $0x8c] sm:$0xf]
    %v918 = vld [vmem:[%s881 + $0x90] sm:$0xf]
    %v919 = vld [vmem:[%s881 + $0x94] sm:$0xf]
    %v920 = vld [vmem:[%s881 + $0x98] sm:$0xf]
    %v921 = vld [vmem:[%s881 + $0x9c] sm:$0xf]
    %v922 = vld [vmem:[%s881 + $0xa0] sm:$0xf]
    %v923 = vld [vmem:[%s881 + $0xa4] sm:$0xf]
    %v924 = vld [vmem:[%s881 + $0xa8] sm:$0xf]
    %v925 = vld [vmem:[%s881 + $0xac] sm:$0xf]
    %v926 = vld [vmem:[%s881 + $0xb0] sm:$0xf]
    %v927 = vld [vmem:[%s881 + $0xb4] sm:$0xf]
    %v928 = vld [vmem:[%s881 + $0xb8] sm:$0xf]
    %v929 = vld [vmem:[%s881 + $0xbc] sm:$0xf]
    %v978 = vunpack.c.l.b16 %v882
    %v979 = vunpack.c.l.b16 %v883
    %v980 = vunpack.c.l.b16 %v884
    %v981 = vunpack.c.l.b16 %v885
    %v982 = vunpack.c.l.b16 %v886
    %v983 = vunpack.c.l.b16 %v887
    %v984 = vunpack.c.l.b16 %v888
    %v985 = vunpack.c.l.b16 %v889
    %v986 = vunpack.c.l.b16 %v890
    %v987 = vunpack.c.l.b16 %v891
    %v988 = vunpack.c.l.b16 %v892
    %v989 = vunpack.c.l.b16 %v893
    %v990 = vunpack.c.l.b16 %v894
    %v991 = vunpack.c.l.b16 %v895
    %v992 = vunpack.c.l.b16 %v896
    %v993 = vunpack.c.l.b16 %v897
    %v994 = vunpack.c.l.b16 %v898
    %v995 = vunpack.c.l.b16 %v899
    %v996 = vunpack.c.l.b16 %v900
    %v997 = vunpack.c.l.b16 %v901
    %v998 = vunpack.c.l.b16 %v902
    %v999 = vunpack.c.l.b16 %v903
    %v1000 = vunpack.c.l.b16 %v904
    %v1001 = vunpack.c.l.b16 %v905
    %v1002 = vunpack.c.l.b16 %v906
    %v1003 = vunpack.c.l.b16 %v907
    %v1004 = vunpack.c.l.b16 %v908
    %v1005 = vunpack.c.l.b16 %v909
    %v1006 = vunpack.c.l.b16 %v910
    %v1007 = vunpack.c.l.b16 %v911
    %v1008 = vunpack.c.l.b16 %v912
    %v1009 = vunpack.c.l.b16 %v913
    %v1010 = vunpack.c.l.b16 %v914
    %v1011 = vunpack.c.l.b16 %v915
    %v1012 = vunpack.c.l.b16 %v916
    %v1013 = vunpack.c.l.b16 %v917
    %v1014 = vunpack.c.l.b16 %v918
    %v1015 = vunpack.c.l.b16 %v919
    %v1016 = vunpack.c.l.b16 %v920
    %v1017 = vunpack.c.l.b16 %v921
    %v1018 = vunpack.c.l.b16 %v922
    %v1019 = vunpack.c.l.b16 %v923
    %v1020 = vunpack.c.l.b16 %v924
    %v1021 = vunpack.c.l.b16 %v925
    %v1022 = vunpack.c.l.b16 %v926
    %v1023 = vunpack.c.l.b16 %v927
    %v1024 = vunpack.c.l.b16 %v928
    %v1025 = vunpack.c.l.b16 %v929
    %v1026 = vpack.c.b16 %v979, %v978
    %v1027 = vpack.c.b16 %v981, %v980
    %v1028 = vpack.c.b16 %v983, %v982
    %v1029 = vpack.c.b16 %v985, %v984
    %v1030 = vpack.c.b16 %v987, %v986
    %v1031 = vpack.c.b16 %v989, %v988
    %v1032 = vpack.c.b16 %v991, %v990
    %v1033 = vpack.c.b16 %v993, %v992
    %v1034 = vpack.c.b16 %v995, %v994
    %v1035 = vpack.c.b16 %v997, %v996
    %v1036 = vpack.c.b16 %v999, %v998
    %v1037 = vpack.c.b16 %v1001, %v1000
    %v1038 = vpack.c.b16 %v1003, %v1002
    %v1039 = vpack.c.b16 %v1005, %v1004
    %v1040 = vpack.c.b16 %v1007, %v1006
    %v1041 = vpack.c.b16 %v1009, %v1008
    %v1042 = vpack.c.b16 %v1011, %v1010
    %v1043 = vpack.c.b16 %v1013, %v1012
    %v1044 = vpack.c.b16 %v1015, %v1014
    %v1045 = vpack.c.b16 %v1017, %v1016
    %v1046 = vpack.c.b16 %v1019, %v1018
    %v1047 = vpack.c.b16 %v1021, %v1020
    %v1048 = vpack.c.b16 %v1023, %v1022
    %v1049 = vpack.c.b16 %v1025, %v1024
    %1074 = vmatprep.subr.bf16.mxu0 0
    %1075 = vmatpush1.bf16.msra.mxu0 %v1033
    %1076 = vmatprep.subr.bf16.mxu0 0
    %1077 = vmatpush1.bf16.msra.mxu0 %v1032
    %1078 = vmatprep.subr.bf16.mxu0 0
    %1079 = vmatpush1.bf16.msra.mxu0 %v1031
    %1080 = vmatprep.subr.bf16.mxu0 0
    %1081 = vmatpush1.bf16.msra.mxu0 %v1030
    %1082 = vmatprep.subr.bf16.mxu0 0
    %1083 = vmatpush1.bf16.msra.mxu0 %v1029
    %1084 = vmatprep.subr.bf16.mxu0 0
    %1085 = vmatpush1.bf16.msra.mxu0 %v1028
    %1086 = vmatprep.subr.bf16.mxu0 0
    %1087 = vmatpush1.bf16.msra.mxu0 %v1027
    %1088 = vmatprep.subr.bf16.mxu0 0
    %1089 = vmatpush1.bf16.msra.mxu0 %v1026
    %1090 = vmatprep.subr.bf16.mxu0 0
    %1091 = vmatpush2.bf16.msra.mxu0 %v1041
    %1092 = vmatprep.subr.bf16.mxu0 0
    %1093 = vmatpush2.bf16.msra.mxu0 %v1040
    %1094 = vmatprep.subr.bf16.mxu0 0
    %1095 = vmatpush2.bf16.msra.mxu0 %v1039
    %1096 = vmatprep.subr.bf16.mxu0 0
    %1097 = vmatpush2.bf16.msra.mxu0 %v1038
    %1098 = vmatprep.subr.bf16.mxu0 0
    %1099 = vmatpush2.bf16.msra.mxu0 %v1037
    %1100 = vmatprep.subr.bf16.mxu0 0
    %1101 = vmatpush2.bf16.msra.mxu0 %v1036
    %1102 = vmatprep.subr.bf16.mxu0 0
    %1103 = vmatpush2.bf16.msra.mxu0 %v1035
    %1104 = vmatprep.subr.bf16.mxu0 0
    %1105 = vmatpush2.bf16.msra.mxu0 %v1034
    %1106 = vmatprep.mubr.bf16.mxu0 %v879
    %1107 = vmatmul.mubr.bf16.gmra.mxu0 %v878
    %v1108 = vpop.f32.mrf.mxu0
    %v1109 = vadd.f32 0.0, %v1108
    %v1110 = vpop.f32.mrf.mxu0
    %v1111 = vpop.f32.mrf.mxu0
    %v1112 = vadd.f32 0.0, %v1111
    %v1113 = vpop.f32.mrf.mxu0
    %1114 = vdwg.mxu0
    %1115 = vmatprep.subr.bf16.mxu0 0
    %1116 = vmatpush1.bf16.msra.mxu0 %v1049
    %1117 = vmatprep.subr.bf16.mxu0 0
    %1118 = vmatpush1.bf16.msra.mxu0 %v1048
    %1119 = vmatprep.subr.bf16.mxu0 0
    %1120 = vmatpush1.bf16.msra.mxu0 %v1047
    %1121 = vmatprep.subr.bf16.mxu0 0
    %1122 = vmatpush1.bf16.msra.mxu0 %v1046
    %1123 = vmatprep.subr.bf16.mxu0 0
    %1124 = vmatpush1.bf16.msra.mxu0 %v1045
    %1125 = vmatprep.subr.bf16.mxu0 0
    %1126 = vmatpush1.bf16.msra.mxu0 %v1044
    %1127 = vmatprep.subr.bf16.mxu0 0
    %1128 = vmatpush1.bf16.msra.mxu0 %v1043
    %1129 = vmatprep.subr.bf16.mxu0 0
    %1130 = vmatpush1.bf16.msra.mxu0 %v1042
    %1131 = vmatprep.subr.bf16.mxu0 0
    %1132 = vmatpush2.bf16.msra.mxu0 0
    %1133 = vmatprep.subr.bf16.mxu0 0
    %1134 = vmatpush2.bf16.msra.mxu0 0
    %1135 = vmatprep.subr.bf16.mxu0 0
    %1136 = vmatpush2.bf16.msra.mxu0 0
    %1137 = vmatprep.subr.bf16.mxu0 0
    %1138 = vmatpush2.bf16.msra.mxu0 0
    %1139 = vmatprep.subr.bf16.mxu0 0
    %1140 = vmatpush2.bf16.msra.mxu0 0
    %1141 = vmatprep.subr.bf16.mxu0 0
    %1142 = vmatpush2.bf16.msra.mxu0 0
    %1143 = vmatprep.subr.bf16.mxu0 0
    %1144 = vmatpush2.bf16.msra.mxu0 0
    %1145 = vmatprep.subr.bf16.mxu0 0
    %1146 = vmatpush2.bf16.msra.mxu0 0
    %1147 = vmatprep.mubr.bf16.mxu0 0
    %1148 = vmatmul.mubr.bf16.gmra.mxu0 %v880
    %v1149 = vpop.f32.mrf.mxu0
    %v1150 = vadd.f32 %v1109, %v1149
    %v1151 = vpop.f32.mrf.mxu0
    %v1152 = vpop.f32.mrf.mxu0
    %v1153 = vadd.f32 %v1112, %v1152
    %v1154 = vpop.f32.mrf.mxu0
    %1155 = vdwg.mxu0
    %v1156 = vadd.f32 %v858, %v1150
    %v1157 = vadd.f32 %v859, %v1153
    %1158 = vset.pattern.permute.xlu0 3
    %1159 = vperm.xlu0 %1158, %v75
    %v1160 = vpop.permute.xlu0 %1159
    %1161 = vset.pattern.permute.xlu0 3
    %1162 = vperm.xlu0 %1161, %v76
    %v1163 = vpop.permute.xlu0 %1162
    %vm1164 = vcmp.eq.s32.totalorder %v78, %v1160
    %vm1165 = vcmp.eq.s32.totalorder %v263, %v1160
    %vm1166 = vcmp.eq.s32.totalorder %v264, %v1160
    %vm1167 = vcmp.eq.s32.totalorder %v78, %v1163
    %vm1168 = vcmp.eq.s32.totalorder %v263, %v1163
    %vm1169 = vcmp.eq.s32.totalorder %v264, %v1163
    %v1170 = vsel %vm1164, 1.0, 0.0
    %v1171 = vsel %vm1165, 1.0, 0.0
    %v1172 = vsel %vm1166, 1.0, 0.0
    %v1173 = vsel %vm1167, 1.0, 0.0
    %v1174 = vsel %vm1168, 1.0, 0.0
    %v1175 = vsel %vm1169, 1.0, 0.0
    %v1176 = vpack.c.bf16 %v1173, %v1170
    %v1177 = vpack.c.bf16 %v1174, %v1171
    %v1178 = vpack.c.bf16 %v1175, %v1172
    %s1179 = scalar_lea.vmem [#allocation5], 576
    %v1180 = vld [vmem:[%s1179] sm:$0xf]
    %v1181 = vld [vmem:[%s1179 + $0x4] sm:$0xf]
    %v1182 = vld [vmem:[%s1179 + $0x8] sm:$0xf]
    %v1183 = vld [vmem:[%s1179 + $0xc] sm:$0xf]
    %v1184 = vld [vmem:[%s1179 + $0x10] sm:$0xf]
    %v1185 = vld [vmem:[%s1179 + $0x14] sm:$0xf]
    %v1186 = vld [vmem:[%s1179 + $0x18] sm:$0xf]
    %v1187 = vld [vmem:[%s1179 + $0x1c] sm:$0xf]
    %v1188 = vld [vmem:[%s1179 + $0x20] sm:$0xf]
    %v1189 = vld [vmem:[%s1179 + $0x24] sm:$0xf]
    %v1190 = vld [vmem:[%s1179 + $0x28] sm:$0xf]
    %v1191 = vld [vmem:[%s1179 + $0x2c] sm:$0xf]
    %v1192 = vld [vmem:[%s1179 + $0x30] sm:$0xf]
    %v1193 = vld [vmem:[%s1179 + $0x34] sm:$0xf]
    %v1194 = vld [vmem:[%s1179 + $0x38] sm:$0xf]
    %v1195 = vld [vmem:[%s1179 + $0x3c] sm:$0xf]
    %v1196 = vld [vmem:[%s1179 + $0x40] sm:$0xf]
    %v1197 = vld [vmem:[%s1179 + $0x44] sm:$0xf]
    %v1198 = vld [vmem:[%s1179 + $0x48] sm:$0xf]
    %v1199 = vld [vmem:[%s1179 + $0x4c] sm:$0xf]
    %v1200 = vld [vmem:[%s1179 + $0x50] sm:$0xf]
    %v1201 = vld [vmem:[%s1179 + $0x54] sm:$0xf]
    %v1202 = vld [vmem:[%s1179 + $0x58] sm:$0xf]
    %v1203 = vld [vmem:[%s1179 + $0x5c] sm:$0xf]
    %v1204 = vld [vmem:[%s1179 + $0x60] sm:$0xf]
    %v1205 = vld [vmem:[%s1179 + $0x64] sm:$0xf]
    %v1206 = vld [vmem:[%s1179 + $0x68] sm:$0xf]
    %v1207 = vld [vmem:[%s1179 + $0x6c] sm:$0xf]
    %v1208 = vld [vmem:[%s1179 + $0x70] sm:$0xf]
    %v1209 = vld [vmem:[%s1179 + $0x74] sm:$0xf]
    %v1210 = vld [vmem:[%s1179 + $0x78] sm:$0xf]
    %v1211 = vld [vmem:[%s1179 + $0x7c] sm:$0xf]
    %v1212 = vld [vmem:[%s1179 + $0x80] sm:$0xf]
    %v1213 = vld [vmem:[%s1179 + $0x84] sm:$0xf]
    %v1214 = vld [vmem:[%s1179 + $0x88] sm:$0xf]
    %v1215 = vld [vmem:[%s1179 + $0x8c] sm:$0xf]
    %v1216 = vld [vmem:[%s1179 + $0x90] sm:$0xf]
    %v1217 = vld [vmem:[%s1179 + $0x94] sm:$0xf]
    %v1218 = vld [vmem:[%s1179 + $0x98] sm:$0xf]
    %v1219 = vld [vmem:[%s1179 + $0x9c] sm:$0xf]
    %v1220 = vld [vmem:[%s1179 + $0xa0] sm:$0xf]
    %v1221 = vld [vmem:[%s1179 + $0xa4] sm:$0xf]
    %v1222 = vld [vmem:[%s1179 + $0xa8] sm:$0xf]
    %v1223 = vld [vmem:[%s1179 + $0xac] sm:$0xf]
    %v1224 = vld [vmem:[%s1179 + $0xb0] sm:$0xf]
    %v1225 = vld [vmem:[%s1179 + $0xb4] sm:$0xf]
    %v1226 = vld [vmem:[%s1179 + $0xb8] sm:$0xf]
    %v1227 = vld [vmem:[%s1179 + $0xbc] sm:$0xf]
    %v1276 = vunpack.c.l.b16 %v1180
    %v1277 = vunpack.c.l.b16 %v1181
    %v1278 = vunpack.c.l.b16 %v1182
    %v1279 = vunpack.c.l.b16 %v1183
    %v1280 = vunpack.c.l.b16 %v1184
    %v1281 = vunpack.c.l.b16 %v1185
    %v1282 = vunpack.c.l.b16 %v1186
    %v1283 = vunpack.c.l.b16 %v1187
    %v1284 = vunpack.c.l.b16 %v1188
    %v1285 = vunpack.c.l.b16 %v1189
    %v1286 = vunpack.c.l.b16 %v1190
    %v1287 = vunpack.c.l.b16 %v1191
    %v1288 = vunpack.c.l.b16 %v1192
    %v1289 = vunpack.c.l.b16 %v1193
    %v1290 = vunpack.c.l.b16 %v1194
    %v1291 = vunpack.c.l.b16 %v1195
    %v1292 = vunpack.c.l.b16 %v1196
    %v1293 = vunpack.c.l.b16 %v1197
    %v1294 = vunpack.c.l.b16 %v1198
    %v1295 = vunpack.c.l.b16 %v1199
    %v1296 = vunpack.c.l.b16 %v1200
    %v1297 = vunpack.c.l.b16 %v1201
    %v1298 = vunpack.c.l.b16 %v1202
    %v1299 = vunpack.c.l.b16 %v1203
    %v1300 = vunpack.c.l.b16 %v1204
    %v1301 = vunpack.c.l.b16 %v1205
    %v1302 = vunpack.c.l.b16 %v1206
    %v1303 = vunpack.c.l.b16 %v1207
    %v1304 = vunpack.c.l.b16 %v1208
    %v1305 = vunpack.c.l.b16 %v1209
    %v1306 = vunpack.c.l.b16 %v1210
    %v1307 = vunpack.c.l.b16 %v1211
    %v1308 = vunpack.c.l.b16 %v1212
    %v1309 = vunpack.c.l.b16 %v1213
    %v1310 = vunpack.c.l.b16 %v1214
    %v1311 = vunpack.c.l.b16 %v1215
    %v1312 = vunpack.c.l.b16 %v1216
    %v1313 = vunpack.c.l.b16 %v1217
    %v1314 = vunpack.c.l.b16 %v1218
    %v1315 = vunpack.c.l.b16 %v1219
    %v1316 = vunpack.c.l.b16 %v1220
    %v1317 = vunpack.c.l.b16 %v1221
    %v1318 = vunpack.c.l.b16 %v1222
    %v1319 = vunpack.c.l.b16 %v1223
    %v1320 = vunpack.c.l.b16 %v1224
    %v1321 = vunpack.c.l.b16 %v1225
    %v1322 = vunpack.c.l.b16 %v1226
    %v1323 = vunpack.c.l.b16 %v1227
    %v1324 = vpack.c.b16 %v1277, %v1276
    %v1325 = vpack.c.b16 %v1279, %v1278
    %v1326 = vpack.c.b16 %v1281, %v1280
    %v1327 = vpack.c.b16 %v1283, %v1282
    %v1328 = vpack.c.b16 %v1285, %v1284
    %v1329 = vpack.c.b16 %v1287, %v1286
    %v1330 = vpack.c.b16 %v1289, %v1288
    %v1331 = vpack.c.b16 %v1291, %v1290
    %v1332 = vpack.c.b16 %v1293, %v1292
    %v1333 = vpack.c.b16 %v1295, %v1294
    %v1334 = vpack.c.b16 %v1297, %v1296
    %v1335 = vpack.c.b16 %v1299, %v1298
    %v1336 = vpack.c.b16 %v1301, %v1300
    %v1337 = vpack.c.b16 %v1303, %v1302
    %v1338 = vpack.c.b16 %v1305, %v1304
    %v1339 = vpack.c.b16 %v1307, %v1306
    %v1340 = vpack.c.b16 %v1309, %v1308
    %v1341 = vpack.c.b16 %v1311, %v1310
    %v1342 = vpack.c.b16 %v1313, %v1312
    %v1343 = vpack.c.b16 %v1315, %v1314
    %v1344 = vpack.c.b16 %v1317, %v1316
    %v1345 = vpack.c.b16 %v1319, %v1318
    %v1346 = vpack.c.b16 %v1321, %v1320
    %v1347 = vpack.c.b16 %v1323, %v1322
    %1372 = vmatprep.subr.bf16.mxu0 0
    %1373 = vmatpush1.bf16.msra.mxu0 %v1331
    %1374 = vmatprep.subr.bf16.mxu0 0
    %1375 = vmatpush1.bf16.msra.mxu0 %v1330
    %1376 = vmatprep.subr.bf16.mxu0 0
    %1377 = vmatpush1.bf16.msra.mxu0 %v1329
    %1378 = vmatprep.subr.bf16.mxu0 0
    %1379 = vmatpush1.bf16.msra.mxu0 %v1328
    %1380 = vmatprep.subr.bf16.mxu0 0
    %1381 = vmatpush1.bf16.msra.mxu0 %v1327
    %1382 = vmatprep.subr.bf16.mxu0 0
    %1383 = vmatpush1.bf16.msra.mxu0 %v1326
    %1384 = vmatprep.subr.bf16.mxu0 0
    %1385 = vmatpush1.bf16.msra.mxu0 %v1325
    %1386 = vmatprep.subr.bf16.mxu0 0
    %1387 = vmatpush1.bf16.msra.mxu0 %v1324
    %1388 = vmatprep.subr.bf16.mxu0 0
    %1389 = vmatpush2.bf16.msra.mxu0 %v1339
    %1390 = vmatprep.subr.bf16.mxu0 0
    %1391 = vmatpush2.bf16.msra.mxu0 %v1338
    %1392 = vmatprep.subr.bf16.mxu0 0
    %1393 = vmatpush2.bf16.msra.mxu0 %v1337
    %1394 = vmatprep.subr.bf16.mxu0 0
    %1395 = vmatpush2.bf16.msra.mxu0 %v1336
    %1396 = vmatprep.subr.bf16.mxu0 0
    %1397 = vmatpush2.bf16.msra.mxu0 %v1335
    %1398 = vmatprep.subr.bf16.mxu0 0
    %1399 = vmatpush2.bf16.msra.mxu0 %v1334
    %1400 = vmatprep.subr.bf16.mxu0 0
    %1401 = vmatpush2.bf16.msra.mxu0 %v1333
    %1402 = vmatprep.subr.bf16.mxu0 0
    %1403 = vmatpush2.bf16.msra.mxu0 %v1332
    %1404 = vmatprep.mubr.bf16.mxu0 %v1177
    %1405 = vmatmul.mubr.bf16.gmra.mxu0 %v1176
    %v1406 = vpop.f32.mrf.mxu0
    %v1407 = vadd.f32 0.0, %v1406
    %v1408 = vpop.f32.mrf.mxu0
    %v1409 = vpop.f32.mrf.mxu0
    %v1410 = vadd.f32 0.0, %v1409
    %v1411 = vpop.f32.mrf.mxu0
    %1412 = vdwg.mxu0
    %1413 = vmatprep.subr.bf16.mxu0 0
    %1414 = vmatpush1.bf16.msra.mxu0 %v1347
    %1415 = vmatprep.subr.bf16.mxu0 0
    %1416 = vmatpush1.bf16.msra.mxu0 %v1346
    %1417 = vmatprep.subr.bf16.mxu0 0
    %1418 = vmatpush1.bf16.msra.mxu0 %v1345
    %1419 = vmatprep.subr.bf16.mxu0 0
    %1420 = vmatpush1.bf16.msra.mxu0 %v1344
    %1421 = vmatprep.subr.bf16.mxu0 0
    %1422 = vmatpush1.bf16.msra.mxu0 %v1343
    %1423 = vmatprep.subr.bf16.mxu0 0
    %1424 = vmatpush1.bf16.msra.mxu0 %v1342
    %1425 = vmatprep.subr.bf16.mxu0 0
    %1426 = vmatpush1.bf16.msra.mxu0 %v1341
    %1427 = vmatprep.subr.bf16.mxu0 0
    %1428 = vmatpush1.bf16.msra.mxu0 %v1340
    %1429 = vmatprep.subr.bf16.mxu0 0
    %1430 = vmatpush2.bf16.msra.mxu0 0
    %1431 = vmatprep.subr.bf16.mxu0 0
    %1432 = vmatpush2.bf16.msra.mxu0 0
    %1433 = vmatprep.subr.bf16.mxu0 0
    %1434 = vmatpush2.bf16.msra.mxu0 0
    %1435 = vmatprep.subr.bf16.mxu0 0
    %1436 = vmatpush2.bf16.msra.mxu0 0
    %1437 = vmatprep.subr.bf16.mxu0 0
    %1438 = vmatpush2.bf16.msra.mxu0 0
    %1439 = vmatprep.subr.bf16.mxu0 0
    %1440 = vmatpush2.bf16.msra.mxu0 0
    %1441 = vmatprep.subr.bf16.mxu0 0
    %1442 = vmatpush2.bf16.msra.mxu0 0
    %1443 = vmatprep.subr.bf16.mxu0 0
    %1444 = vmatpush2.bf16.msra.mxu0 0
    %1445 = vmatprep.mubr.bf16.mxu0 0
    %1446 = vmatmul.mubr.bf16.gmra.mxu0 %v1178
    %v1447 = vpop.f32.mrf.mxu0
    %v1448 = vadd.f32 %v1407, %v1447
    %v1449 = vpop.f32.mrf.mxu0
    %v1450 = vpop.f32.mrf.mxu0
    %v1451 = vadd.f32 %v1410, %v1450
    %v1452 = vpop.f32.mrf.mxu0
    %1453 = vdwg.mxu0
    %v1454 = vadd.f32 %v1156, %v1448
    %v1455 = vadd.f32 %v1157, %v1451
    %1456 = vset.pattern.permute.xlu0 4
    %1457 = vperm.xlu0 %1456, %v75
    %v1458 = vpop.permute.xlu0 %1457
    %1459 = vset.pattern.permute.xlu0 4
    %1460 = vperm.xlu0 %1459, %v76
    %v1461 = vpop.permute.xlu0 %1460
    %vm1462 = vcmp.eq.s32.totalorder %v78, %v1458
    %vm1463 = vcmp.eq.s32.totalorder %v263, %v1458
    %vm1464 = vcmp.eq.s32.totalorder %v264, %v1458
    %vm1465 = vcmp.eq.s32.totalorder %v78, %v1461
    %vm1466 = vcmp.eq.s32.totalorder %v263, %v1461
    %vm1467 = vcmp.eq.s32.totalorder %v264, %v1461
    %v1468 = vsel %vm1462, 1.0, 0.0
    %v1469 = vsel %vm1463, 1.0, 0.0
    %v1470 = vsel %vm1464, 1.0, 0.0
    %v1471 = vsel %vm1465, 1.0, 0.0
    %v1472 = vsel %vm1466, 1.0, 0.0
    %v1473 = vsel %vm1467, 1.0, 0.0
    %v1474 = vpack.c.bf16 %v1471, %v1468
    %v1475 = vpack.c.bf16 %v1472, %v1469
    %v1476 = vpack.c.bf16 %v1473, %v1470
    %s1477 = scalar_lea.vmem [#allocation5], 768
    %v1478 = vld [vmem:[%s1477] sm:$0xf]
    %v1479 = vld [vmem:[%s1477 + $0x4] sm:$0xf]
    %v1480 = vld [vmem:[%s1477 + $0x8] sm:$0xf]
    %v1481 = vld [vmem:[%s1477 + $0xc] sm:$0xf]
    %v1482 = vld [vmem:[%s1477 + $0x10] sm:$0xf]
    %v1483 = vld [vmem:[%s1477 + $0x14] sm:$0xf]
    %v1484 = vld [vmem:[%s1477 + $0x18] sm:$0xf]
    %v1485 = vld [vmem:[%s1477 + $0x1c] sm:$0xf]
    %v1486 = vld [vmem:[%s1477 + $0x20] sm:$0xf]
    %v1487 = vld [vmem:[%s1477 + $0x24] sm:$0xf]
    %v1488 = vld [vmem:[%s1477 + $0x28] sm:$0xf]
    %v1489 = vld [vmem:[%s1477 + $0x2c] sm:$0xf]
    %v1490 = vld [vmem:[%s1477 + $0x30] sm:$0xf]
    %v1491 = vld [vmem:[%s1477 + $0x34] sm:$0xf]
    %v1492 = vld [vmem:[%s1477 + $0x38] sm:$0xf]
    %v1493 = vld [vmem:[%s1477 + $0x3c] sm:$0xf]
    %v1494 = vld [vmem:[%s1477 + $0x40] sm:$0xf]
    %v1495 = vld [vmem:[%s1477 + $0x44] sm:$0xf]
    %v1496 = vld [vmem:[%s1477 + $0x48] sm:$0xf]
    %v1497 = vld [vmem:[%s1477 + $0x4c] sm:$0xf]
    %v1498 = vld [vmem:[%s1477 + $0x50] sm:$0xf]
    %v1499 = vld [vmem:[%s1477 + $0x54] sm:$0xf]
    %v1500 = vld [vmem:[%s1477 + $0x58] sm:$0xf]
    %v1501 = vld [vmem:[%s1477 + $0x5c] sm:$0xf]
    %v1502 = vld [vmem:[%s1477 + $0x60] sm:$0xf]
    %v1503 = vld [vmem:[%s1477 + $0x64] sm:$0xf]
    %v1504 = vld [vmem:[%s1477 + $0x68] sm:$0xf]
    %v1505 = vld [vmem:[%s1477 + $0x6c] sm:$0xf]
    %v1506 = vld [vmem:[%s1477 + $0x70] sm:$0xf]
    %v1507 = vld [vmem:[%s1477 + $0x74] sm:$0xf]
    %v1508 = vld [vmem:[%s1477 + $0x78] sm:$0xf]
    %v1509 = vld [vmem:[%s1477 + $0x7c] sm:$0xf]
    %v1510 = vld [vmem:[%s1477 + $0x80] sm:$0xf]
    %v1511 = vld [vmem:[%s1477 + $0x84] sm:$0xf]
    %v1512 = vld [vmem:[%s1477 + $0x88] sm:$0xf]
    %v1513 = vld [vmem:[%s1477 + $0x8c] sm:$0xf]
    %v1514 = vld [vmem:[%s1477 + $0x90] sm:$0xf]
    %v1515 = vld [vmem:[%s1477 + $0x94] sm:$0xf]
    %v1516 = vld [vmem:[%s1477 + $0x98] sm:$0xf]
    %v1517 = vld [vmem:[%s1477 + $0x9c] sm:$0xf]
    %v1518 = vld [vmem:[%s1477 + $0xa0] sm:$0xf]
    %v1519 = vld [vmem:[%s1477 + $0xa4] sm:$0xf]
    %v1520 = vld [vmem:[%s1477 + $0xa8] sm:$0xf]
    %v1521 = vld [vmem:[%s1477 + $0xac] sm:$0xf]
    %v1522 = vld [vmem:[%s1477 + $0xb0] sm:$0xf]
    %v1523 = vld [vmem:[%s1477 + $0xb4] sm:$0xf]
    %v1524 = vld [vmem:[%s1477 + $0xb8] sm:$0xf]
    %v1525 = vld [vmem:[%s1477 + $0xbc] sm:$0xf]
    %v1574 = vunpack.c.l.b16 %v1478
    %v1575 = vunpack.c.l.b16 %v1479
    %v1576 = vunpack.c.l.b16 %v1480
    %v1577 = vunpack.c.l.b16 %v1481
    %v1578 = vunpack.c.l.b16 %v1482
    %v1579 = vunpack.c.l.b16 %v1483
    %v1580 = vunpack.c.l.b16 %v1484
    %v1581 = vunpack.c.l.b16 %v1485
    %v1582 = vunpack.c.l.b16 %v1486
    %v1583 = vunpack.c.l.b16 %v1487
    %v1584 = vunpack.c.l.b16 %v1488
    %v1585 = vunpack.c.l.b16 %v1489
    %v1586 = vunpack.c.l.b16 %v1490
    %v1587 = vunpack.c.l.b16 %v1491
    %v1588 = vunpack.c.l.b16 %v1492
    %v1589 = vunpack.c.l.b16 %v1493
    %v1590 = vunpack.c.l.b16 %v1494
    %v1591 = vunpack.c.l.b16 %v1495
    %v1592 = vunpack.c.l.b16 %v1496
    %v1593 = vunpack.c.l.b16 %v1497
    %v1594 = vunpack.c.l.b16 %v1498
    %v1595 = vunpack.c.l.b16 %v1499
    %v1596 = vunpack.c.l.b16 %v1500
    %v1597 = vunpack.c.l.b16 %v1501
    %v1598 = vunpack.c.l.b16 %v1502
    %v1599 = vunpack.c.l.b16 %v1503
    %v1600 = vunpack.c.l.b16 %v1504
    %v1601 = vunpack.c.l.b16 %v1505
    %v1602 = vunpack.c.l.b16 %v1506
    %v1603 = vunpack.c.l.b16 %v1507
    %v1604 = vunpack.c.l.b16 %v1508
    %v1605 = vunpack.c.l.b16 %v1509
    %v1606 = vunpack.c.l.b16 %v1510
    %v1607 = vunpack.c.l.b16 %v1511
    %v1608 = vunpack.c.l.b16 %v1512
    %v1609 = vunpack.c.l.b16 %v1513
    %v1610 = vunpack.c.l.b16 %v1514
    %v1611 = vunpack.c.l.b16 %v1515
    %v1612 = vunpack.c.l.b16 %v1516
    %v1613 = vunpack.c.l.b16 %v1517
    %v1614 = vunpack.c.l.b16 %v1518
    %v1615 = vunpack.c.l.b16 %v1519
    %v1616 = vunpack.c.l.b16 %v1520
    %v1617 = vunpack.c.l.b16 %v1521
    %v1618 = vunpack.c.l.b16 %v1522
    %v1619 = vunpack.c.l.b16 %v1523
    %v1620 = vunpack.c.l.b16 %v1524
    %v1621 = vunpack.c.l.b16 %v1525
    %v1622 = vpack.c.b16 %v1575, %v1574
    %v1623 = vpack.c.b16 %v1577, %v1576
    %v1624 = vpack.c.b16 %v1579, %v1578
    %v1625 = vpack.c.b16 %v1581, %v1580
    %v1626 = vpack.c.b16 %v1583, %v1582
    %v1627 = vpack.c.b16 %v1585, %v1584
    %v1628 = vpack.c.b16 %v1587, %v1586
    %v1629 = vpack.c.b16 %v1589, %v1588
    %v1630 = vpack.c.b16 %v1591, %v1590
    %v1631 = vpack.c.b16 %v1593, %v1592
    %v1632 = vpack.c.b16 %v1595, %v1594
    %v1633 = vpack.c.b16 %v1597, %v1596
    %v1634 = vpack.c.b16 %v1599, %v1598
    %v1635 = vpack.c.b16 %v1601, %v1600
    %v1636 = vpack.c.b16 %v1603, %v1602
    %v1637 = vpack.c.b16 %v1605, %v1604
    %v1638 = vpack.c.b16 %v1607, %v1606
    %v1639 = vpack.c.b16 %v1609, %v1608
    %v1640 = vpack.c.b16 %v1611, %v1610
    %v1641 = vpack.c.b16 %v1613, %v1612
    %v1642 = vpack.c.b16 %v1615, %v1614
    %v1643 = vpack.c.b16 %v1617, %v1616
    %v1644 = vpack.c.b16 %v1619, %v1618
    %v1645 = vpack.c.b16 %v1621, %v1620
    %1670 = vmatprep.subr.bf16.mxu0 0
    %1671 = vmatpush1.bf16.msra.mxu0 %v1629
    %1672 = vmatprep.subr.bf16.mxu0 0
    %1673 = vmatpush1.bf16.msra.mxu0 %v1628
    %1674 = vmatprep.subr.bf16.mxu0 0
    %1675 = vmatpush1.bf16.msra.mxu0 %v1627
    %1676 = vmatprep.subr.bf16.mxu0 0
    %1677 = vmatpush1.bf16.msra.mxu0 %v1626
    %1678 = vmatprep.subr.bf16.mxu0 0
    %1679 = vmatpush1.bf16.msra.mxu0 %v1625
    %1680 = vmatprep.subr.bf16.mxu0 0
    %1681 = vmatpush1.bf16.msra.mxu0 %v1624
    %1682 = vmatprep.subr.bf16.mxu0 0
    %1683 = vmatpush1.bf16.msra.mxu0 %v1623
    %1684 = vmatprep.subr.bf16.mxu0 0
    %1685 = vmatpush1.bf16.msra.mxu0 %v1622
    %1686 = vmatprep.subr.bf16.mxu0 0
    %1687 = vmatpush2.bf16.msra.mxu0 %v1637
    %1688 = vmatprep.subr.bf16.mxu0 0
    %1689 = vmatpush2.bf16.msra.mxu0 %v1636
    %1690 = vmatprep.subr.bf16.mxu0 0
    %1691 = vmatpush2.bf16.msra.mxu0 %v1635
    %1692 = vmatprep.subr.bf16.mxu0 0
    %1693 = vmatpush2.bf16.msra.mxu0 %v1634
    %1694 = vmatprep.subr.bf16.mxu0 0
    %1695 = vmatpush2.bf16.msra.mxu0 %v1633
    %1696 = vmatprep.subr.bf16.mxu0 0
    %1697 = vmatpush2.bf16.msra.mxu0 %v1632
    %1698 = vmatprep.subr.bf16.mxu0 0
    %1699 = vmatpush2.bf16.msra.mxu0 %v1631
    %1700 = vmatprep.subr.bf16.mxu0 0
    %1701 = vmatpush2.bf16.msra.mxu0 %v1630
    %1702 = vmatprep.mubr.bf16.mxu0 %v1475
    %1703 = vmatmul.mubr.bf16.gmra.mxu0 %v1474
    %v1704 = vpop.f32.mrf.mxu0
    %v1705 = vadd.f32 0.0, %v1704
    %v1706 = vpop.f32.mrf.mxu0
    %v1707 = vpop.f32.mrf.mxu0
    %v1708 = vadd.f32 0.0, %v1707
    %v1709 = vpop.f32.mrf.mxu0
    %1710 = vdwg.mxu0
    %1711 = vmatprep.subr.bf16.mxu0 0
    %1712 = vmatpush1.bf16.msra.mxu0 %v1645
    %1713 = vmatprep.subr.bf16.mxu0 0
    %1714 = vmatpush1.bf16.msra.mxu0 %v1644
    %1715 = vmatprep.subr.bf16.mxu0 0
    %1716 = vmatpush1.bf16.msra.mxu0 %v1643
    %1717 = vmatprep.subr.bf16.mxu0 0
    %1718 = vmatpush1.bf16.msra.mxu0 %v1642
    %1719 = vmatprep.subr.bf16.mxu0 0
    %1720 = vmatpush1.bf16.msra.mxu0 %v1641
    %1721 = vmatprep.subr.bf16.mxu0 0
    %1722 = vmatpush1.bf16.msra.mxu0 %v1640
    %1723 = vmatprep.subr.bf16.mxu0 0
    %1724 = vmatpush1.bf16.msra.mxu0 %v1639
    %1725 = vmatprep.subr.bf16.mxu0 0
    %1726 = vmatpush1.bf16.msra.mxu0 %v1638
    %1727 = vmatprep.subr.bf16.mxu0 0
    %1728 = vmatpush2.bf16.msra.mxu0 0
    %1729 = vmatprep.subr.bf16.mxu0 0
    %1730 = vmatpush2.bf16.msra.mxu0 0
    %1731 = vmatprep.subr.bf16.mxu0 0
    %1732 = vmatpush2.bf16.msra.mxu0 0
    %1733 = vmatprep.subr.bf16.mxu0 0
    %1734 = vmatpush2.bf16.msra.mxu0 0
    %1735 = vmatprep.subr.bf16.mxu0 0
    %1736 = vmatpush2.bf16.msra.mxu0 0
    %1737 = vmatprep.subr.bf16.mxu0 0
    %1738 = vmatpush2.bf16.msra.mxu0 0
    %1739 = vmatprep.subr.bf16.mxu0 0
    %1740 = vmatpush2.bf16.msra.mxu0 0
    %1741 = vmatprep.subr.bf16.mxu0 0
    %1742 = vmatpush2.bf16.msra.mxu0 0
    %1743 = vmatprep.mubr.bf16.mxu0 0
    %1744 = vmatmul.mubr.bf16.gmra.mxu0 %v1476
    %v1745 = vpop.f32.mrf.mxu0
    %v1746 = vadd.f32 %v1705, %v1745
    %v1747 = vpop.f32.mrf.mxu0
    %v1748 = vpop.f32.mrf.mxu0
    %v1749 = vadd.f32 %v1708, %v1748
    %v1750 = vpop.f32.mrf.mxu0
    %1751 = vdwg.mxu0
    %v1752 = vadd.f32 %v1454, %v1746
    %v1753 = vadd.f32 %v1455, %v1749
    %1754 = vset.pattern.permute.xlu0 5
    %1755 = vperm.xlu0 %1754, %v75
    %v1756 = vpop.permute.xlu0 %1755
    %1757 = vset.pattern.permute.xlu0 5
    %1758 = vperm.xlu0 %1757, %v76
    %v1759 = vpop.permute.xlu0 %1758
    %vm1760 = vcmp.eq.s32.totalorder %v78, %v1756
    %vm1761 = vcmp.eq.s32.totalorder %v263, %v1756
    %vm1762 = vcmp.eq.s32.totalorder %v264, %v1756
    %vm1763 = vcmp.eq.s32.totalorder %v78, %v1759
    %vm1764 = vcmp.eq.s32.totalorder %v263, %v1759
    %vm1765 = vcmp.eq.s32.totalorder %v264, %v1759
    %v1766 = vsel %vm1760, 1.0, 0.0
    %v1767 = vsel %vm1761, 1.0, 0.0
    %v1768 = vsel %vm1762, 1.0, 0.0
    %v1769 = vsel %vm1763, 1.0, 0.0
    %v1770 = vsel %vm1764, 1.0, 0.0
    %v1771 = vsel %vm1765, 1.0, 0.0
    %v1772 = vpack.c.bf16 %v1769, %v1766
    %v1773 = vpack.c.bf16 %v1770, %v1767
    %v1774 = vpack.c.bf16 %v1771, %v1768
    %s1775 = scalar_lea.vmem [#allocation5], 960
    %v1776 = vld [vmem:[%s1775] sm:$0xf]
    %v1777 = vld [vmem:[%s1775 + $0x4] sm:$0xf]
    %v1778 = vld [vmem:[%s1775 + $0x8] sm:$0xf]
    %v1779 = vld [vmem:[%s1775 + $0xc] sm:$0xf]
    %v1780 = vld [vmem:[%s1775 + $0x10] sm:$0xf]
    %v1781 = vld [vmem:[%s1775 + $0x14] sm:$0xf]
    %v1782 = vld [vmem:[%s1775 + $0x18] sm:$0xf]
    %v1783 = vld [vmem:[%s1775 + $0x1c] sm:$0xf]
    %v1784 = vld [vmem:[%s1775 + $0x20] sm:$0xf]
    %v1785 = vld [vmem:[%s1775 + $0x24] sm:$0xf]
    %v1786 = vld [vmem:[%s1775 + $0x28] sm:$0xf]
    %v1787 = vld [vmem:[%s1775 + $0x2c] sm:$0xf]
    %v1788 = vld [vmem:[%s1775 + $0x30] sm:$0xf]
    %v1789 = vld [vmem:[%s1775 + $0x34] sm:$0xf]
    %v1790 = vld [vmem:[%s1775 + $0x38] sm:$0xf]
    %v1791 = vld [vmem:[%s1775 + $0x3c] sm:$0xf]
    %v1792 = vld [vmem:[%s1775 + $0x40] sm:$0xf]
    %v1793 = vld [vmem:[%s1775 + $0x44] sm:$0xf]
    %v1794 = vld [vmem:[%s1775 + $0x48] sm:$0xf]
    %v1795 = vld [vmem:[%s1775 + $0x4c] sm:$0xf]
    %v1796 = vld [vmem:[%s1775 + $0x50] sm:$0xf]
    %v1797 = vld [vmem:[%s1775 + $0x54] sm:$0xf]
    %v1798 = vld [vmem:[%s1775 + $0x58] sm:$0xf]
    %v1799 = vld [vmem:[%s1775 + $0x5c] sm:$0xf]
    %v1800 = vld [vmem:[%s1775 + $0x60] sm:$0xf]
    %v1801 = vld [vmem:[%s1775 + $0x64] sm:$0xf]
    %v1802 = vld [vmem:[%s1775 + $0x68] sm:$0xf]
    %v1803 = vld [vmem:[%s1775 + $0x6c] sm:$0xf]
    %v1804 = vld [vmem:[%s1775 + $0x70] sm:$0xf]
    %v1805 = vld [vmem:[%s1775 + $0x74] sm:$0xf]
    %v1806 = vld [vmem:[%s1775 + $0x78] sm:$0xf]
    %v1807 = vld [vmem:[%s1775 + $0x7c] sm:$0xf]
    %v1808 = vld [vmem:[%s1775 + $0x80] sm:$0xf]
    %v1809 = vld [vmem:[%s1775 + $0x84] sm:$0xf]
    %v1810 = vld [vmem:[%s1775 + $0x88] sm:$0xf]
    %v1811 = vld [vmem:[%s1775 + $0x8c] sm:$0xf]
    %v1812 = vld [vmem:[%s1775 + $0x90] sm:$0xf]
    %v1813 = vld [vmem:[%s1775 + $0x94] sm:$0xf]
    %v1814 = vld [vmem:[%s1775 + $0x98] sm:$0xf]
    %v1815 = vld [vmem:[%s1775 + $0x9c] sm:$0xf]
    %v1816 = vld [vmem:[%s1775 + $0xa0] sm:$0xf]
    %v1817 = vld [vmem:[%s1775 + $0xa4] sm:$0xf]
    %v1818 = vld [vmem:[%s1775 + $0xa8] sm:$0xf]
    %v1819 = vld [vmem:[%s1775 + $0xac] sm:$0xf]
    %v1820 = vld [vmem:[%s1775 + $0xb0] sm:$0xf]
    %v1821 = vld [vmem:[%s1775 + $0xb4] sm:$0xf]
    %v1822 = vld [vmem:[%s1775 + $0xb8] sm:$0xf]
    %v1823 = vld [vmem:[%s1775 + $0xbc] sm:$0xf]
    %v1872 = vunpack.c.l.b16 %v1776
    %v1873 = vunpack.c.l.b16 %v1777
    %v1874 = vunpack.c.l.b16 %v1778
    %v1875 = vunpack.c.l.b16 %v1779
    %v1876 = vunpack.c.l.b16 %v1780
    %v1877 = vunpack.c.l.b16 %v1781
    %v1878 = vunpack.c.l.b16 %v1782
    %v1879 = vunpack.c.l.b16 %v1783
    %v1880 = vunpack.c.l.b16 %v1784
    %v1881 = vunpack.c.l.b16 %v1785
    %v1882 = vunpack.c.l.b16 %v1786
    %v1883 = vunpack.c.l.b16 %v1787
    %v1884 = vunpack.c.l.b16 %v1788
    %v1885 = vunpack.c.l.b16 %v1789
    %v1886 = vunpack.c.l.b16 %v1790
    %v1887 = vunpack.c.l.b16 %v1791
    %v1888 = vunpack.c.l.b16 %v1792
    %v1889 = vunpack.c.l.b16 %v1793
    %v1890 = vunpack.c.l.b16 %v1794
    %v1891 = vunpack.c.l.b16 %v1795
    %v1892 = vunpack.c.l.b16 %v1796
    %v1893 = vunpack.c.l.b16 %v1797
    %v1894 = vunpack.c.l.b16 %v1798
    %v1895 = vunpack.c.l.b16 %v1799
    %v1896 = vunpack.c.l.b16 %v1800
    %v1897 = vunpack.c.l.b16 %v1801
    %v1898 = vunpack.c.l.b16 %v1802
    %v1899 = vunpack.c.l.b16 %v1803
    %v1900 = vunpack.c.l.b16 %v1804
    %v1901 = vunpack.c.l.b16 %v1805
    %v1902 = vunpack.c.l.b16 %v1806
    %v1903 = vunpack.c.l.b16 %v1807
    %v1904 = vunpack.c.l.b16 %v1808
    %v1905 = vunpack.c.l.b16 %v1809
    %v1906 = vunpack.c.l.b16 %v1810
    %v1907 = vunpack.c.l.b16 %v1811
    %v1908 = vunpack.c.l.b16 %v1812
    %v1909 = vunpack.c.l.b16 %v1813
    %v1910 = vunpack.c.l.b16 %v1814
    %v1911 = vunpack.c.l.b16 %v1815
    %v1912 = vunpack.c.l.b16 %v1816
    %v1913 = vunpack.c.l.b16 %v1817
    %v1914 = vunpack.c.l.b16 %v1818
    %v1915 = vunpack.c.l.b16 %v1819
    %v1916 = vunpack.c.l.b16 %v1820
    %v1917 = vunpack.c.l.b16 %v1821
    %v1918 = vunpack.c.l.b16 %v1822
    %v1919 = vunpack.c.l.b16 %v1823
    %v1920 = vpack.c.b16 %v1873, %v1872
    %v1921 = vpack.c.b16 %v1875, %v1874
    %v1922 = vpack.c.b16 %v1877, %v1876
    %v1923 = vpack.c.b16 %v1879, %v1878
    %v1924 = vpack.c.b16 %v1881, %v1880
    %v1925 = vpack.c.b16 %v1883, %v1882
    %v1926 = vpack.c.b16 %v1885, %v1884
    %v1927 = vpack.c.b16 %v1887, %v1886
    %v1928 = vpack.c.b16 %v1889, %v1888
    %v1929 = vpack.c.b16 %v1891, %v1890
    %v1930 = vpack.c.b16 %v1893, %v1892
    %v1931 = vpack.c.b16 %v1895, %v1894
    %v1932 = vpack.c.b16 %v1897, %v1896
    %v1933 = vpack.c.b16 %v1899, %v1898
    %v1934 = vpack.c.b16 %v1901, %v1900
    %v1935 = vpack.c.b16 %v1903, %v1902
    %v1936 = vpack.c.b16 %v1905, %v1904
    %v1937 = vpack.c.b16 %v1907, %v1906
    %v1938 = vpack.c.b16 %v1909, %v1908
    %v1939 = vpack.c.b16 %v1911, %v1910
    %v1940 = vpack.c.b16 %v1913, %v1912
    %v1941 = vpack.c.b16 %v1915, %v1914
    %v1942 = vpack.c.b16 %v1917, %v1916
    %v1943 = vpack.c.b16 %v1919, %v1918
    %1968 = vmatprep.subr.bf16.mxu0 0
    %1969 = vmatpush1.bf16.msra.mxu0 %v1927
    %1970 = vmatprep.subr.bf16.mxu0 0
    %1971 = vmatpush1.bf16.msra.mxu0 %v1926
    %1972 = vmatprep.subr.bf16.mxu0 0
    %1973 = vmatpush1.bf16.msra.mxu0 %v1925
    %1974 = vmatprep.subr.bf16.mxu0 0
    %1975 = vmatpush1.bf16.msra.mxu0 %v1924
    %1976 = vmatprep.subr.bf16.mxu0 0
    %1977 = vmatpush1.bf16.msra.mxu0 %v1923
    %1978 = vmatprep.subr.bf16.mxu0 0
    %1979 = vmatpush1.bf16.msra.mxu0 %v1922
    %1980 = vmatprep.subr.bf16.mxu0 0
    %1981 = vmatpush1.bf16.msra.mxu0 %v1921
    %1982 = vmatprep.subr.bf16.mxu0 0
    %1983 = vmatpush1.bf16.msra.mxu0 %v1920
    %1984 = vmatprep.subr.bf16.mxu0 0
    %1985 = vmatpush2.bf16.msra.mxu0 %v1935
    %1986 = vmatprep.subr.bf16.mxu0 0
    %1987 = vmatpush2.bf16.msra.mxu0 %v1934
    %1988 = vmatprep.subr.bf16.mxu0 0
    %1989 = vmatpush2.bf16.msra.mxu0 %v1933
    %1990 = vmatprep.subr.bf16.mxu0 0
    %1991 = vmatpush2.bf16.msra.mxu0 %v1932
    %1992 = vmatprep.subr.bf16.mxu0 0
    %1993 = vmatpush2.bf16.msra.mxu0 %v1931
    %1994 = vmatprep.subr.bf16.mxu0 0
    %1995 = vmatpush2.bf16.msra.mxu0 %v1930
    %1996 = vmatprep.subr.bf16.mxu0 0
    %1997 = vmatpush2.bf16.msra.mxu0 %v1929
    %1998 = vmatprep.subr.bf16.mxu0 0
    %1999 = vmatpush2.bf16.msra.mxu0 %v1928
    %2000 = vmatprep.mubr.bf16.mxu0 %v1773
    %2001 = vmatmul.mubr.bf16.gmra.mxu0 %v1772
    %v2002 = vpop.f32.mrf.mxu0
    %v2003 = vadd.f32 0.0, %v2002
    %v2004 = vpop.f32.mrf.mxu0
    %v2005 = vpop.f32.mrf.mxu0
    %v2006 = vadd.f32 0.0, %v2005
    %v2007 = vpop.f32.mrf.mxu0
    %2008 = vdwg.mxu0
    %2009 = vmatprep.subr.bf16.mxu0 0
    %2010 = vmatpush1.bf16.msra.mxu0 %v1943
    %2011 = vmatprep.subr.bf16.mxu0 0
    %2012 = vmatpush1.bf16.msra.mxu0 %v1942
    %2013 = vmatprep.subr.bf16.mxu0 0
    %2014 = vmatpush1.bf16.msra.mxu0 %v1941
    %2015 = vmatprep.subr.bf16.mxu0 0
    %2016 = vmatpush1.bf16.msra.mxu0 %v1940
    %2017 = vmatprep.subr.bf16.mxu0 0
    %2018 = vmatpush1.bf16.msra.mxu0 %v1939
    %2019 = vmatprep.subr.bf16.mxu0 0
    %2020 = vmatpush1.bf16.msra.mxu0 %v1938
    %2021 = vmatprep.subr.bf16.mxu0 0
    %2022 = vmatpush1.bf16.msra.mxu0 %v1937
    %2023 = vmatprep.subr.bf16.mxu0 0
    %2024 = vmatpush1.bf16.msra.mxu0 %v1936
    %2025 = vmatprep.subr.bf16.mxu0 0
    %2026 = vmatpush2.bf16.msra.mxu0 0
    %2027 = vmatprep.subr.bf16.mxu0 0
    %2028 = vmatpush2.bf16.msra.mxu0 0
    %2029 = vmatprep.subr.bf16.mxu0 0
    %2030 = vmatpush2.bf16.msra.mxu0 0
    %2031 = vmatprep.subr.bf16.mxu0 0
    %2032 = vmatpush2.bf16.msra.mxu0 0
    %2033 = vmatprep.subr.bf16.mxu0 0
    %2034 = vmatpush2.bf16.msra.mxu0 0
    %2035 = vmatprep.subr.bf16.mxu0 0
    %2036 = vmatpush2.bf16.msra.mxu0 0
    %2037 = vmatprep.subr.bf16.mxu0 0
    %2038 = vmatpush2.bf16.msra.mxu0 0
    %2039 = vmatprep.subr.bf16.mxu0 0
    %2040 = vmatpush2.bf16.msra.mxu0 0
    %2041 = vmatprep.mubr.bf16.mxu0 0
    %2042 = vmatmul.mubr.bf16.gmra.mxu0 %v1774
    %v2043 = vpop.f32.mrf.mxu0
    %v2044 = vadd.f32 %v2003, %v2043
    %v2045 = vpop.f32.mrf.mxu0
    %v2046 = vpop.f32.mrf.mxu0
    %v2047 = vadd.f32 %v2006, %v2046
    %v2048 = vpop.f32.mrf.mxu0
    %2049 = vdwg.mxu0
    %v2050 = vadd.f32 %v1752, %v2044
    %v2051 = vadd.f32 %v1753, %v2047
    %2052 = vset.pattern.permute.xlu0 6
    %2053 = vperm.xlu0 %2052, %v75
    %v2054 = vpop.permute.xlu0 %2053
    %2055 = vset.pattern.permute.xlu0 6
    %2056 = vperm.xlu0 %2055, %v76
    %v2057 = vpop.permute.xlu0 %2056
    %vm2058 = vcmp.eq.s32.totalorder %v78, %v2054
    %vm2059 = vcmp.eq.s32.totalorder %v263, %v2054
    %vm2060 = vcmp.eq.s32.totalorder %v264, %v2054
    %vm2061 = vcmp.eq.s32.totalorder %v78, %v2057
    %vm2062 = vcmp.eq.s32.totalorder %v263, %v2057
    %vm2063 = vcmp.eq.s32.totalorder %v264, %v2057
    %v2064 = vsel %vm2058, 1.0, 0.0
    %v2065 = vsel %vm2059, 1.0, 0.0
    %v2066 = vsel %vm2060, 1.0, 0.0
    %v2067 = vsel %vm2061, 1.0, 0.0
    %v2068 = vsel %vm2062, 1.0, 0.0
    %v2069 = vsel %vm2063, 1.0, 0.0
    %v2070 = vpack.c.bf16 %v2067, %v2064
    %v2071 = vpack.c.bf16 %v2068, %v2065
    %v2072 = vpack.c.bf16 %v2069, %v2066
    %s2073 = scalar_lea.vmem [#allocation5], 1152
    %v2074 = vld [vmem:[%s2073] sm:$0xf]
    %v2075 = vld [vmem:[%s2073 + $0x4] sm:$0xf]
    %v2076 = vld [vmem:[%s2073 + $0x8] sm:$0xf]
    %v2077 = vld [vmem:[%s2073 + $0xc] sm:$0xf]
    %v2078 = vld [vmem:[%s2073 + $0x10] sm:$0xf]
    %v2079 = vld [vmem:[%s2073 + $0x14] sm:$0xf]
    %v2080 = vld [vmem:[%s2073 + $0x18] sm:$0xf]
    %v2081 = vld [vmem:[%s2073 + $0x1c] sm:$0xf]
    %v2082 = vld [vmem:[%s2073 + $0x20] sm:$0xf]
    %v2083 = vld [vmem:[%s2073 + $0x24] sm:$0xf]
    %v2084 = vld [vmem:[%s2073 + $0x28] sm:$0xf]
    %v2085 = vld [vmem:[%s2073 + $0x2c] sm:$0xf]
    %v2086 = vld [vmem:[%s2073 + $0x30] sm:$0xf]
    %v2087 = vld [vmem:[%s2073 + $0x34] sm:$0xf]
    %v2088 = vld [vmem:[%s2073 + $0x38] sm:$0xf]
    %v2089 = vld [vmem:[%s2073 + $0x3c] sm:$0xf]
    %v2090 = vld [vmem:[%s2073 + $0x40] sm:$0xf]
    %v2091 = vld [vmem:[%s2073 + $0x44] sm:$0xf]
    %v2092 = vld [vmem:[%s2073 + $0x48] sm:$0xf]
    %v2093 = vld [vmem:[%s2073 + $0x4c] sm:$0xf]
    %v2094 = vld [vmem:[%s2073 + $0x50] sm:$0xf]
    %v2095 = vld [vmem:[%s2073 + $0x54] sm:$0xf]
    %v2096 = vld [vmem:[%s2073 + $0x58] sm:$0xf]
    %v2097 = vld [vmem:[%s2073 + $0x5c] sm:$0xf]
    %v2098 = vld [vmem:[%s2073 + $0x60] sm:$0xf]
    %v2099 = vld [vmem:[%s2073 + $0x64] sm:$0xf]
    %v2100 = vld [vmem:[%s2073 + $0x68] sm:$0xf]
    %v2101 = vld [vmem:[%s2073 + $0x6c] sm:$0xf]
    %v2102 = vld [vmem:[%s2073 + $0x70] sm:$0xf]
    %v2103 = vld [vmem:[%s2073 + $0x74] sm:$0xf]
    %v2104 = vld [vmem:[%s2073 + $0x78] sm:$0xf]
    %v2105 = vld [vmem:[%s2073 + $0x7c] sm:$0xf]
    %v2106 = vld [vmem:[%s2073 + $0x80] sm:$0xf]
    %v2107 = vld [vmem:[%s2073 + $0x84] sm:$0xf]
    %v2108 = vld [vmem:[%s2073 + $0x88] sm:$0xf]
    %v2109 = vld [vmem:[%s2073 + $0x8c] sm:$0xf]
    %v2110 = vld [vmem:[%s2073 + $0x90] sm:$0xf]
    %v2111 = vld [vmem:[%s2073 + $0x94] sm:$0xf]
    %v2112 = vld [vmem:[%s2073 + $0x98] sm:$0xf]
    %v2113 = vld [vmem:[%s2073 + $0x9c] sm:$0xf]
    %v2114 = vld [vmem:[%s2073 + $0xa0] sm:$0xf]
    %v2115 = vld [vmem:[%s2073 + $0xa4] sm:$0xf]
    %v2116 = vld [vmem:[%s2073 + $0xa8] sm:$0xf]
    %v2117 = vld [vmem:[%s2073 + $0xac] sm:$0xf]
    %v2118 = vld [vmem:[%s2073 + $0xb0] sm:$0xf]
    %v2119 = vld [vmem:[%s2073 + $0xb4] sm:$0xf]
    %v2120 = vld [vmem:[%s2073 + $0xb8] sm:$0xf]
    %v2121 = vld [vmem:[%s2073 + $0xbc] sm:$0xf]
    %v2170 = vunpack.c.l.b16 %v2074
    %v2171 = vunpack.c.l.b16 %v2075
    %v2172 = vunpack.c.l.b16 %v2076
    %v2173 = vunpack.c.l.b16 %v2077
    %v2174 = vunpack.c.l.b16 %v2078
    %v2175 = vunpack.c.l.b16 %v2079
    %v2176 = vunpack.c.l.b16 %v2080
    %v2177 = vunpack.c.l.b16 %v2081
    %v2178 = vunpack.c.l.b16 %v2082
    %v2179 = vunpack.c.l.b16 %v2083
    %v2180 = vunpack.c.l.b16 %v2084
    %v2181 = vunpack.c.l.b16 %v2085
    %v2182 = vunpack.c.l.b16 %v2086
    %v2183 = vunpack.c.l.b16 %v2087
    %v2184 = vunpack.c.l.b16 %v2088
    %v2185 = vunpack.c.l.b16 %v2089
    %v2186 = vunpack.c.l.b16 %v2090
    %v2187 = vunpack.c.l.b16 %v2091
    %v2188 = vunpack.c.l.b16 %v2092
    %v2189 = vunpack.c.l.b16 %v2093
    %v2190 = vunpack.c.l.b16 %v2094
    %v2191 = vunpack.c.l.b16 %v2095
    %v2192 = vunpack.c.l.b16 %v2096
    %v2193 = vunpack.c.l.b16 %v2097
    %v2194 = vunpack.c.l.b16 %v2098
    %v2195 = vunpack.c.l.b16 %v2099
    %v2196 = vunpack.c.l.b16 %v2100
    %v2197 = vunpack.c.l.b16 %v2101
    %v2198 = vunpack.c.l.b16 %v2102
    %v2199 = vunpack.c.l.b16 %v2103
    %v2200 = vunpack.c.l.b16 %v2104
    %v2201 = vunpack.c.l.b16 %v2105
    %v2202 = vunpack.c.l.b16 %v2106
    %v2203 = vunpack.c.l.b16 %v2107
    %v2204 = vunpack.c.l.b16 %v2108
    %v2205 = vunpack.c.l.b16 %v2109
    %v2206 = vunpack.c.l.b16 %v2110
    %v2207 = vunpack.c.l.b16 %v2111
    %v2208 = vunpack.c.l.b16 %v2112
    %v2209 = vunpack.c.l.b16 %v2113
    %v2210 = vunpack.c.l.b16 %v2114
    %v2211 = vunpack.c.l.b16 %v2115
    %v2212 = vunpack.c.l.b16 %v2116
    %v2213 = vunpack.c.l.b16 %v2117
    %v2214 = vunpack.c.l.b16 %v2118
    %v2215 = vunpack.c.l.b16 %v2119
    %v2216 = vunpack.c.l.b16 %v2120
    %v2217 = vunpack.c.l.b16 %v2121
    %v2218 = vpack.c.b16 %v2171, %v2170
    %v2219 = vpack.c.b16 %v2173, %v2172
    %v2220 = vpack.c.b16 %v2175, %v2174
    %v2221 = vpack.c.b16 %v2177, %v2176
    %v2222 = vpack.c.b16 %v2179, %v2178
    %v2223 = vpack.c.b16 %v2181, %v2180
    %v2224 = vpack.c.b16 %v2183, %v2182
    %v2225 = vpack.c.b16 %v2185, %v2184
    %v2226 = vpack.c.b16 %v2187, %v2186
    %v2227 = vpack.c.b16 %v2189, %v2188
    %v2228 = vpack.c.b16 %v2191, %v2190
    %v2229 = vpack.c.b16 %v2193, %v2192
    %v2230 = vpack.c.b16 %v2195, %v2194
    %v2231 = vpack.c.b16 %v2197, %v2196
    %v2232 = vpack.c.b16 %v2199, %v2198
    %v2233 = vpack.c.b16 %v2201, %v2200
    %v2234 = vpack.c.b16 %v2203, %v2202
    %v2235 = vpack.c.b16 %v2205, %v2204
    %v2236 = vpack.c.b16 %v2207, %v2206
    %v2237 = vpack.c.b16 %v2209, %v2208
    %v2238 = vpack.c.b16 %v2211, %v2210
    %v2239 = vpack.c.b16 %v2213, %v2212
    %v2240 = vpack.c.b16 %v2215, %v2214
    %v2241 = vpack.c.b16 %v2217, %v2216
    %2266 = vmatprep.subr.bf16.mxu0 0
    %2267 = vmatpush1.bf16.msra.mxu0 %v2225
    %2268 = vmatprep.subr.bf16.mxu0 0
    %2269 = vmatpush1.bf16.msra.mxu0 %v2224
    %2270 = vmatprep.subr.bf16.mxu0 0
    %2271 = vmatpush1.bf16.msra.mxu0 %v2223
    %2272 = vmatprep.subr.bf16.mxu0 0
    %2273 = vmatpush1.bf16.msra.mxu0 %v2222
    %2274 = vmatprep.subr.bf16.mxu0 0
    %2275 = vmatpush1.bf16.msra.mxu0 %v2221
    %2276 = vmatprep.subr.bf16.mxu0 0
    %2277 = vmatpush1.bf16.msra.mxu0 %v2220
    %2278 = vmatprep.subr.bf16.mxu0 0
    %2279 = vmatpush1.bf16.msra.mxu0 %v2219
    %2280 = vmatprep.subr.bf16.mxu0 0
    %2281 = vmatpush1.bf16.msra.mxu0 %v2218
    %2282 = vmatprep.subr.bf16.mxu0 0
    %2283 = vmatpush2.bf16.msra.mxu0 %v2233
    %2284 = vmatprep.subr.bf16.mxu0 0
    %2285 = vmatpush2.bf16.msra.mxu0 %v2232
    %2286 = vmatprep.subr.bf16.mxu0 0
    %2287 = vmatpush2.bf16.msra.mxu0 %v2231
    %2288 = vmatprep.subr.bf16.mxu0 0
    %2289 = vmatpush2.bf16.msra.mxu0 %v2230
    %2290 = vmatprep.subr.bf16.mxu0 0
    %2291 = vmatpush2.bf16.msra.mxu0 %v2229
    %2292 = vmatprep.subr.bf16.mxu0 0
    %2293 = vmatpush2.bf16.msra.mxu0 %v2228
    %2294 = vmatprep.subr.bf16.mxu0 0
    %2295 = vmatpush2.bf16.msra.mxu0 %v2227
    %2296 = vmatprep.subr.bf16.mxu0 0
    %2297 = vmatpush2.bf16.msra.mxu0 %v2226
    %2298 = vmatprep.mubr.bf16.mxu0 %v2071
    %2299 = vmatmul.mubr.bf16.gmra.mxu0 %v2070
    %v2300 = vpop.f32.mrf.mxu0
    %v2301 = vadd.f32 0.0, %v2300
    %v2302 = vpop.f32.mrf.mxu0
    %v2303 = vpop.f32.mrf.mxu0
    %v2304 = vadd.f32 0.0, %v2303
    %v2305 = vpop.f32.mrf.mxu0
    %2306 = vdwg.mxu0
    %2307 = vmatprep.subr.bf16.mxu0 0
    %2308 = vmatpush1.bf16.msra.mxu0 %v2241
    %2309 = vmatprep.subr.bf16.mxu0 0
    %2310 = vmatpush1.bf16.msra.mxu0 %v2240
    %2311 = vmatprep.subr.bf16.mxu0 0
    %2312 = vmatpush1.bf16.msra.mxu0 %v2239
    %2313 = vmatprep.subr.bf16.mxu0 0
    %2314 = vmatpush1.bf16.msra.mxu0 %v2238
    %2315 = vmatprep.subr.bf16.mxu0 0
    %2316 = vmatpush1.bf16.msra.mxu0 %v2237
    %2317 = vmatprep.subr.bf16.mxu0 0
    %2318 = vmatpush1.bf16.msra.mxu0 %v2236
    %2319 = vmatprep.subr.bf16.mxu0 0
    %2320 = vmatpush1.bf16.msra.mxu0 %v2235
    %2321 = vmatprep.subr.bf16.mxu0 0
    %2322 = vmatpush1.bf16.msra.mxu0 %v2234
    %2323 = vmatprep.subr.bf16.mxu0 0
    %2324 = vmatpush2.bf16.msra.mxu0 0
    %2325 = vmatprep.subr.bf16.mxu0 0
    %2326 = vmatpush2.bf16.msra.mxu0 0
    %2327 = vmatprep.subr.bf16.mxu0 0
    %2328 = vmatpush2.bf16.msra.mxu0 0
    %2329 = vmatprep.subr.bf16.mxu0 0
    %2330 = vmatpush2.bf16.msra.mxu0 0
    %2331 = vmatprep.subr.bf16.mxu0 0
    %2332 = vmatpush2.bf16.msra.mxu0 0
    %2333 = vmatprep.subr.bf16.mxu0 0
    %2334 = vmatpush2.bf16.msra.mxu0 0
    %2335 = vmatprep.subr.bf16.mxu0 0
    %2336 = vmatpush2.bf16.msra.mxu0 0
    %2337 = vmatprep.subr.bf16.mxu0 0
    %2338 = vmatpush2.bf16.msra.mxu0 0
    %2339 = vmatprep.mubr.bf16.mxu0 0
    %2340 = vmatmul.mubr.bf16.gmra.mxu0 %v2072
    %v2341 = vpop.f32.mrf.mxu0
    %v2342 = vadd.f32 %v2301, %v2341
    %v2343 = vpop.f32.mrf.mxu0
    %v2344 = vpop.f32.mrf.mxu0
    %v2345 = vadd.f32 %v2304, %v2344
    %v2346 = vpop.f32.mrf.mxu0
    %2347 = vdwg.mxu0
    %v2348 = vadd.f32 %v2050, %v2342
    %v2349 = vadd.f32 %v2051, %v2345
    %2350 = vset.pattern.permute.xlu0 7
    %2351 = vperm.xlu0 %2350, %v75
    %v2352 = vpop.permute.xlu0 %2351
    %2353 = vset.pattern.permute.xlu0 7
    %2354 = vperm.xlu0 %2353, %v76
    %v2355 = vpop.permute.xlu0 %2354
    %vm2356 = vcmp.eq.s32.totalorder %v78, %v2352
    %vm2357 = vcmp.eq.s32.totalorder %v263, %v2352
    %vm2358 = vcmp.eq.s32.totalorder %v264, %v2352
    %vm2359 = vcmp.eq.s32.totalorder %v78, %v2355
    %vm2360 = vcmp.eq.s32.totalorder %v263, %v2355
    %vm2361 = vcmp.eq.s32.totalorder %v264, %v2355
    %v2362 = vsel %vm2356, 1.0, 0.0
    %v2363 = vsel %vm2357, 1.0, 0.0
    %v2364 = vsel %vm2358, 1.0, 0.0
    %v2365 = vsel %vm2359, 1.0, 0.0
    %v2366 = vsel %vm2360, 1.0, 0.0
    %v2367 = vsel %vm2361, 1.0, 0.0
    %v2368 = vpack.c.bf16 %v2365, %v2362
    %v2369 = vpack.c.bf16 %v2366, %v2363
    %v2370 = vpack.c.bf16 %v2367, %v2364
    %s2371 = scalar_lea.vmem [#allocation5], 1344
    %v2372 = vld [vmem:[%s2371] sm:$0xf]
    %v2373 = vld [vmem:[%s2371 + $0x4] sm:$0xf]
    %v2374 = vld [vmem:[%s2371 + $0x8] sm:$0xf]
    %v2375 = vld [vmem:[%s2371 + $0xc] sm:$0xf]
    %v2376 = vld [vmem:[%s2371 + $0x10] sm:$0xf]
    %v2377 = vld [vmem:[%s2371 + $0x14] sm:$0xf]
    %v2378 = vld [vmem:[%s2371 + $0x18] sm:$0xf]
    %v2379 = vld [vmem:[%s2371 + $0x1c] sm:$0xf]
    %v2380 = vld [vmem:[%s2371 + $0x20] sm:$0xf]
    %v2381 = vld [vmem:[%s2371 + $0x24] sm:$0xf]
    %v2382 = vld [vmem:[%s2371 + $0x28] sm:$0xf]
    %v2383 = vld [vmem:[%s2371 + $0x2c] sm:$0xf]
    %v2384 = vld [vmem:[%s2371 + $0x30] sm:$0xf]
    %v2385 = vld [vmem:[%s2371 + $0x34] sm:$0xf]
    %v2386 = vld [vmem:[%s2371 + $0x38] sm:$0xf]
    %v2387 = vld [vmem:[%s2371 + $0x3c] sm:$0xf]
    %v2388 = vld [vmem:[%s2371 + $0x40] sm:$0xf]
    %v2389 = vld [vmem:[%s2371 + $0x44] sm:$0xf]
    %v2390 = vld [vmem:[%s2371 + $0x48] sm:$0xf]
    %v2391 = vld [vmem:[%s2371 + $0x4c] sm:$0xf]
    %v2392 = vld [vmem:[%s2371 + $0x50] sm:$0xf]
    %v2393 = vld [vmem:[%s2371 + $0x54] sm:$0xf]
    %v2394 = vld [vmem:[%s2371 + $0x58] sm:$0xf]
    %v2395 = vld [vmem:[%s2371 + $0x5c] sm:$0xf]
    %v2396 = vld [vmem:[%s2371 + $0x60] sm:$0xf]
    %v2397 = vld [vmem:[%s2371 + $0x64] sm:$0xf]
    %v2398 = vld [vmem:[%s2371 + $0x68] sm:$0xf]
    %v2399 = vld [vmem:[%s2371 + $0x6c] sm:$0xf]
    %v2400 = vld [vmem:[%s2371 + $0x70] sm:$0xf]
    %v2401 = vld [vmem:[%s2371 + $0x74] sm:$0xf]
    %v2402 = vld [vmem:[%s2371 + $0x78] sm:$0xf]
    %v2403 = vld [vmem:[%s2371 + $0x7c] sm:$0xf]
    %v2404 = vld [vmem:[%s2371 + $0x80] sm:$0xf]
    %v2405 = vld [vmem:[%s2371 + $0x84] sm:$0xf]
    %v2406 = vld [vmem:[%s2371 + $0x88] sm:$0xf]
    %v2407 = vld [vmem:[%s2371 + $0x8c] sm:$0xf]
    %v2408 = vld [vmem:[%s2371 + $0x90] sm:$0xf]
    %v2409 = vld [vmem:[%s2371 + $0x94] sm:$0xf]
    %v2410 = vld [vmem:[%s2371 + $0x98] sm:$0xf]
    %v2411 = vld [vmem:[%s2371 + $0x9c] sm:$0xf]
    %v2412 = vld [vmem:[%s2371 + $0xa0] sm:$0xf]
    %v2413 = vld [vmem:[%s2371 + $0xa4] sm:$0xf]
    %v2414 = vld [vmem:[%s2371 + $0xa8] sm:$0xf]
    %v2415 = vld [vmem:[%s2371 + $0xac] sm:$0xf]
    %v2416 = vld [vmem:[%s2371 + $0xb0] sm:$0xf]
    %v2417 = vld [vmem:[%s2371 + $0xb4] sm:$0xf]
    %v2418 = vld [vmem:[%s2371 + $0xb8] sm:$0xf]
    %v2419 = vld [vmem:[%s2371 + $0xbc] sm:$0xf]
    %v2468 = vunpack.c.l.b16 %v2372
    %v2469 = vunpack.c.l.b16 %v2373
    %v2470 = vunpack.c.l.b16 %v2374
    %v2471 = vunpack.c.l.b16 %v2375
    %v2472 = vunpack.c.l.b16 %v2376
    %v2473 = vunpack.c.l.b16 %v2377
    %v2474 = vunpack.c.l.b16 %v2378
    %v2475 = vunpack.c.l.b16 %v2379
    %v2476 = vunpack.c.l.b16 %v2380
    %v2477 = vunpack.c.l.b16 %v2381
    %v2478 = vunpack.c.l.b16 %v2382
    %v2479 = vunpack.c.l.b16 %v2383
    %v2480 = vunpack.c.l.b16 %v2384
    %v2481 = vunpack.c.l.b16 %v2385
    %v2482 = vunpack.c.l.b16 %v2386
    %v2483 = vunpack.c.l.b16 %v2387
    %v2484 = vunpack.c.l.b16 %v2388
    %v2485 = vunpack.c.l.b16 %v2389
    %v2486 = vunpack.c.l.b16 %v2390
    %v2487 = vunpack.c.l.b16 %v2391
    %v2488 = vunpack.c.l.b16 %v2392
    %v2489 = vunpack.c.l.b16 %v2393
    %v2490 = vunpack.c.l.b16 %v2394
    %v2491 = vunpack.c.l.b16 %v2395
    %v2492 = vunpack.c.l.b16 %v2396
    %v2493 = vunpack.c.l.b16 %v2397
    %v2494 = vunpack.c.l.b16 %v2398
    %v2495 = vunpack.c.l.b16 %v2399
    %v2496 = vunpack.c.l.b16 %v2400
    %v2497 = vunpack.c.l.b16 %v2401
    %v2498 = vunpack.c.l.b16 %v2402
    %v2499 = vunpack.c.l.b16 %v2403
    %v2500 = vunpack.c.l.b16 %v2404
    %v2501 = vunpack.c.l.b16 %v2405
    %v2502 = vunpack.c.l.b16 %v2406
    %v2503 = vunpack.c.l.b16 %v2407
    %v2504 = vunpack.c.l.b16 %v2408
    %v2505 = vunpack.c.l.b16 %v2409
    %v2506 = vunpack.c.l.b16 %v2410
    %v2507 = vunpack.c.l.b16 %v2411
    %v2508 = vunpack.c.l.b16 %v2412
    %v2509 = vunpack.c.l.b16 %v2413
    %v2510 = vunpack.c.l.b16 %v2414
    %v2511 = vunpack.c.l.b16 %v2415
    %v2512 = vunpack.c.l.b16 %v2416
    %v2513 = vunpack.c.l.b16 %v2417
    %v2514 = vunpack.c.l.b16 %v2418
    %v2515 = vunpack.c.l.b16 %v2419
    %v2516 = vpack.c.b16 %v2469, %v2468
    %v2517 = vpack.c.b16 %v2471, %v2470
    %v2518 = vpack.c.b16 %v2473, %v2472
    %v2519 = vpack.c.b16 %v2475, %v2474
    %v2520 = vpack.c.b16 %v2477, %v2476
    %v2521 = vpack.c.b16 %v2479, %v2478
    %v2522 = vpack.c.b16 %v2481, %v2480
    %v2523 = vpack.c.b16 %v2483, %v2482
    %v2524 = vpack.c.b16 %v2485, %v2484
    %v2525 = vpack.c.b16 %v2487, %v2486
    %v2526 = vpack.c.b16 %v2489, %v2488
    %v2527 = vpack.c.b16 %v2491, %v2490
    %v2528 = vpack.c.b16 %v2493, %v2492
    %v2529 = vpack.c.b16 %v2495, %v2494
    %v2530 = vpack.c.b16 %v2497, %v2496
    %v2531 = vpack.c.b16 %v2499, %v2498
    %v2532 = vpack.c.b16 %v2501, %v2500
    %v2533 = vpack.c.b16 %v2503, %v2502
    %v2534 = vpack.c.b16 %v2505, %v2504
    %v2535 = vpack.c.b16 %v2507, %v2506
    %v2536 = vpack.c.b16 %v2509, %v2508
    %v2537 = vpack.c.b16 %v2511, %v2510
    %v2538 = vpack.c.b16 %v2513, %v2512
    %v2539 = vpack.c.b16 %v2515, %v2514
    %2564 = vmatprep.subr.bf16.mxu0 0
    %2565 = vmatpush1.bf16.msra.mxu0 %v2523
    %2566 = vmatprep.subr.bf16.mxu0 0
    %2567 = vmatpush1.bf16.msra.mxu0 %v2522
    %2568 = vmatprep.subr.bf16.mxu0 0
    %2569 = vmatpush1.bf16.msra.mxu0 %v2521
    %2570 = vmatprep.subr.bf16.mxu0 0
    %2571 = vmatpush1.bf16.msra.mxu0 %v2520
    %2572 = vmatprep.subr.bf16.mxu0 0
    %2573 = vmatpush1.bf16.msra.mxu0 %v2519
    %2574 = vmatprep.subr.bf16.mxu0 0
    %2575 = vmatpush1.bf16.msra.mxu0 %v2518
    %2576 = vmatprep.subr.bf16.mxu0 0
    %2577 = vmatpush1.bf16.msra.mxu0 %v2517
    %2578 = vmatprep.subr.bf16.mxu0 0
    %2579 = vmatpush1.bf16.msra.mxu0 %v2516
    %2580 = vmatprep.subr.bf16.mxu0 0
    %2581 = vmatpush2.bf16.msra.mxu0 %v2531
    %2582 = vmatprep.subr.bf16.mxu0 0
    %2583 = vmatpush2.bf16.msra.mxu0 %v2530
    %2584 = vmatprep.subr.bf16.mxu0 0
    %2585 = vmatpush2.bf16.msra.mxu0 %v2529
    %2586 = vmatprep.subr.bf16.mxu0 0
    %2587 = vmatpush2.bf16.msra.mxu0 %v2528
    %2588 = vmatprep.subr.bf16.mxu0 0
    %2589 = vmatpush2.bf16.msra.mxu0 %v2527
    %2590 = vmatprep.subr.bf16.mxu0 0
    %2591 = vmatpush2.bf16.msra.mxu0 %v2526
    %2592 = vmatprep.subr.bf16.mxu0 0
    %2593 = vmatpush2.bf16.msra.mxu0 %v2525
    %2594 = vmatprep.subr.bf16.mxu0 0
    %2595 = vmatpush2.bf16.msra.mxu0 %v2524
    %2596 = vmatprep.mubr.bf16.mxu0 %v2369
    %2597 = vmatmul.mubr.bf16.gmra.mxu0 %v2368
    %v2598 = vpop.f32.mrf.mxu0
    %v2599 = vadd.f32 0.0, %v2598
    %v2600 = vpop.f32.mrf.mxu0
    %v2601 = vpop.f32.mrf.mxu0
    %v2602 = vadd.f32 0.0, %v2601
    %v2603 = vpop.f32.mrf.mxu0
    %2604 = vdwg.mxu0
    %2605 = vmatprep.subr.bf16.mxu0 0
    %2606 = vmatpush1.bf16.msra.mxu0 %v2539
    %2607 = vmatprep.subr.bf16.mxu0 0
    %2608 = vmatpush1.bf16.msra.mxu0 %v2538
    %2609 = vmatprep.subr.bf16.mxu0 0
    %2610 = vmatpush1.bf16.msra.mxu0 %v2537
    %2611 = vmatprep.subr.bf16.mxu0 0
    %2612 = vmatpush1.bf16.msra.mxu0 %v2536
    %2613 = vmatprep.subr.bf16.mxu0 0
    %2614 = vmatpush1.bf16.msra.mxu0 %v2535
    %2615 = vmatprep.subr.bf16.mxu0 0
    %2616 = vmatpush1.bf16.msra.mxu0 %v2534
    %2617 = vmatprep.subr.bf16.mxu0 0
    %2618 = vmatpush1.bf16.msra.mxu0 %v2533
    %2619 = vmatprep.subr.bf16.mxu0 0
    %2620 = vmatpush1.bf16.msra.mxu0 %v2532
    %2621 = vmatprep.subr.bf16.mxu0 0
    %2622 = vmatpush2.bf16.msra.mxu0 0
    %2623 = vmatprep.subr.bf16.mxu0 0
    %2624 = vmatpush2.bf16.msra.mxu0 0
    %2625 = vmatprep.subr.bf16.mxu0 0
    %2626 = vmatpush2.bf16.msra.mxu0 0
    %2627 = vmatprep.subr.bf16.mxu0 0
    %2628 = vmatpush2.bf16.msra.mxu0 0
    %2629 = vmatprep.subr.bf16.mxu0 0
    %2630 = vmatpush2.bf16.msra.mxu0 0
    %2631 = vmatprep.subr.bf16.mxu0 0
    %2632 = vmatpush2.bf16.msra.mxu0 0
    %2633 = vmatprep.subr.bf16.mxu0 0
    %2634 = vmatpush2.bf16.msra.mxu0 0
    %2635 = vmatprep.subr.bf16.mxu0 0
    %2636 = vmatpush2.bf16.msra.mxu0 0
    %2637 = vmatprep.mubr.bf16.mxu0 0
    %2638 = vmatmul.mubr.bf16.gmra.mxu0 %v2370
    %v2639 = vpop.f32.mrf.mxu0
    %v2640 = vadd.f32 %v2599, %v2639
    %v2641 = vpop.f32.mrf.mxu0
    %v2642 = vpop.f32.mrf.mxu0
    %v2643 = vadd.f32 %v2602, %v2642
    %v2644 = vpop.f32.mrf.mxu0
    %2645 = vdwg.mxu0
    %v2646 = vadd.f32 %v2348, %v2640
    %v2647 = vadd.f32 %v2349, %v2643
    %2648 = vset.pattern.permute.xlu0 8
    %2649 = vperm.xlu0 %2648, %v75
    %v2650 = vpop.permute.xlu0 %2649
    %2651 = vset.pattern.permute.xlu0 8
    %2652 = vperm.xlu0 %2651, %v76
    %v2653 = vpop.permute.xlu0 %2652
    %vm2654 = vcmp.eq.s32.totalorder %v78, %v2650
    %vm2655 = vcmp.eq.s32.totalorder %v263, %v2650
    %vm2656 = vcmp.eq.s32.totalorder %v264, %v2650
    %vm2657 = vcmp.eq.s32.totalorder %v78, %v2653
    %vm2658 = vcmp.eq.s32.totalorder %v263, %v2653
    %vm2659 = vcmp.eq.s32.totalorder %v264, %v2653
    %v2660 = vsel %vm2654, 1.0, 0.0
    %v2661 = vsel %vm2655, 1.0, 0.0
    %v2662 = vsel %vm2656, 1.0, 0.0
    %v2663 = vsel %vm2657, 1.0, 0.0
    %v2664 = vsel %vm2658, 1.0, 0.0
    %v2665 = vsel %vm2659, 1.0, 0.0
    %v2666 = vpack.c.bf16 %v2663, %v2660
    %v2667 = vpack.c.bf16 %v2664, %v2661
    %v2668 = vpack.c.bf16 %v2665, %v2662
    %s2669 = scalar_lea.vmem [#allocation5], 1536
    %v2670 = vld [vmem:[%s2669] sm:$0xf]
    %v2671 = vld [vmem:[%s2669 + $0x4] sm:$0xf]
    %v2672 = vld [vmem:[%s2669 + $0x8] sm:$0xf]
    %v2673 = vld [vmem:[%s2669 + $0xc] sm:$0xf]
    %v2674 = vld [vmem:[%s2669 + $0x10] sm:$0xf]
    %v2675 = vld [vmem:[%s2669 + $0x14] sm:$0xf]
    %v2676 = vld [vmem:[%s2669 + $0x18] sm:$0xf]
    %v2677 = vld [vmem:[%s2669 + $0x1c] sm:$0xf]
    %v2678 = vld [vmem:[%s2669 + $0x20] sm:$0xf]
    %v2679 = vld [vmem:[%s2669 + $0x24] sm:$0xf]
    %v2680 = vld [vmem:[%s2669 + $0x28] sm:$0xf]
    %v2681 = vld [vmem:[%s2669 + $0x2c] sm:$0xf]
    %v2682 = vld [vmem:[%s2669 + $0x30] sm:$0xf]
    %v2683 = vld [vmem:[%s2669 + $0x34] sm:$0xf]
    %v2684 = vld [vmem:[%s2669 + $0x38] sm:$0xf]
    %v2685 = vld [vmem:[%s2669 + $0x3c] sm:$0xf]
    %v2686 = vld [vmem:[%s2669 + $0x40] sm:$0xf]
    %v2687 = vld [vmem:[%s2669 + $0x44] sm:$0xf]
    %v2688 = vld [vmem:[%s2669 + $0x48] sm:$0xf]
    %v2689 = vld [vmem:[%s2669 + $0x4c] sm:$0xf]
    %v2690 = vld [vmem:[%s2669 + $0x50] sm:$0xf]
    %v2691 = vld [vmem:[%s2669 + $0x54] sm:$0xf]
    %v2692 = vld [vmem:[%s2669 + $0x58] sm:$0xf]
    %v2693 = vld [vmem:[%s2669 + $0x5c] sm:$0xf]
    %v2694 = vld [vmem:[%s2669 + $0x60] sm:$0xf]
    %v2695 = vld [vmem:[%s2669 + $0x64] sm:$0xf]
    %v2696 = vld [vmem:[%s2669 + $0x68] sm:$0xf]
    %v2697 = vld [vmem:[%s2669 + $0x6c] sm:$0xf]
    %v2698 = vld [vmem:[%s2669 + $0x70] sm:$0xf]
    %v2699 = vld [vmem:[%s2669 + $0x74] sm:$0xf]
    %v2700 = vld [vmem:[%s2669 + $0x78] sm:$0xf]
    %v2701 = vld [vmem:[%s2669 + $0x7c] sm:$0xf]
    %v2702 = vld [vmem:[%s2669 + $0x80] sm:$0xf]
    %v2703 = vld [vmem:[%s2669 + $0x84] sm:$0xf]
    %v2704 = vld [vmem:[%s2669 + $0x88] sm:$0xf]
    %v2705 = vld [vmem:[%s2669 + $0x8c] sm:$0xf]
    %v2706 = vld [vmem:[%s2669 + $0x90] sm:$0xf]
    %v2707 = vld [vmem:[%s2669 + $0x94] sm:$0xf]
    %v2708 = vld [vmem:[%s2669 + $0x98] sm:$0xf]
    %v2709 = vld [vmem:[%s2669 + $0x9c] sm:$0xf]
    %v2710 = vld [vmem:[%s2669 + $0xa0] sm:$0xf]
    %v2711 = vld [vmem:[%s2669 + $0xa4] sm:$0xf]
    %v2712 = vld [vmem:[%s2669 + $0xa8] sm:$0xf]
    %v2713 = vld [vmem:[%s2669 + $0xac] sm:$0xf]
    %v2714 = vld [vmem:[%s2669 + $0xb0] sm:$0xf]
    %v2715 = vld [vmem:[%s2669 + $0xb4] sm:$0xf]
    %v2716 = vld [vmem:[%s2669 + $0xb8] sm:$0xf]
    %v2717 = vld [vmem:[%s2669 + $0xbc] sm:$0xf]
    %v2766 = vunpack.c.l.b16 %v2670
    %v2767 = vunpack.c.l.b16 %v2671
    %v2768 = vunpack.c.l.b16 %v2672
    %v2769 = vunpack.c.l.b16 %v2673
    %v2770 = vunpack.c.l.b16 %v2674
    %v2771 = vunpack.c.l.b16 %v2675
    %v2772 = vunpack.c.l.b16 %v2676
    %v2773 = vunpack.c.l.b16 %v2677
    %v2774 = vunpack.c.l.b16 %v2678
    %v2775 = vunpack.c.l.b16 %v2679
    %v2776 = vunpack.c.l.b16 %v2680
    %v2777 = vunpack.c.l.b16 %v2681
    %v2778 = vunpack.c.l.b16 %v2682
    %v2779 = vunpack.c.l.b16 %v2683
    %v2780 = vunpack.c.l.b16 %v2684
    %v2781 = vunpack.c.l.b16 %v2685
    %v2782 = vunpack.c.l.b16 %v2686
    %v2783 = vunpack.c.l.b16 %v2687
    %v2784 = vunpack.c.l.b16 %v2688
    %v2785 = vunpack.c.l.b16 %v2689
    %v2786 = vunpack.c.l.b16 %v2690
    %v2787 = vunpack.c.l.b16 %v2691
    %v2788 = vunpack.c.l.b16 %v2692
    %v2789 = vunpack.c.l.b16 %v2693
    %v2790 = vunpack.c.l.b16 %v2694
    %v2791 = vunpack.c.l.b16 %v2695
    %v2792 = vunpack.c.l.b16 %v2696
    %v2793 = vunpack.c.l.b16 %v2697
    %v2794 = vunpack.c.l.b16 %v2698
    %v2795 = vunpack.c.l.b16 %v2699
    %v2796 = vunpack.c.l.b16 %v2700
    %v2797 = vunpack.c.l.b16 %v2701
    %v2798 = vunpack.c.l.b16 %v2702
    %v2799 = vunpack.c.l.b16 %v2703
    %v2800 = vunpack.c.l.b16 %v2704
    %v2801 = vunpack.c.l.b16 %v2705
    %v2802 = vunpack.c.l.b16 %v2706
    %v2803 = vunpack.c.l.b16 %v2707
    %v2804 = vunpack.c.l.b16 %v2708
    %v2805 = vunpack.c.l.b16 %v2709
    %v2806 = vunpack.c.l.b16 %v2710
    %v2807 = vunpack.c.l.b16 %v2711
    %v2808 = vunpack.c.l.b16 %v2712
    %v2809 = vunpack.c.l.b16 %v2713
    %v2810 = vunpack.c.l.b16 %v2714
    %v2811 = vunpack.c.l.b16 %v2715
    %v2812 = vunpack.c.l.b16 %v2716
    %v2813 = vunpack.c.l.b16 %v2717
    %v2814 = vpack.c.b16 %v2767, %v2766
    %v2815 = vpack.c.b16 %v2769, %v2768
    %v2816 = vpack.c.b16 %v2771, %v2770
    %v2817 = vpack.c.b16 %v2773, %v2772
    %v2818 = vpack.c.b16 %v2775, %v2774
    %v2819 = vpack.c.b16 %v2777, %v2776
    %v2820 = vpack.c.b16 %v2779, %v2778
    %v2821 = vpack.c.b16 %v2781, %v2780
    %v2822 = vpack.c.b16 %v2783, %v2782
    %v2823 = vpack.c.b16 %v2785, %v2784
    %v2824 = vpack.c.b16 %v2787, %v2786
    %v2825 = vpack.c.b16 %v2789, %v2788
    %v2826 = vpack.c.b16 %v2791, %v2790
    %v2827 = vpack.c.b16 %v2793, %v2792
    %v2828 = vpack.c.b16 %v2795, %v2794
    %v2829 = vpack.c.b16 %v2797, %v2796
    %v2830 = vpack.c.b16 %v2799, %v2798
    %v2831 = vpack.c.b16 %v2801, %v2800
    %v2832 = vpack.c.b16 %v2803, %v2802
    %v2833 = vpack.c.b16 %v2805, %v2804
    %v2834 = vpack.c.b16 %v2807, %v2806
    %v2835 = vpack.c.b16 %v2809, %v2808
    %v2836 = vpack.c.b16 %v2811, %v2810
    %v2837 = vpack.c.b16 %v2813, %v2812
    %2862 = vmatprep.subr.bf16.mxu0 0
    %2863 = vmatpush1.bf16.msra.mxu0 %v2821
    %2864 = vmatprep.subr.bf16.mxu0 0
    %2865 = vmatpush1.bf16.msra.mxu0 %v2820
    %2866 = vmatprep.subr.bf16.mxu0 0
    %2867 = vmatpush1.bf16.msra.mxu0 %v2819
    %2868 = vmatprep.subr.bf16.mxu0 0
    %2869 = vmatpush1.bf16.msra.mxu0 %v2818
    %2870 = vmatprep.subr.bf16.mxu0 0
    %2871 = vmatpush1.bf16.msra.mxu0 %v2817
    %2872 = vmatprep.subr.bf16.mxu0 0
    %2873 = vmatpush1.bf16.msra.mxu0 %v2816
    %2874 = vmatprep.subr.bf16.mxu0 0
    %2875 = vmatpush1.bf16.msra.mxu0 %v2815
    %2876 = vmatprep.subr.bf16.mxu0 0
    %2877 = vmatpush1.bf16.msra.mxu0 %v2814
    %2878 = vmatprep.subr.bf16.mxu0 0
    %2879 = vmatpush2.bf16.msra.mxu0 %v2829
    %2880 = vmatprep.subr.bf16.mxu0 0
    %2881 = vmatpush2.bf16.msra.mxu0 %v2828
    %2882 = vmatprep.subr.bf16.mxu0 0
    %2883 = vmatpush2.bf16.msra.mxu0 %v2827
    %2884 = vmatprep.subr.bf16.mxu0 0
    %2885 = vmatpush2.bf16.msra.mxu0 %v2826
    %2886 = vmatprep.subr.bf16.mxu0 0
    %2887 = vmatpush2.bf16.msra.mxu0 %v2825
    %2888 = vmatprep.subr.bf16.mxu0 0
    %2889 = vmatpush2.bf16.msra.mxu0 %v2824
    %2890 = vmatprep.subr.bf16.mxu0 0
    %2891 = vmatpush2.bf16.msra.mxu0 %v2823
    %2892 = vmatprep.subr.bf16.mxu0 0
    %2893 = vmatpush2.bf16.msra.mxu0 %v2822
    %2894 = vmatprep.mubr.bf16.mxu0 %v2667
    %2895 = vmatmul.mubr.bf16.gmra.mxu0 %v2666
    %v2896 = vpop.f32.mrf.mxu0
    %v2897 = vadd.f32 0.0, %v2896
    %v2898 = vpop.f32.mrf.mxu0
    %v2899 = vpop.f32.mrf.mxu0
    %v2900 = vadd.f32 0.0, %v2899
    %v2901 = vpop.f32.mrf.mxu0
    %2902 = vdwg.mxu0
    %2903 = vmatprep.subr.bf16.mxu0 0
    %2904 = vmatpush1.bf16.msra.mxu0 %v2837
    %2905 = vmatprep.subr.bf16.mxu0 0
    %2906 = vmatpush1.bf16.msra.mxu0 %v2836
    %2907 = vmatprep.subr.bf16.mxu0 0
    %2908 = vmatpush1.bf16.msra.mxu0 %v2835
    %2909 = vmatprep.subr.bf16.mxu0 0
    %2910 = vmatpush1.bf16.msra.mxu0 %v2834
    %2911 = vmatprep.subr.bf16.mxu0 0
    %2912 = vmatpush1.bf16.msra.mxu0 %v2833
    %2913 = vmatprep.subr.bf16.mxu0 0
    %2914 = vmatpush1.bf16.msra.mxu0 %v2832
    %2915 = vmatprep.subr.bf16.mxu0 0
    %2916 = vmatpush1.bf16.msra.mxu0 %v2831
    %2917 = vmatprep.subr.bf16.mxu0 0
    %2918 = vmatpush1.bf16.msra.mxu0 %v2830
    %2919 = vmatprep.subr.bf16.mxu0 0
    %2920 = vmatpush2.bf16.msra.mxu0 0
    %2921 = vmatprep.subr.bf16.mxu0 0
    %2922 = vmatpush2.bf16.msra.mxu0 0
    %2923 = vmatprep.subr.bf16.mxu0 0
    %2924 = vmatpush2.bf16.msra.mxu0 0
    %2925 = vmatprep.subr.bf16.mxu0 0
    %2926 = vmatpush2.bf16.msra.mxu0 0
    %2927 = vmatprep.subr.bf16.mxu0 0
    %2928 = vmatpush2.bf16.msra.mxu0 0
    %2929 = vmatprep.subr.bf16.mxu0 0
    %2930 = vmatpush2.bf16.msra.mxu0 0
    %2931 = vmatprep.subr.bf16.mxu0 0
    %2932 = vmatpush2.bf16.msra.mxu0 0
    %2933 = vmatprep.subr.bf16.mxu0 0
    %2934 = vmatpush2.bf16.msra.mxu0 0
    %2935 = vmatprep.mubr.bf16.mxu0 0
    %2936 = vmatmul.mubr.bf16.gmra.mxu0 %v2668
    %v2937 = vpop.f32.mrf.mxu0
    %v2938 = vadd.f32 %v2897, %v2937
    %v2939 = vpop.f32.mrf.mxu0
    %v2940 = vpop.f32.mrf.mxu0
    %v2941 = vadd.f32 %v2900, %v2940
    %v2942 = vpop.f32.mrf.mxu0
    %2943 = vdwg.mxu0
    %v2944 = vadd.f32 %v2646, %v2938
    %v2945 = vadd.f32 %v2647, %v2941
    %2946 = vset.pattern.permute.xlu0 9
    %2947 = vperm.xlu0 %2946, %v75
    %v2948 = vpop.permute.xlu0 %2947
    %2949 = vset.pattern.permute.xlu0 9
    %2950 = vperm.xlu0 %2949, %v76
    %v2951 = vpop.permute.xlu0 %2950
    %vm2952 = vcmp.eq.s32.totalorder %v78, %v2948
    %vm2953 = vcmp.eq.s32.totalorder %v263, %v2948
    %vm2954 = vcmp.eq.s32.totalorder %v264, %v2948
    %vm2955 = vcmp.eq.s32.totalorder %v78, %v2951
    %vm2956 = vcmp.eq.s32.totalorder %v263, %v2951
    %vm2957 = vcmp.eq.s32.totalorder %v264, %v2951
    %v2958 = vsel %vm2952, 1.0, 0.0
    %v2959 = vsel %vm2953, 1.0, 0.0
    %v2960 = vsel %vm2954, 1.0, 0.0
    %v2961 = vsel %vm2955, 1.0, 0.0
    %v2962 = vsel %vm2956, 1.0, 0.0
    %v2963 = vsel %vm2957, 1.0, 0.0
    %v2964 = vpack.c.bf16 %v2961, %v2958
    %v2965 = vpack.c.bf16 %v2962, %v2959
    %v2966 = vpack.c.bf16 %v2963, %v2960
    %s2967 = scalar_lea.vmem [#allocation5], 1728
    %v2968 = vld [vmem:[%s2967] sm:$0xf]
    %v2969 = vld [vmem:[%s2967 + $0x4] sm:$0xf]
    %v2970 = vld [vmem:[%s2967 + $0x8] sm:$0xf]
    %v2971 = vld [vmem:[%s2967 + $0xc] sm:$0xf]
    %v2972 = vld [vmem:[%s2967 + $0x10] sm:$0xf]
    %v2973 = vld [vmem:[%s2967 + $0x14] sm:$0xf]
    %v2974 = vld [vmem:[%s2967 + $0x18] sm:$0xf]
    %v2975 = vld [vmem:[%s2967 + $0x1c] sm:$0xf]
    %v2976 = vld [vmem:[%s2967 + $0x20] sm:$0xf]
    %v2977 = vld [vmem:[%s2967 + $0x24] sm:$0xf]
    %v2978 = vld [vmem:[%s2967 + $0x28] sm:$0xf]
    %v2979 = vld [vmem:[%s2967 + $0x2c] sm:$0xf]
    %v2980 = vld [vmem:[%s2967 + $0x30] sm:$0xf]
    %v2981 = vld [vmem:[%s2967 + $0x34] sm:$0xf]
    %v2982 = vld [vmem:[%s2967 + $0x38] sm:$0xf]
    %v2983 = vld [vmem:[%s2967 + $0x3c] sm:$0xf]
    %v2984 = vld [vmem:[%s2967 + $0x40] sm:$0xf]
    %v2985 = vld [vmem:[%s2967 + $0x44] sm:$0xf]
    %v2986 = vld [vmem:[%s2967 + $0x48] sm:$0xf]
    %v2987 = vld [vmem:[%s2967 + $0x4c] sm:$0xf]
    %v2988 = vld [vmem:[%s2967 + $0x50] sm:$0xf]
    %v2989 = vld [vmem:[%s2967 + $0x54] sm:$0xf]
    %v2990 = vld [vmem:[%s2967 + $0x58] sm:$0xf]
    %v2991 = vld [vmem:[%s2967 + $0x5c] sm:$0xf]
    %v2992 = vld [vmem:[%s2967 + $0x60] sm:$0xf]
    %v2993 = vld [vmem:[%s2967 + $0x64] sm:$0xf]
    %v2994 = vld [vmem:[%s2967 + $0x68] sm:$0xf]
    %v2995 = vld [vmem:[%s2967 + $0x6c] sm:$0xf]
    %v2996 = vld [vmem:[%s2967 + $0x70] sm:$0xf]
    %v2997 = vld [vmem:[%s2967 + $0x74] sm:$0xf]
    %v2998 = vld [vmem:[%s2967 + $0x78] sm:$0xf]
    %v2999 = vld [vmem:[%s2967 + $0x7c] sm:$0xf]
    %v3000 = vld [vmem:[%s2967 + $0x80] sm:$0xf]
    %v3001 = vld [vmem:[%s2967 + $0x84] sm:$0xf]
    %v3002 = vld [vmem:[%s2967 + $0x88] sm:$0xf]
    %v3003 = vld [vmem:[%s2967 + $0x8c] sm:$0xf]
    %v3004 = vld [vmem:[%s2967 + $0x90] sm:$0xf]
    %v3005 = vld [vmem:[%s2967 + $0x94] sm:$0xf]
    %v3006 = vld [vmem:[%s2967 + $0x98] sm:$0xf]
    %v3007 = vld [vmem:[%s2967 + $0x9c] sm:$0xf]
    %v3008 = vld [vmem:[%s2967 + $0xa0] sm:$0xf]
    %v3009 = vld [vmem:[%s2967 + $0xa4] sm:$0xf]
    %v3010 = vld [vmem:[%s2967 + $0xa8] sm:$0xf]
    %v3011 = vld [vmem:[%s2967 + $0xac] sm:$0xf]
    %v3012 = vld [vmem:[%s2967 + $0xb0] sm:$0xf]
    %v3013 = vld [vmem:[%s2967 + $0xb4] sm:$0xf]
    %v3014 = vld [vmem:[%s2967 + $0xb8] sm:$0xf]
    %v3015 = vld [vmem:[%s2967 + $0xbc] sm:$0xf]
    %v3064 = vunpack.c.l.b16 %v2968
    %v3065 = vunpack.c.l.b16 %v2969
    %v3066 = vunpack.c.l.b16 %v2970
    %v3067 = vunpack.c.l.b16 %v2971
    %v3068 = vunpack.c.l.b16 %v2972
    %v3069 = vunpack.c.l.b16 %v2973
    %v3070 = vunpack.c.l.b16 %v2974
    %v3071 = vunpack.c.l.b16 %v2975
    %v3072 = vunpack.c.l.b16 %v2976
    %v3073 = vunpack.c.l.b16 %v2977
    %v3074 = vunpack.c.l.b16 %v2978
    %v3075 = vunpack.c.l.b16 %v2979
    %v3076 = vunpack.c.l.b16 %v2980
    %v3077 = vunpack.c.l.b16 %v2981
    %v3078 = vunpack.c.l.b16 %v2982
    %v3079 = vunpack.c.l.b16 %v2983
    %v3080 = vunpack.c.l.b16 %v2984
    %v3081 = vunpack.c.l.b16 %v2985
    %v3082 = vunpack.c.l.b16 %v2986
    %v3083 = vunpack.c.l.b16 %v2987
    %v3084 = vunpack.c.l.b16 %v2988
    %v3085 = vunpack.c.l.b16 %v2989
    %v3086 = vunpack.c.l.b16 %v2990
    %v3087 = vunpack.c.l.b16 %v2991
    %v3088 = vunpack.c.l.b16 %v2992
    %v3089 = vunpack.c.l.b16 %v2993
    %v3090 = vunpack.c.l.b16 %v2994
    %v3091 = vunpack.c.l.b16 %v2995
    %v3092 = vunpack.c.l.b16 %v2996
    %v3093 = vunpack.c.l.b16 %v2997
    %v3094 = vunpack.c.l.b16 %v2998
    %v3095 = vunpack.c.l.b16 %v2999
    %v3096 = vunpack.c.l.b16 %v3000
    %v3097 = vunpack.c.l.b16 %v3001
    %v3098 = vunpack.c.l.b16 %v3002
    %v3099 = vunpack.c.l.b16 %v3003
    %v3100 = vunpack.c.l.b16 %v3004
    %v3101 = vunpack.c.l.b16 %v3005
    %v3102 = vunpack.c.l.b16 %v3006
    %v3103 = vunpack.c.l.b16 %v3007
    %v3104 = vunpack.c.l.b16 %v3008
    %v3105 = vunpack.c.l.b16 %v3009
    %v3106 = vunpack.c.l.b16 %v3010
    %v3107 = vunpack.c.l.b16 %v3011
    %v3108 = vunpack.c.l.b16 %v3012
    %v3109 = vunpack.c.l.b16 %v3013
    %v3110 = vunpack.c.l.b16 %v3014
    %v3111 = vunpack.c.l.b16 %v3015
    %v3112 = vpack.c.b16 %v3065, %v3064
    %v3113 = vpack.c.b16 %v3067, %v3066
    %v3114 = vpack.c.b16 %v3069, %v3068
    %v3115 = vpack.c.b16 %v3071, %v3070
    %v3116 = vpack.c.b16 %v3073, %v3072
    %v3117 = vpack.c.b16 %v3075, %v3074
    %v3118 = vpack.c.b16 %v3077, %v3076
    %v3119 = vpack.c.b16 %v3079, %v3078
    %v3120 = vpack.c.b16 %v3081, %v3080
    %v3121 = vpack.c.b16 %v3083, %v3082
    %v3122 = vpack.c.b16 %v3085, %v3084
    %v3123 = vpack.c.b16 %v3087, %v3086
    %v3124 = vpack.c.b16 %v3089, %v3088
    %v3125 = vpack.c.b16 %v3091, %v3090
    %v3126 = vpack.c.b16 %v3093, %v3092
    %v3127 = vpack.c.b16 %v3095, %v3094
    %v3128 = vpack.c.b16 %v3097, %v3096
    %v3129 = vpack.c.b16 %v3099, %v3098
    %v3130 = vpack.c.b16 %v3101, %v3100
    %v3131 = vpack.c.b16 %v3103, %v3102
    %v3132 = vpack.c.b16 %v3105, %v3104
    %v3133 = vpack.c.b16 %v3107, %v3106
    %v3134 = vpack.c.b16 %v3109, %v3108
    %v3135 = vpack.c.b16 %v3111, %v3110
    %3160 = vmatprep.subr.bf16.mxu0 0
    %3161 = vmatpush1.bf16.msra.mxu0 %v3119
    %3162 = vmatprep.subr.bf16.mxu0 0
    %3163 = vmatpush1.bf16.msra.mxu0 %v3118
    %3164 = vmatprep.subr.bf16.mxu0 0
    %3165 = vmatpush1.bf16.msra.mxu0 %v3117
    %3166 = vmatprep.subr.bf16.mxu0 0
    %3167 = vmatpush1.bf16.msra.mxu0 %v3116
    %3168 = vmatprep.subr.bf16.mxu0 0
    %3169 = vmatpush1.bf16.msra.mxu0 %v3115
    %3170 = vmatprep.subr.bf16.mxu0 0
    %3171 = vmatpush1.bf16.msra.mxu0 %v3114
    %3172 = vmatprep.subr.bf16.mxu0 0
    %3173 = vmatpush1.bf16.msra.mxu0 %v3113
    %3174 = vmatprep.subr.bf16.mxu0 0
    %3175 = vmatpush1.bf16.msra.mxu0 %v3112
    %3176 = vmatprep.subr.bf16.mxu0 0
    %3177 = vmatpush2.bf16.msra.mxu0 %v3127
    %3178 = vmatprep.subr.bf16.mxu0 0
    %3179 = vmatpush2.bf16.msra.mxu0 %v3126
    %3180 = vmatprep.subr.bf16.mxu0 0
    %3181 = vmatpush2.bf16.msra.mxu0 %v3125
    %3182 = vmatprep.subr.bf16.mxu0 0
    %3183 = vmatpush2.bf16.msra.mxu0 %v3124
    %3184 = vmatprep.subr.bf16.mxu0 0
    %3185 = vmatpush2.bf16.msra.mxu0 %v3123
    %3186 = vmatprep.subr.bf16.mxu0 0
    %3187 = vmatpush2.bf16.msra.mxu0 %v3122
    %3188 = vmatprep.subr.bf16.mxu0 0
    %3189 = vmatpush2.bf16.msra.mxu0 %v3121
    %3190 = vmatprep.subr.bf16.mxu0 0
    %3191 = vmatpush2.bf16.msra.mxu0 %v3120
    %3192 = vmatprep.mubr.bf16.mxu0 %v2965
    %3193 = vmatmul.mubr.bf16.gmra.mxu0 %v2964
    %v3194 = vpop.f32.mrf.mxu0
    %v3195 = vadd.f32 0.0, %v3194
    %v3196 = vpop.f32.mrf.mxu0
    %v3197 = vpop.f32.mrf.mxu0
    %v3198 = vadd.f32 0.0, %v3197
    %v3199 = vpop.f32.mrf.mxu0
    %3200 = vdwg.mxu0
    %3201 = vmatprep.subr.bf16.mxu0 0
    %3202 = vmatpush1.bf16.msra.mxu0 %v3135
    %3203 = vmatprep.subr.bf16.mxu0 0
    %3204 = vmatpush1.bf16.msra.mxu0 %v3134
    %3205 = vmatprep.subr.bf16.mxu0 0
    %3206 = vmatpush1.bf16.msra.mxu0 %v3133
    %3207 = vmatprep.subr.bf16.mxu0 0
    %3208 = vmatpush1.bf16.msra.mxu0 %v3132
    %3209 = vmatprep.subr.bf16.mxu0 0
    %3210 = vmatpush1.bf16.msra.mxu0 %v3131
    %3211 = vmatprep.subr.bf16.mxu0 0
    %3212 = vmatpush1.bf16.msra.mxu0 %v3130
    %3213 = vmatprep.subr.bf16.mxu0 0
    %3214 = vmatpush1.bf16.msra.mxu0 %v3129
    %3215 = vmatprep.subr.bf16.mxu0 0
    %3216 = vmatpush1.bf16.msra.mxu0 %v3128
    %3217 = vmatprep.subr.bf16.mxu0 0
    %3218 = vmatpush2.bf16.msra.mxu0 0
    %3219 = vmatprep.subr.bf16.mxu0 0
    %3220 = vmatpush2.bf16.msra.mxu0 0
    %3221 = vmatprep.subr.bf16.mxu0 0
    %3222 = vmatpush2.bf16.msra.mxu0 0
    %3223 = vmatprep.subr.bf16.mxu0 0
    %3224 = vmatpush2.bf16.msra.mxu0 0
    %3225 = vmatprep.subr.bf16.mxu0 0
    %3226 = vmatpush2.bf16.msra.mxu0 0
    %3227 = vmatprep.subr.bf16.mxu0 0
    %3228 = vmatpush2.bf16.msra.mxu0 0
    %3229 = vmatprep.subr.bf16.mxu0 0
    %3230 = vmatpush2.bf16.msra.mxu0 0
    %3231 = vmatprep.subr.bf16.mxu0 0
    %3232 = vmatpush2.bf16.msra.mxu0 0
    %3233 = vmatprep.mubr.bf16.mxu0 0
    %3234 = vmatmul.mubr.bf16.gmra.mxu0 %v2966
    %v3235 = vpop.f32.mrf.mxu0
    %v3236 = vadd.f32 %v3195, %v3235
    %v3237 = vpop.f32.mrf.mxu0
    %v3238 = vpop.f32.mrf.mxu0
    %v3239 = vadd.f32 %v3198, %v3238
    %v3240 = vpop.f32.mrf.mxu0
    %3241 = vdwg.mxu0
    %v3242 = vadd.f32 %v2944, %v3236
    %v3243 = vadd.f32 %v2945, %v3239
    %3244 = vset.pattern.permute.xlu0 10
    %3245 = vperm.xlu0 %3244, %v75
    %v3246 = vpop.permute.xlu0 %3245
    %3247 = vset.pattern.permute.xlu0 10
    %3248 = vperm.xlu0 %3247, %v76
    %v3249 = vpop.permute.xlu0 %3248
    %vm3250 = vcmp.eq.s32.totalorder %v78, %v3246
    %vm3251 = vcmp.eq.s32.totalorder %v263, %v3246
    %vm3252 = vcmp.eq.s32.totalorder %v264, %v3246
    %vm3253 = vcmp.eq.s32.totalorder %v78, %v3249
    %vm3254 = vcmp.eq.s32.totalorder %v263, %v3249
    %vm3255 = vcmp.eq.s32.totalorder %v264, %v3249
    %v3256 = vsel %vm3250, 1.0, 0.0
    %v3257 = vsel %vm3251, 1.0, 0.0
    %v3258 = vsel %vm3252, 1.0, 0.0
    %v3259 = vsel %vm3253, 1.0, 0.0
    %v3260 = vsel %vm3254, 1.0, 0.0
    %v3261 = vsel %vm3255, 1.0, 0.0
    %v3262 = vpack.c.bf16 %v3259, %v3256
    %v3263 = vpack.c.bf16 %v3260, %v3257
    %v3264 = vpack.c.bf16 %v3261, %v3258
    %s3265 = scalar_lea.vmem [#allocation5], 1920
    %v3266 = vld [vmem:[%s3265] sm:$0xf]
    %v3267 = vld [vmem:[%s3265 + $0x4] sm:$0xf]
    %v3268 = vld [vmem:[%s3265 + $0x8] sm:$0xf]
    %v3269 = vld [vmem:[%s3265 + $0xc] sm:$0xf]
    %v3270 = vld [vmem:[%s3265 + $0x10] sm:$0xf]
    %v3271 = vld [vmem:[%s3265 + $0x14] sm:$0xf]
    %v3272 = vld [vmem:[%s3265 + $0x18] sm:$0xf]
    %v3273 = vld [vmem:[%s3265 + $0x1c] sm:$0xf]
    %v3274 = vld [vmem:[%s3265 + $0x20] sm:$0xf]
    %v3275 = vld [vmem:[%s3265 + $0x24] sm:$0xf]
    %v3276 = vld [vmem:[%s3265 + $0x28] sm:$0xf]
    %v3277 = vld [vmem:[%s3265 + $0x2c] sm:$0xf]
    %v3278 = vld [vmem:[%s3265 + $0x30] sm:$0xf]
    %v3279 = vld [vmem:[%s3265 + $0x34] sm:$0xf]
    %v3280 = vld [vmem:[%s3265 + $0x38] sm:$0xf]
    %v3281 = vld [vmem:[%s3265 + $0x3c] sm:$0xf]
    %v3282 = vld [vmem:[%s3265 + $0x40] sm:$0xf]
    %v3283 = vld [vmem:[%s3265 + $0x44] sm:$0xf]
    %v3284 = vld [vmem:[%s3265 + $0x48] sm:$0xf]
    %v3285 = vld [vmem:[%s3265 + $0x4c] sm:$0xf]
    %v3286 = vld [vmem:[%s3265 + $0x50] sm:$0xf]
    %v3287 = vld [vmem:[%s3265 + $0x54] sm:$0xf]
    %v3288 = vld [vmem:[%s3265 + $0x58] sm:$0xf]
    %v3289 = vld [vmem:[%s3265 + $0x5c] sm:$0xf]
    %v3290 = vld [vmem:[%s3265 + $0x60] sm:$0xf]
    %v3291 = vld [vmem:[%s3265 + $0x64] sm:$0xf]
    %v3292 = vld [vmem:[%s3265 + $0x68] sm:$0xf]
    %v3293 = vld [vmem:[%s3265 + $0x6c] sm:$0xf]
    %v3294 = vld [vmem:[%s3265 + $0x70] sm:$0xf]
    %v3295 = vld [vmem:[%s3265 + $0x74] sm:$0xf]
    %v3296 = vld [vmem:[%s3265 + $0x78] sm:$0xf]
    %v3297 = vld [vmem:[%s3265 + $0x7c] sm:$0xf]
    %v3298 = vld [vmem:[%s3265 + $0x80] sm:$0xf]
    %v3299 = vld [vmem:[%s3265 + $0x84] sm:$0xf]
    %v3300 = vld [vmem:[%s3265 + $0x88] sm:$0xf]
    %v3301 = vld [vmem:[%s3265 + $0x8c] sm:$0xf]
    %v3302 = vld [vmem:[%s3265 + $0x90] sm:$0xf]
    %v3303 = vld [vmem:[%s3265 + $0x94] sm:$0xf]
    %v3304 = vld [vmem:[%s3265 + $0x98] sm:$0xf]
    %v3305 = vld [vmem:[%s3265 + $0x9c] sm:$0xf]
    %v3306 = vld [vmem:[%s3265 + $0xa0] sm:$0xf]
    %v3307 = vld [vmem:[%s3265 + $0xa4] sm:$0xf]
    %v3308 = vld [vmem:[%s3265 + $0xa8] sm:$0xf]
    %v3309 = vld [vmem:[%s3265 + $0xac] sm:$0xf]
    %v3310 = vld [vmem:[%s3265 + $0xb0] sm:$0xf]
    %v3311 = vld [vmem:[%s3265 + $0xb4] sm:$0xf]
    %v3312 = vld [vmem:[%s3265 + $0xb8] sm:$0xf]
    %v3313 = vld [vmem:[%s3265 + $0xbc] sm:$0xf]
    %v3362 = vunpack.c.l.b16 %v3266
    %v3363 = vunpack.c.l.b16 %v3267
    %v3364 = vunpack.c.l.b16 %v3268
    %v3365 = vunpack.c.l.b16 %v3269
    %v3366 = vunpack.c.l.b16 %v3270
    %v3367 = vunpack.c.l.b16 %v3271
    %v3368 = vunpack.c.l.b16 %v3272
    %v3369 = vunpack.c.l.b16 %v3273
    %v3370 = vunpack.c.l.b16 %v3274
    %v3371 = vunpack.c.l.b16 %v3275
    %v3372 = vunpack.c.l.b16 %v3276
    %v3373 = vunpack.c.l.b16 %v3277
    %v3374 = vunpack.c.l.b16 %v3278
    %v3375 = vunpack.c.l.b16 %v3279
    %v3376 = vunpack.c.l.b16 %v3280
    %v3377 = vunpack.c.l.b16 %v3281
    %v3378 = vunpack.c.l.b16 %v3282
    %v3379 = vunpack.c.l.b16 %v3283
    %v3380 = vunpack.c.l.b16 %v3284
    %v3381 = vunpack.c.l.b16 %v3285
    %v3382 = vunpack.c.l.b16 %v3286
    %v3383 = vunpack.c.l.b16 %v3287
    %v3384 = vunpack.c.l.b16 %v3288
    %v3385 = vunpack.c.l.b16 %v3289
    %v3386 = vunpack.c.l.b16 %v3290
    %v3387 = vunpack.c.l.b16 %v3291
    %v3388 = vunpack.c.l.b16 %v3292
    %v3389 = vunpack.c.l.b16 %v3293
    %v3390 = vunpack.c.l.b16 %v3294
    %v3391 = vunpack.c.l.b16 %v3295
    %v3392 = vunpack.c.l.b16 %v3296
    %v3393 = vunpack.c.l.b16 %v3297
    %v3394 = vunpack.c.l.b16 %v3298
    %v3395 = vunpack.c.l.b16 %v3299
    %v3396 = vunpack.c.l.b16 %v3300
    %v3397 = vunpack.c.l.b16 %v3301
    %v3398 = vunpack.c.l.b16 %v3302
    %v3399 = vunpack.c.l.b16 %v3303
    %v3400 = vunpack.c.l.b16 %v3304
    %v3401 = vunpack.c.l.b16 %v3305
    %v3402 = vunpack.c.l.b16 %v3306
    %v3403 = vunpack.c.l.b16 %v3307
    %v3404 = vunpack.c.l.b16 %v3308
    %v3405 = vunpack.c.l.b16 %v3309
    %v3406 = vunpack.c.l.b16 %v3310
    %v3407 = vunpack.c.l.b16 %v3311
    %v3408 = vunpack.c.l.b16 %v3312
    %v3409 = vunpack.c.l.b16 %v3313
    %v3410 = vpack.c.b16 %v3363, %v3362
    %v3411 = vpack.c.b16 %v3365, %v3364
    %v3412 = vpack.c.b16 %v3367, %v3366
    %v3413 = vpack.c.b16 %v3369, %v3368
    %v3414 = vpack.c.b16 %v3371, %v3370
    %v3415 = vpack.c.b16 %v3373, %v3372
    %v3416 = vpack.c.b16 %v3375, %v3374
    %v3417 = vpack.c.b16 %v3377, %v3376
    %v3418 = vpack.c.b16 %v3379, %v3378
    %v3419 = vpack.c.b16 %v3381, %v3380
    %v3420 = vpack.c.b16 %v3383, %v3382
    %v3421 = vpack.c.b16 %v3385, %v3384
    %v3422 = vpack.c.b16 %v3387, %v3386
    %v3423 = vpack.c.b16 %v3389, %v3388
    %v3424 = vpack.c.b16 %v3391, %v3390
    %v3425 = vpack.c.b16 %v3393, %v3392
    %v3426 = vpack.c.b16 %v3395, %v3394
    %v3427 = vpack.c.b16 %v3397, %v3396
    %v3428 = vpack.c.b16 %v3399, %v3398
    %v3429 = vpack.c.b16 %v3401, %v3400
    %v3430 = vpack.c.b16 %v3403, %v3402
    %v3431 = vpack.c.b16 %v3405, %v3404
    %v3432 = vpack.c.b16 %v3407, %v3406
    %v3433 = vpack.c.b16 %v3409, %v3408
    %3458 = vmatprep.subr.bf16.mxu0 0
    %3459 = vmatpush1.bf16.msra.mxu0 %v3417
    %3460 = vmatprep.subr.bf16.mxu0 0
    %3461 = vmatpush1.bf16.msra.mxu0 %v3416
    %3462 = vmatprep.subr.bf16.mxu0 0
    %3463 = vmatpush1.bf16.msra.mxu0 %v3415
    %3464 = vmatprep.subr.bf16.mxu0 0
    %3465 = vmatpush1.bf16.msra.mxu0 %v3414
    %3466 = vmatprep.subr.bf16.mxu0 0
    %3467 = vmatpush1.bf16.msra.mxu0 %v3413
    %3468 = vmatprep.subr.bf16.mxu0 0
    %3469 = vmatpush1.bf16.msra.mxu0 %v3412
    %3470 = vmatprep.subr.bf16.mxu0 0
    %3471 = vmatpush1.bf16.msra.mxu0 %v3411
    %3472 = vmatprep.subr.bf16.mxu0 0
    %3473 = vmatpush1.bf16.msra.mxu0 %v3410
    %3474 = vmatprep.subr.bf16.mxu0 0
    %3475 = vmatpush2.bf16.msra.mxu0 %v3425
    %3476 = vmatprep.subr.bf16.mxu0 0
    %3477 = vmatpush2.bf16.msra.mxu0 %v3424
    %3478 = vmatprep.subr.bf16.mxu0 0
    %3479 = vmatpush2.bf16.msra.mxu0 %v3423
    %3480 = vmatprep.subr.bf16.mxu0 0
    %3481 = vmatpush2.bf16.msra.mxu0 %v3422
    %3482 = vmatprep.subr.bf16.mxu0 0
    %3483 = vmatpush2.bf16.msra.mxu0 %v3421
    %3484 = vmatprep.subr.bf16.mxu0 0
    %3485 = vmatpush2.bf16.msra.mxu0 %v3420
    %3486 = vmatprep.subr.bf16.mxu0 0
    %3487 = vmatpush2.bf16.msra.mxu0 %v3419
    %3488 = vmatprep.subr.bf16.mxu0 0
    %3489 = vmatpush2.bf16.msra.mxu0 %v3418
    %3490 = vmatprep.mubr.bf16.mxu0 %v3263
    %3491 = vmatmul.mubr.bf16.gmra.mxu0 %v3262
    %v3492 = vpop.f32.mrf.mxu0
    %v3493 = vadd.f32 0.0, %v3492
    %v3494 = vpop.f32.mrf.mxu0
    %v3495 = vpop.f32.mrf.mxu0
    %v3496 = vadd.f32 0.0, %v3495
    %v3497 = vpop.f32.mrf.mxu0
    %3498 = vdwg.mxu0
    %3499 = vmatprep.subr.bf16.mxu0 0
    %3500 = vmatpush1.bf16.msra.mxu0 %v3433
    %3501 = vmatprep.subr.bf16.mxu0 0
    %3502 = vmatpush1.bf16.msra.mxu0 %v3432
    %3503 = vmatprep.subr.bf16.mxu0 0
    %3504 = vmatpush1.bf16.msra.mxu0 %v3431
    %3505 = vmatprep.subr.bf16.mxu0 0
    %3506 = vmatpush1.bf16.msra.mxu0 %v3430
    %3507 = vmatprep.subr.bf16.mxu0 0
    %3508 = vmatpush1.bf16.msra.mxu0 %v3429
    %3509 = vmatprep.subr.bf16.mxu0 0
    %3510 = vmatpush1.bf16.msra.mxu0 %v3428
    %3511 = vmatprep.subr.bf16.mxu0 0
    %3512 = vmatpush1.bf16.msra.mxu0 %v3427
    %3513 = vmatprep.subr.bf16.mxu0 0
    %3514 = vmatpush1.bf16.msra.mxu0 %v3426
    %3515 = vmatprep.subr.bf16.mxu0 0
    %3516 = vmatpush2.bf16.msra.mxu0 0
    %3517 = vmatprep.subr.bf16.mxu0 0
    %3518 = vmatpush2.bf16.msra.mxu0 0
    %3519 = vmatprep.subr.bf16.mxu0 0
    %3520 = vmatpush2.bf16.msra.mxu0 0
    %3521 = vmatprep.subr.bf16.mxu0 0
    %3522 = vmatpush2.bf16.msra.mxu0 0
    %3523 = vmatprep.subr.bf16.mxu0 0
    %3524 = vmatpush2.bf16.msra.mxu0 0
    %3525 = vmatprep.subr.bf16.mxu0 0
    %3526 = vmatpush2.bf16.msra.mxu0 0
    %3527 = vmatprep.subr.bf16.mxu0 0
    %3528 = vmatpush2.bf16.msra.mxu0 0
    %3529 = vmatprep.subr.bf16.mxu0 0
    %3530 = vmatpush2.bf16.msra.mxu0 0
    %3531 = vmatprep.mubr.bf16.mxu0 0
    %3532 = vmatmul.mubr.bf16.gmra.mxu0 %v3264
    %v3533 = vpop.f32.mrf.mxu0
    %v3534 = vadd.f32 %v3493, %v3533
    %v3535 = vpop.f32.mrf.mxu0
    %v3536 = vpop.f32.mrf.mxu0
    %v3537 = vadd.f32 %v3496, %v3536
    %v3538 = vpop.f32.mrf.mxu0
    %3539 = vdwg.mxu0
    %v3540 = vadd.f32 %v3242, %v3534
    %v3541 = vadd.f32 %v3243, %v3537
    %3542 = vset.pattern.permute.xlu0 11
    %3543 = vperm.xlu0 %3542, %v75
    %v3544 = vpop.permute.xlu0 %3543
    %3545 = vset.pattern.permute.xlu0 11
    %3546 = vperm.xlu0 %3545, %v76
    %v3547 = vpop.permute.xlu0 %3546
    %vm3548 = vcmp.eq.s32.totalorder %v78, %v3544
    %vm3549 = vcmp.eq.s32.totalorder %v263, %v3544
    %vm3550 = vcmp.eq.s32.totalorder %v264, %v3544
    %vm3551 = vcmp.eq.s32.totalorder %v78, %v3547
    %vm3552 = vcmp.eq.s32.totalorder %v263, %v3547
    %vm3553 = vcmp.eq.s32.totalorder %v264, %v3547
    %v3554 = vsel %vm3548, 1.0, 0.0
    %v3555 = vsel %vm3549, 1.0, 0.0
    %v3556 = vsel %vm3550, 1.0, 0.0
    %v3557 = vsel %vm3551, 1.0, 0.0
    %v3558 = vsel %vm3552, 1.0, 0.0
    %v3559 = vsel %vm3553, 1.0, 0.0
    %v3560 = vpack.c.bf16 %v3557, %v3554
    %v3561 = vpack.c.bf16 %v3558, %v3555
    %v3562 = vpack.c.bf16 %v3559, %v3556
    %s3563 = scalar_lea.vmem [#allocation5], 2112
    %v3564 = vld [vmem:[%s3563] sm:$0xf]
    %v3565 = vld [vmem:[%s3563 + $0x4] sm:$0xf]
    %v3566 = vld [vmem:[%s3563 + $0x8] sm:$0xf]
    %v3567 = vld [vmem:[%s3563 + $0xc] sm:$0xf]
    %v3568 = vld [vmem:[%s3563 + $0x10] sm:$0xf]
    %v3569 = vld [vmem:[%s3563 + $0x14] sm:$0xf]
    %v3570 = vld [vmem:[%s3563 + $0x18] sm:$0xf]
    %v3571 = vld [vmem:[%s3563 + $0x1c] sm:$0xf]
    %v3572 = vld [vmem:[%s3563 + $0x20] sm:$0xf]
    %v3573 = vld [vmem:[%s3563 + $0x24] sm:$0xf]
    %v3574 = vld [vmem:[%s3563 + $0x28] sm:$0xf]
    %v3575 = vld [vmem:[%s3563 + $0x2c] sm:$0xf]
    %v3576 = vld [vmem:[%s3563 + $0x30] sm:$0xf]
    %v3577 = vld [vmem:[%s3563 + $0x34] sm:$0xf]
    %v3578 = vld [vmem:[%s3563 + $0x38] sm:$0xf]
    %v3579 = vld [vmem:[%s3563 + $0x3c] sm:$0xf]
    %v3580 = vld [vmem:[%s3563 + $0x40] sm:$0xf]
    %v3581 = vld [vmem:[%s3563 + $0x44] sm:$0xf]
    %v3582 = vld [vmem:[%s3563 + $0x48] sm:$0xf]
    %v3583 = vld [vmem:[%s3563 + $0x4c] sm:$0xf]
    %v3584 = vld [vmem:[%s3563 + $0x50] sm:$0xf]
    %v3585 = vld [vmem:[%s3563 + $0x54] sm:$0xf]
    %v3586 = vld [vmem:[%s3563 + $0x58] sm:$0xf]
    %v3587 = vld [vmem:[%s3563 + $0x5c] sm:$0xf]
    %v3588 = vld [vmem:[%s3563 + $0x60] sm:$0xf]
    %v3589 = vld [vmem:[%s3563 + $0x64] sm:$0xf]
    %v3590 = vld [vmem:[%s3563 + $0x68] sm:$0xf]
    %v3591 = vld [vmem:[%s3563 + $0x6c] sm:$0xf]
    %v3592 = vld [vmem:[%s3563 + $0x70] sm:$0xf]
    %v3593 = vld [vmem:[%s3563 + $0x74] sm:$0xf]
    %v3594 = vld [vmem:[%s3563 + $0x78] sm:$0xf]
    %v3595 = vld [vmem:[%s3563 + $0x7c] sm:$0xf]
    %v3596 = vld [vmem:[%s3563 + $0x80] sm:$0xf]
    %v3597 = vld [vmem:[%s3563 + $0x84] sm:$0xf]
    %v3598 = vld [vmem:[%s3563 + $0x88] sm:$0xf]
    %v3599 = vld [vmem:[%s3563 + $0x8c] sm:$0xf]
    %v3600 = vld [vmem:[%s3563 + $0x90] sm:$0xf]
    %v3601 = vld [vmem:[%s3563 + $0x94] sm:$0xf]
    %v3602 = vld [vmem:[%s3563 + $0x98] sm:$0xf]
    %v3603 = vld [vmem:[%s3563 + $0x9c] sm:$0xf]
    %v3604 = vld [vmem:[%s3563 + $0xa0] sm:$0xf]
    %v3605 = vld [vmem:[%s3563 + $0xa4] sm:$0xf]
    %v3606 = vld [vmem:[%s3563 + $0xa8] sm:$0xf]
    %v3607 = vld [vmem:[%s3563 + $0xac] sm:$0xf]
    %v3608 = vld [vmem:[%s3563 + $0xb0] sm:$0xf]
    %v3609 = vld [vmem:[%s3563 + $0xb4] sm:$0xf]
    %v3610 = vld [vmem:[%s3563 + $0xb8] sm:$0xf]
    %v3611 = vld [vmem:[%s3563 + $0xbc] sm:$0xf]
    %v3660 = vunpack.c.l.b16 %v3564
    %v3661 = vunpack.c.l.b16 %v3565
    %v3662 = vunpack.c.l.b16 %v3566
    %v3663 = vunpack.c.l.b16 %v3567
    %v3664 = vunpack.c.l.b16 %v3568
    %v3665 = vunpack.c.l.b16 %v3569
    %v3666 = vunpack.c.l.b16 %v3570
    %v3667 = vunpack.c.l.b16 %v3571
    %v3668 = vunpack.c.l.b16 %v3572
    %v3669 = vunpack.c.l.b16 %v3573
    %v3670 = vunpack.c.l.b16 %v3574
    %v3671 = vunpack.c.l.b16 %v3575
    %v3672 = vunpack.c.l.b16 %v3576
    %v3673 = vunpack.c.l.b16 %v3577
    %v3674 = vunpack.c.l.b16 %v3578
    %v3675 = vunpack.c.l.b16 %v3579
    %v3676 = vunpack.c.l.b16 %v3580
    %v3677 = vunpack.c.l.b16 %v3581
    %v3678 = vunpack.c.l.b16 %v3582
    %v3679 = vunpack.c.l.b16 %v3583
    %v3680 = vunpack.c.l.b16 %v3584
    %v3681 = vunpack.c.l.b16 %v3585
    %v3682 = vunpack.c.l.b16 %v3586
    %v3683 = vunpack.c.l.b16 %v3587
    %v3684 = vunpack.c.l.b16 %v3588
    %v3685 = vunpack.c.l.b16 %v3589
    %v3686 = vunpack.c.l.b16 %v3590
    %v3687 = vunpack.c.l.b16 %v3591
    %v3688 = vunpack.c.l.b16 %v3592
    %v3689 = vunpack.c.l.b16 %v3593
    %v3690 = vunpack.c.l.b16 %v3594
    %v3691 = vunpack.c.l.b16 %v3595
    %v3692 = vunpack.c.l.b16 %v3596
    %v3693 = vunpack.c.l.b16 %v3597
    %v3694 = vunpack.c.l.b16 %v3598
    %v3695 = vunpack.c.l.b16 %v3599
    %v3696 = vunpack.c.l.b16 %v3600
    %v3697 = vunpack.c.l.b16 %v3601
    %v3698 = vunpack.c.l.b16 %v3602
    %v3699 = vunpack.c.l.b16 %v3603
    %v3700 = vunpack.c.l.b16 %v3604
    %v3701 = vunpack.c.l.b16 %v3605
    %v3702 = vunpack.c.l.b16 %v3606
    %v3703 = vunpack.c.l.b16 %v3607
    %v3704 = vunpack.c.l.b16 %v3608
    %v3705 = vunpack.c.l.b16 %v3609
    %v3706 = vunpack.c.l.b16 %v3610
    %v3707 = vunpack.c.l.b16 %v3611
    %v3708 = vpack.c.b16 %v3661, %v3660
    %v3709 = vpack.c.b16 %v3663, %v3662
    %v3710 = vpack.c.b16 %v3665, %v3664
    %v3711 = vpack.c.b16 %v3667, %v3666
    %v3712 = vpack.c.b16 %v3669, %v3668
    %v3713 = vpack.c.b16 %v3671, %v3670
    %v3714 = vpack.c.b16 %v3673, %v3672
    %v3715 = vpack.c.b16 %v3675, %v3674
    %v3716 = vpack.c.b16 %v3677, %v3676
    %v3717 = vpack.c.b16 %v3679, %v3678
    %v3718 = vpack.c.b16 %v3681, %v3680
    %v3719 = vpack.c.b16 %v3683, %v3682
    %v3720 = vpack.c.b16 %v3685, %v3684
    %v3721 = vpack.c.b16 %v3687, %v3686
    %v3722 = vpack.c.b16 %v3689, %v3688
    %v3723 = vpack.c.b16 %v3691, %v3690
    %v3724 = vpack.c.b16 %v3693, %v3692
    %v3725 = vpack.c.b16 %v3695, %v3694
    %v3726 = vpack.c.b16 %v3697, %v3696
    %v3727 = vpack.c.b16 %v3699, %v3698
    %v3728 = vpack.c.b16 %v3701, %v3700
    %v3729 = vpack.c.b16 %v3703, %v3702
    %v3730 = vpack.c.b16 %v3705, %v3704
    %v3731 = vpack.c.b16 %v3707, %v3706
    %3756 = vmatprep.subr.bf16.mxu0 0
    %3757 = vmatpush1.bf16.msra.mxu0 %v3715
    %3758 = vmatprep.subr.bf16.mxu0 0
    %3759 = vmatpush1.bf16.msra.mxu0 %v3714
    %3760 = vmatprep.subr.bf16.mxu0 0
    %3761 = vmatpush1.bf16.msra.mxu0 %v3713
    %3762 = vmatprep.subr.bf16.mxu0 0
    %3763 = vmatpush1.bf16.msra.mxu0 %v3712
    %3764 = vmatprep.subr.bf16.mxu0 0
    %3765 = vmatpush1.bf16.msra.mxu0 %v3711
    %3766 = vmatprep.subr.bf16.mxu0 0
    %3767 = vmatpush1.bf16.msra.mxu0 %v3710
    %3768 = vmatprep.subr.bf16.mxu0 0
    %3769 = vmatpush1.bf16.msra.mxu0 %v3709
    %3770 = vmatprep.subr.bf16.mxu0 0
    %3771 = vmatpush1.bf16.msra.mxu0 %v3708
    %3772 = vmatprep.subr.bf16.mxu0 0
    %3773 = vmatpush2.bf16.msra.mxu0 %v3723
    %3774 = vmatprep.subr.bf16.mxu0 0
    %3775 = vmatpush2.bf16.msra.mxu0 %v3722
    %3776 = vmatprep.subr.bf16.mxu0 0
    %3777 = vmatpush2.bf16.msra.mxu0 %v3721
    %3778 = vmatprep.subr.bf16.mxu0 0
    %3779 = vmatpush2.bf16.msra.mxu0 %v3720
    %3780 = vmatprep.subr.bf16.mxu0 0
    %3781 = vmatpush2.bf16.msra.mxu0 %v3719
    %3782 = vmatprep.subr.bf16.mxu0 0
    %3783 = vmatpush2.bf16.msra.mxu0 %v3718
    %3784 = vmatprep.subr.bf16.mxu0 0
    %3785 = vmatpush2.bf16.msra.mxu0 %v3717
    %3786 = vmatprep.subr.bf16.mxu0 0
    %3787 = vmatpush2.bf16.msra.mxu0 %v3716
    %3788 = vmatprep.mubr.bf16.mxu0 %v3561
    %3789 = vmatmul.mubr.bf16.gmra.mxu0 %v3560
    %v3790 = vpop.f32.mrf.mxu0
    %v3791 = vadd.f32 0.0, %v3790
    %v3792 = vpop.f32.mrf.mxu0
    %v3793 = vpop.f32.mrf.mxu0
    %v3794 = vadd.f32 0.0, %v3793
    %v3795 = vpop.f32.mrf.mxu0
    %3796 = vdwg.mxu0
    %3797 = vmatprep.subr.bf16.mxu0 0
    %3798 = vmatpush1.bf16.msra.mxu0 %v3731
    %3799 = vmatprep.subr.bf16.mxu0 0
    %3800 = vmatpush1.bf16.msra.mxu0 %v3730
    %3801 = vmatprep.subr.bf16.mxu0 0
    %3802 = vmatpush1.bf16.msra.mxu0 %v3729
    %3803 = vmatprep.subr.bf16.mxu0 0
    %3804 = vmatpush1.bf16.msra.mxu0 %v3728
    %3805 = vmatprep.subr.bf16.mxu0 0
    %3806 = vmatpush1.bf16.msra.mxu0 %v3727
    %3807 = vmatprep.subr.bf16.mxu0 0
    %3808 = vmatpush1.bf16.msra.mxu0 %v3726
    %3809 = vmatprep.subr.bf16.mxu0 0
    %3810 = vmatpush1.bf16.msra.mxu0 %v3725
    %3811 = vmatprep.subr.bf16.mxu0 0
    %3812 = vmatpush1.bf16.msra.mxu0 %v3724
    %3813 = vmatprep.subr.bf16.mxu0 0
    %3814 = vmatpush2.bf16.msra.mxu0 0
    %3815 = vmatprep.subr.bf16.mxu0 0
    %3816 = vmatpush2.bf16.msra.mxu0 0
    %3817 = vmatprep.subr.bf16.mxu0 0
    %3818 = vmatpush2.bf16.msra.mxu0 0
    %3819 = vmatprep.subr.bf16.mxu0 0
    %3820 = vmatpush2.bf16.msra.mxu0 0
    %3821 = vmatprep.subr.bf16.mxu0 0
    %3822 = vmatpush2.bf16.msra.mxu0 0
    %3823 = vmatprep.subr.bf16.mxu0 0
    %3824 = vmatpush2.bf16.msra.mxu0 0
    %3825 = vmatprep.subr.bf16.mxu0 0
    %3826 = vmatpush2.bf16.msra.mxu0 0
    %3827 = vmatprep.subr.bf16.mxu0 0
    %3828 = vmatpush2.bf16.msra.mxu0 0
    %3829 = vmatprep.mubr.bf16.mxu0 0
    %3830 = vmatmul.mubr.bf16.gmra.mxu0 %v3562
    %v3831 = vpop.f32.mrf.mxu0
    %v3832 = vadd.f32 %v3791, %v3831
    %v3833 = vpop.f32.mrf.mxu0
    %v3834 = vpop.f32.mrf.mxu0
    %v3835 = vadd.f32 %v3794, %v3834
    %v3836 = vpop.f32.mrf.mxu0
    %3837 = vdwg.mxu0
    %v3838 = vadd.f32 %v3540, %v3832
    %v3839 = vadd.f32 %v3541, %v3835
    %3840 = vset.pattern.permute.xlu0 12
    %3841 = vperm.xlu0 %3840, %v75
    %v3842 = vpop.permute.xlu0 %3841
    %3843 = vset.pattern.permute.xlu0 12
    %3844 = vperm.xlu0 %3843, %v76
    %v3845 = vpop.permute.xlu0 %3844
    %vm3846 = vcmp.eq.s32.totalorder %v78, %v3842
    %vm3847 = vcmp.eq.s32.totalorder %v263, %v3842
    %vm3848 = vcmp.eq.s32.totalorder %v264, %v3842
    %vm3849 = vcmp.eq.s32.totalorder %v78, %v3845
    %vm3850 = vcmp.eq.s32.totalorder %v263, %v3845
    %vm3851 = vcmp.eq.s32.totalorder %v264, %v3845
    %v3852 = vsel %vm3846, 1.0, 0.0
    %v3853 = vsel %vm3847, 1.0, 0.0
    %v3854 = vsel %vm3848, 1.0, 0.0
    %v3855 = vsel %vm3849, 1.0, 0.0
    %v3856 = vsel %vm3850, 1.0, 0.0
    %v3857 = vsel %vm3851, 1.0, 0.0
    %v3858 = vpack.c.bf16 %v3855, %v3852
    %v3859 = vpack.c.bf16 %v3856, %v3853
    %v3860 = vpack.c.bf16 %v3857, %v3854
    %s3861 = scalar_lea.vmem [#allocation5], 2304
    %v3862 = vld [vmem:[%s3861] sm:$0xf]
    %v3863 = vld [vmem:[%s3861 + $0x4] sm:$0xf]
    %v3864 = vld [vmem:[%s3861 + $0x8] sm:$0xf]
    %v3865 = vld [vmem:[%s3861 + $0xc] sm:$0xf]
    %v3866 = vld [vmem:[%s3861 + $0x10] sm:$0xf]
    %v3867 = vld [vmem:[%s3861 + $0x14] sm:$0xf]
    %v3868 = vld [vmem:[%s3861 + $0x18] sm:$0xf]
    %v3869 = vld [vmem:[%s3861 + $0x1c] sm:$0xf]
    %v3870 = vld [vmem:[%s3861 + $0x20] sm:$0xf]
    %v3871 = vld [vmem:[%s3861 + $0x24] sm:$0xf]
    %v3872 = vld [vmem:[%s3861 + $0x28] sm:$0xf]
    %v3873 = vld [vmem:[%s3861 + $0x2c] sm:$0xf]
    %v3874 = vld [vmem:[%s3861 + $0x30] sm:$0xf]
    %v3875 = vld [vmem:[%s3861 + $0x34] sm:$0xf]
    %v3876 = vld [vmem:[%s3861 + $0x38] sm:$0xf]
    %v3877 = vld [vmem:[%s3861 + $0x3c] sm:$0xf]
    %v3878 = vld [vmem:[%s3861 + $0x40] sm:$0xf]
    %v3879 = vld [vmem:[%s3861 + $0x44] sm:$0xf]
    %v3880 = vld [vmem:[%s3861 + $0x48] sm:$0xf]
    %v3881 = vld [vmem:[%s3861 + $0x4c] sm:$0xf]
    %v3882 = vld [vmem:[%s3861 + $0x50] sm:$0xf]
    %v3883 = vld [vmem:[%s3861 + $0x54] sm:$0xf]
    %v3884 = vld [vmem:[%s3861 + $0x58] sm:$0xf]
    %v3885 = vld [vmem:[%s3861 + $0x5c] sm:$0xf]
    %v3886 = vld [vmem:[%s3861 + $0x60] sm:$0xf]
    %v3887 = vld [vmem:[%s3861 + $0x64] sm:$0xf]
    %v3888 = vld [vmem:[%s3861 + $0x68] sm:$0xf]
    %v3889 = vld [vmem:[%s3861 + $0x6c] sm:$0xf]
    %v3890 = vld [vmem:[%s3861 + $0x70] sm:$0xf]
    %v3891 = vld [vmem:[%s3861 + $0x74] sm:$0xf]
    %v3892 = vld [vmem:[%s3861 + $0x78] sm:$0xf]
    %v3893 = vld [vmem:[%s3861 + $0x7c] sm:$0xf]
    %v3894 = vld [vmem:[%s3861 + $0x80] sm:$0xf]
    %v3895 = vld [vmem:[%s3861 + $0x84] sm:$0xf]
    %v3896 = vld [vmem:[%s3861 + $0x88] sm:$0xf]
    %v3897 = vld [vmem:[%s3861 + $0x8c] sm:$0xf]
    %v3898 = vld [vmem:[%s3861 + $0x90] sm:$0xf]
    %v3899 = vld [vmem:[%s3861 + $0x94] sm:$0xf]
    %v3900 = vld [vmem:[%s3861 + $0x98] sm:$0xf]
    %v3901 = vld [vmem:[%s3861 + $0x9c] sm:$0xf]
    %v3902 = vld [vmem:[%s3861 + $0xa0] sm:$0xf]
    %v3903 = vld [vmem:[%s3861 + $0xa4] sm:$0xf]
    %v3904 = vld [vmem:[%s3861 + $0xa8] sm:$0xf]
    %v3905 = vld [vmem:[%s3861 + $0xac] sm:$0xf]
    %v3906 = vld [vmem:[%s3861 + $0xb0] sm:$0xf]
    %v3907 = vld [vmem:[%s3861 + $0xb4] sm:$0xf]
    %v3908 = vld [vmem:[%s3861 + $0xb8] sm:$0xf]
    %v3909 = vld [vmem:[%s3861 + $0xbc] sm:$0xf]
    %v3958 = vunpack.c.l.b16 %v3862
    %v3959 = vunpack.c.l.b16 %v3863
    %v3960 = vunpack.c.l.b16 %v3864
    %v3961 = vunpack.c.l.b16 %v3865
    %v3962 = vunpack.c.l.b16 %v3866
    %v3963 = vunpack.c.l.b16 %v3867
    %v3964 = vunpack.c.l.b16 %v3868
    %v3965 = vunpack.c.l.b16 %v3869
    %v3966 = vunpack.c.l.b16 %v3870
    %v3967 = vunpack.c.l.b16 %v3871
    %v3968 = vunpack.c.l.b16 %v3872
    %v3969 = vunpack.c.l.b16 %v3873
    %v3970 = vunpack.c.l.b16 %v3874
    %v3971 = vunpack.c.l.b16 %v3875
    %v3972 = vunpack.c.l.b16 %v3876
    %v3973 = vunpack.c.l.b16 %v3877
    %v3974 = vunpack.c.l.b16 %v3878
    %v3975 = vunpack.c.l.b16 %v3879
    %v3976 = vunpack.c.l.b16 %v3880
    %v3977 = vunpack.c.l.b16 %v3881
    %v3978 = vunpack.c.l.b16 %v3882
    %v3979 = vunpack.c.l.b16 %v3883
    %v3980 = vunpack.c.l.b16 %v3884
    %v3981 = vunpack.c.l.b16 %v3885
    %v3982 = vunpack.c.l.b16 %v3886
    %v3983 = vunpack.c.l.b16 %v3887
    %v3984 = vunpack.c.l.b16 %v3888
    %v3985 = vunpack.c.l.b16 %v3889
    %v3986 = vunpack.c.l.b16 %v3890
    %v3987 = vunpack.c.l.b16 %v3891
    %v3988 = vunpack.c.l.b16 %v3892
    %v3989 = vunpack.c.l.b16 %v3893
    %v3990 = vunpack.c.l.b16 %v3894
    %v3991 = vunpack.c.l.b16 %v3895
    %v3992 = vunpack.c.l.b16 %v3896
    %v3993 = vunpack.c.l.b16 %v3897
    %v3994 = vunpack.c.l.b16 %v3898
    %v3995 = vunpack.c.l.b16 %v3899
    %v3996 = vunpack.c.l.b16 %v3900
    %v3997 = vunpack.c.l.b16 %v3901
    %v3998 = vunpack.c.l.b16 %v3902
    %v3999 = vunpack.c.l.b16 %v3903
    %v4000 = vunpack.c.l.b16 %v3904
    %v4001 = vunpack.c.l.b16 %v3905
    %v4002 = vunpack.c.l.b16 %v3906
    %v4003 = vunpack.c.l.b16 %v3907
    %v4004 = vunpack.c.l.b16 %v3908
    %v4005 = vunpack.c.l.b16 %v3909
    %v4006 = vpack.c.b16 %v3959, %v3958
    %v4007 = vpack.c.b16 %v3961, %v3960
    %v4008 = vpack.c.b16 %v3963, %v3962
    %v4009 = vpack.c.b16 %v3965, %v3964
    %v4010 = vpack.c.b16 %v3967, %v3966
    %v4011 = vpack.c.b16 %v3969, %v3968
    %v4012 = vpack.c.b16 %v3971, %v3970
    %v4013 = vpack.c.b16 %v3973, %v3972
    %v4014 = vpack.c.b16 %v3975, %v3974
    %v4015 = vpack.c.b16 %v3977, %v3976
    %v4016 = vpack.c.b16 %v3979, %v3978
    %v4017 = vpack.c.b16 %v3981, %v3980
    %v4018 = vpack.c.b16 %v3983, %v3982
    %v4019 = vpack.c.b16 %v3985, %v3984
    %v4020 = vpack.c.b16 %v3987, %v3986
    %v4021 = vpack.c.b16 %v3989, %v3988
    %v4022 = vpack.c.b16 %v3991, %v3990
    %v4023 = vpack.c.b16 %v3993, %v3992
    %v4024 = vpack.c.b16 %v3995, %v3994
    %v4025 = vpack.c.b16 %v3997, %v3996
    %v4026 = vpack.c.b16 %v3999, %v3998
    %v4027 = vpack.c.b16 %v4001, %v4000
    %v4028 = vpack.c.b16 %v4003, %v4002
    %v4029 = vpack.c.b16 %v4005, %v4004
    %4054 = vmatprep.subr.bf16.mxu0 0
    %4055 = vmatpush1.bf16.msra.mxu0 %v4013
    %4056 = vmatprep.subr.bf16.mxu0 0
    %4057 = vmatpush1.bf16.msra.mxu0 %v4012
    %4058 = vmatprep.subr.bf16.mxu0 0
    %4059 = vmatpush1.bf16.msra.mxu0 %v4011
    %4060 = vmatprep.subr.bf16.mxu0 0
    %4061 = vmatpush1.bf16.msra.mxu0 %v4010
    %4062 = vmatprep.subr.bf16.mxu0 0
    %4063 = vmatpush1.bf16.msra.mxu0 %v4009
    %4064 = vmatprep.subr.bf16.mxu0 0
    %4065 = vmatpush1.bf16.msra.mxu0 %v4008
    %4066 = vmatprep.subr.bf16.mxu0 0
    %4067 = vmatpush1.bf16.msra.mxu0 %v4007
    %4068 = vmatprep.subr.bf16.mxu0 0
    %4069 = vmatpush1.bf16.msra.mxu0 %v4006
    %4070 = vmatprep.subr.bf16.mxu0 0
    %4071 = vmatpush2.bf16.msra.mxu0 %v4021
    %4072 = vmatprep.subr.bf16.mxu0 0
    %4073 = vmatpush2.bf16.msra.mxu0 %v4020
    %4074 = vmatprep.subr.bf16.mxu0 0
    %4075 = vmatpush2.bf16.msra.mxu0 %v4019
    %4076 = vmatprep.subr.bf16.mxu0 0
    %4077 = vmatpush2.bf16.msra.mxu0 %v4018
    %4078 = vmatprep.subr.bf16.mxu0 0
    %4079 = vmatpush2.bf16.msra.mxu0 %v4017
    %4080 = vmatprep.subr.bf16.mxu0 0
    %4081 = vmatpush2.bf16.msra.mxu0 %v4016
    %4082 = vmatprep.subr.bf16.mxu0 0
    %4083 = vmatpush2.bf16.msra.mxu0 %v4015
    %4084 = vmatprep.subr.bf16.mxu0 0
    %4085 = vmatpush2.bf16.msra.mxu0 %v4014
    %4086 = vmatprep.mubr.bf16.mxu0 %v3859
    %4087 = vmatmul.mubr.bf16.gmra.mxu0 %v3858
    %v4088 = vpop.f32.mrf.mxu0
    %v4089 = vadd.f32 0.0, %v4088
    %v4090 = vpop.f32.mrf.mxu0
    %v4091 = vpop.f32.mrf.mxu0
    %v4092 = vadd.f32 0.0, %v4091
    %v4093 = vpop.f32.mrf.mxu0
    %4094 = vdwg.mxu0
    %4095 = vmatprep.subr.bf16.mxu0 0
    %4096 = vmatpush1.bf16.msra.mxu0 %v4029
    %4097 = vmatprep.subr.bf16.mxu0 0
    %4098 = vmatpush1.bf16.msra.mxu0 %v4028
    %4099 = vmatprep.subr.bf16.mxu0 0
    %4100 = vmatpush1.bf16.msra.mxu0 %v4027
    %4101 = vmatprep.subr.bf16.mxu0 0
    %4102 = vmatpush1.bf16.msra.mxu0 %v4026
    %4103 = vmatprep.subr.bf16.mxu0 0
    %4104 = vmatpush1.bf16.msra.mxu0 %v4025
    %4105 = vmatprep.subr.bf16.mxu0 0
    %4106 = vmatpush1.bf16.msra.mxu0 %v4024
    %4107 = vmatprep.subr.bf16.mxu0 0
    %4108 = vmatpush1.bf16.msra.mxu0 %v4023
    %4109 = vmatprep.subr.bf16.mxu0 0
    %4110 = vmatpush1.bf16.msra.mxu0 %v4022
    %4111 = vmatprep.subr.bf16.mxu0 0
    %4112 = vmatpush2.bf16.msra.mxu0 0
    %4113 = vmatprep.subr.bf16.mxu0 0
    %4114 = vmatpush2.bf16.msra.mxu0 0
    %4115 = vmatprep.subr.bf16.mxu0 0
    %4116 = vmatpush2.bf16.msra.mxu0 0
    %4117 = vmatprep.subr.bf16.mxu0 0
    %4118 = vmatpush2.bf16.msra.mxu0 0
    %4119 = vmatprep.subr.bf16.mxu0 0
    %4120 = vmatpush2.bf16.msra.mxu0 0
    %4121 = vmatprep.subr.bf16.mxu0 0
    %4122 = vmatpush2.bf16.msra.mxu0 0
    %4123 = vmatprep.subr.bf16.mxu0 0
    %4124 = vmatpush2.bf16.msra.mxu0 0
    %4125 = vmatprep.subr.bf16.mxu0 0
    %4126 = vmatpush2.bf16.msra.mxu0 0
    %4127 = vmatprep.mubr.bf16.mxu0 0
    %4128 = vmatmul.mubr.bf16.gmra.mxu0 %v3860
    %v4129 = vpop.f32.mrf.mxu0
    %v4130 = vadd.f32 %v4089, %v4129
    %v4131 = vpop.f32.mrf.mxu0
    %v4132 = vpop.f32.mrf.mxu0
    %v4133 = vadd.f32 %v4092, %v4132
    %v4134 = vpop.f32.mrf.mxu0
    %4135 = vdwg.mxu0
    %v4136 = vadd.f32 %v3838, %v4130
    %v4137 = vadd.f32 %v3839, %v4133
    %4138 = vset.pattern.permute.xlu0 13
    %4139 = vperm.xlu0 %4138, %v75
    %v4140 = vpop.permute.xlu0 %4139
    %4141 = vset.pattern.permute.xlu0 13
    %4142 = vperm.xlu0 %4141, %v76
    %v4143 = vpop.permute.xlu0 %4142
    %vm4144 = vcmp.eq.s32.totalorder %v78, %v4140
    %vm4145 = vcmp.eq.s32.totalorder %v263, %v4140
    %vm4146 = vcmp.eq.s32.totalorder %v264, %v4140
    %vm4147 = vcmp.eq.s32.totalorder %v78, %v4143
    %vm4148 = vcmp.eq.s32.totalorder %v263, %v4143
    %vm4149 = vcmp.eq.s32.totalorder %v264, %v4143
    %v4150 = vsel %vm4144, 1.0, 0.0
    %v4151 = vsel %vm4145, 1.0, 0.0
    %v4152 = vsel %vm4146, 1.0, 0.0
    %v4153 = vsel %vm4147, 1.0, 0.0
    %v4154 = vsel %vm4148, 1.0, 0.0
    %v4155 = vsel %vm4149, 1.0, 0.0
    %v4156 = vpack.c.bf16 %v4153, %v4150
    %v4157 = vpack.c.bf16 %v4154, %v4151
    %v4158 = vpack.c.bf16 %v4155, %v4152
    %s4159 = scalar_lea.vmem [#allocation5], 2496
    %v4160 = vld [vmem:[%s4159] sm:$0xf]
    %v4161 = vld [vmem:[%s4159 + $0x4] sm:$0xf]
    %v4162 = vld [vmem:[%s4159 + $0x8] sm:$0xf]
    %v4163 = vld [vmem:[%s4159 + $0xc] sm:$0xf]
    %v4164 = vld [vmem:[%s4159 + $0x10] sm:$0xf]
    %v4165 = vld [vmem:[%s4159 + $0x14] sm:$0xf]
    %v4166 = vld [vmem:[%s4159 + $0x18] sm:$0xf]
    %v4167 = vld [vmem:[%s4159 + $0x1c] sm:$0xf]
    %v4168 = vld [vmem:[%s4159 + $0x20] sm:$0xf]
    %v4169 = vld [vmem:[%s4159 + $0x24] sm:$0xf]
    %v4170 = vld [vmem:[%s4159 + $0x28] sm:$0xf]
    %v4171 = vld [vmem:[%s4159 + $0x2c] sm:$0xf]
    %v4172 = vld [vmem:[%s4159 + $0x30] sm:$0xf]
    %v4173 = vld [vmem:[%s4159 + $0x34] sm:$0xf]
    %v4174 = vld [vmem:[%s4159 + $0x38] sm:$0xf]
    %v4175 = vld [vmem:[%s4159 + $0x3c] sm:$0xf]
    %v4176 = vld [vmem:[%s4159 + $0x40] sm:$0xf]
    %v4177 = vld [vmem:[%s4159 + $0x44] sm:$0xf]
    %v4178 = vld [vmem:[%s4159 + $0x48] sm:$0xf]
    %v4179 = vld [vmem:[%s4159 + $0x4c] sm:$0xf]
    %v4180 = vld [vmem:[%s4159 + $0x50] sm:$0xf]
    %v4181 = vld [vmem:[%s4159 + $0x54] sm:$0xf]
    %v4182 = vld [vmem:[%s4159 + $0x58] sm:$0xf]
    %v4183 = vld [vmem:[%s4159 + $0x5c] sm:$0xf]
    %v4184 = vld [vmem:[%s4159 + $0x60] sm:$0xf]
    %v4185 = vld [vmem:[%s4159 + $0x64] sm:$0xf]
    %v4186 = vld [vmem:[%s4159 + $0x68] sm:$0xf]
    %v4187 = vld [vmem:[%s4159 + $0x6c] sm:$0xf]
    %v4188 = vld [vmem:[%s4159 + $0x70] sm:$0xf]
    %v4189 = vld [vmem:[%s4159 + $0x74] sm:$0xf]
    %v4190 = vld [vmem:[%s4159 + $0x78] sm:$0xf]
    %v4191 = vld [vmem:[%s4159 + $0x7c] sm:$0xf]
    %v4192 = vld [vmem:[%s4159 + $0x80] sm:$0xf]
    %v4193 = vld [vmem:[%s4159 + $0x84] sm:$0xf]
    %v4194 = vld [vmem:[%s4159 + $0x88] sm:$0xf]
    %v4195 = vld [vmem:[%s4159 + $0x8c] sm:$0xf]
    %v4196 = vld [vmem:[%s4159 + $0x90] sm:$0xf]
    %v4197 = vld [vmem:[%s4159 + $0x94] sm:$0xf]
    %v4198 = vld [vmem:[%s4159 + $0x98] sm:$0xf]
    %v4199 = vld [vmem:[%s4159 + $0x9c] sm:$0xf]
    %v4200 = vld [vmem:[%s4159 + $0xa0] sm:$0xf]
    %v4201 = vld [vmem:[%s4159 + $0xa4] sm:$0xf]
    %v4202 = vld [vmem:[%s4159 + $0xa8] sm:$0xf]
    %v4203 = vld [vmem:[%s4159 + $0xac] sm:$0xf]
    %v4204 = vld [vmem:[%s4159 + $0xb0] sm:$0xf]
    %v4205 = vld [vmem:[%s4159 + $0xb4] sm:$0xf]
    %v4206 = vld [vmem:[%s4159 + $0xb8] sm:$0xf]
    %v4207 = vld [vmem:[%s4159 + $0xbc] sm:$0xf]
    %v4256 = vunpack.c.l.b16 %v4160
    %v4257 = vunpack.c.l.b16 %v4161
    %v4258 = vunpack.c.l.b16 %v4162
    %v4259 = vunpack.c.l.b16 %v4163
    %v4260 = vunpack.c.l.b16 %v4164
    %v4261 = vunpack.c.l.b16 %v4165
    %v4262 = vunpack.c.l.b16 %v4166
    %v4263 = vunpack.c.l.b16 %v4167
    %v4264 = vunpack.c.l.b16 %v4168
    %v4265 = vunpack.c.l.b16 %v4169
    %v4266 = vunpack.c.l.b16 %v4170
    %v4267 = vunpack.c.l.b16 %v4171
    %v4268 = vunpack.c.l.b16 %v4172
    %v4269 = vunpack.c.l.b16 %v4173
    %v4270 = vunpack.c.l.b16 %v4174
    %v4271 = vunpack.c.l.b16 %v4175
    %v4272 = vunpack.c.l.b16 %v4176
    %v4273 = vunpack.c.l.b16 %v4177
    %v4274 = vunpack.c.l.b16 %v4178
    %v4275 = vunpack.c.l.b16 %v4179
    %v4276 = vunpack.c.l.b16 %v4180
    %v4277 = vunpack.c.l.b16 %v4181
    %v4278 = vunpack.c.l.b16 %v4182
    %v4279 = vunpack.c.l.b16 %v4183
    %v4280 = vunpack.c.l.b16 %v4184
    %v4281 = vunpack.c.l.b16 %v4185
    %v4282 = vunpack.c.l.b16 %v4186
    %v4283 = vunpack.c.l.b16 %v4187
    %v4284 = vunpack.c.l.b16 %v4188
    %v4285 = vunpack.c.l.b16 %v4189
    %v4286 = vunpack.c.l.b16 %v4190
    %v4287 = vunpack.c.l.b16 %v4191
    %v4288 = vunpack.c.l.b16 %v4192
    %v4289 = vunpack.c.l.b16 %v4193
    %v4290 = vunpack.c.l.b16 %v4194
    %v4291 = vunpack.c.l.b16 %v4195
    %v4292 = vunpack.c.l.b16 %v4196
    %v4293 = vunpack.c.l.b16 %v4197
    %v4294 = vunpack.c.l.b16 %v4198
    %v4295 = vunpack.c.l.b16 %v4199
    %v4296 = vunpack.c.l.b16 %v4200
    %v4297 = vunpack.c.l.b16 %v4201
    %v4298 = vunpack.c.l.b16 %v4202
    %v4299 = vunpack.c.l.b16 %v4203
    %v4300 = vunpack.c.l.b16 %v4204
    %v4301 = vunpack.c.l.b16 %v4205
    %v4302 = vunpack.c.l.b16 %v4206
    %v4303 = vunpack.c.l.b16 %v4207
    %v4304 = vpack.c.b16 %v4257, %v4256
    %v4305 = vpack.c.b16 %v4259, %v4258
    %v4306 = vpack.c.b16 %v4261, %v4260
    %v4307 = vpack.c.b16 %v4263, %v4262
    %v4308 = vpack.c.b16 %v4265, %v4264
    %v4309 = vpack.c.b16 %v4267, %v4266
    %v4310 = vpack.c.b16 %v4269, %v4268
    %v4311 = vpack.c.b16 %v4271, %v4270
    %v4312 = vpack.c.b16 %v4273, %v4272
    %v4313 = vpack.c.b16 %v4275, %v4274
    %v4314 = vpack.c.b16 %v4277, %v4276
    %v4315 = vpack.c.b16 %v4279, %v4278
    %v4316 = vpack.c.b16 %v4281, %v4280
    %v4317 = vpack.c.b16 %v4283, %v4282
    %v4318 = vpack.c.b16 %v4285, %v4284
    %v4319 = vpack.c.b16 %v4287, %v4286
    %v4320 = vpack.c.b16 %v4289, %v4288
    %v4321 = vpack.c.b16 %v4291, %v4290
    %v4322 = vpack.c.b16 %v4293, %v4292
    %v4323 = vpack.c.b16 %v4295, %v4294
    %v4324 = vpack.c.b16 %v4297, %v4296
    %v4325 = vpack.c.b16 %v4299, %v4298
    %v4326 = vpack.c.b16 %v4301, %v4300
    %v4327 = vpack.c.b16 %v4303, %v4302
    %4352 = vmatprep.subr.bf16.mxu0 0
    %4353 = vmatpush1.bf16.msra.mxu0 %v4311
    %4354 = vmatprep.subr.bf16.mxu0 0
    %4355 = vmatpush1.bf16.msra.mxu0 %v4310
    %4356 = vmatprep.subr.bf16.mxu0 0
    %4357 = vmatpush1.bf16.msra.mxu0 %v4309
    %4358 = vmatprep.subr.bf16.mxu0 0
    %4359 = vmatpush1.bf16.msra.mxu0 %v4308
    %4360 = vmatprep.subr.bf16.mxu0 0
    %4361 = vmatpush1.bf16.msra.mxu0 %v4307
    %4362 = vmatprep.subr.bf16.mxu0 0
    %4363 = vmatpush1.bf16.msra.mxu0 %v4306
    %4364 = vmatprep.subr.bf16.mxu0 0
    %4365 = vmatpush1.bf16.msra.mxu0 %v4305
    %4366 = vmatprep.subr.bf16.mxu0 0
    %4367 = vmatpush1.bf16.msra.mxu0 %v4304
    %4368 = vmatprep.subr.bf16.mxu0 0
    %4369 = vmatpush2.bf16.msra.mxu0 %v4319
    %4370 = vmatprep.subr.bf16.mxu0 0
    %4371 = vmatpush2.bf16.msra.mxu0 %v4318
    %4372 = vmatprep.subr.bf16.mxu0 0
    %4373 = vmatpush2.bf16.msra.mxu0 %v4317
    %4374 = vmatprep.subr.bf16.mxu0 0
    %4375 = vmatpush2.bf16.msra.mxu0 %v4316
    %4376 = vmatprep.subr.bf16.mxu0 0
    %4377 = vmatpush2.bf16.msra.mxu0 %v4315
    %4378 = vmatprep.subr.bf16.mxu0 0
    %4379 = vmatpush2.bf16.msra.mxu0 %v4314
    %4380 = vmatprep.subr.bf16.mxu0 0
    %4381 = vmatpush2.bf16.msra.mxu0 %v4313
    %4382 = vmatprep.subr.bf16.mxu0 0
    %4383 = vmatpush2.bf16.msra.mxu0 %v4312
    %4384 = vmatprep.mubr.bf16.mxu0 %v4157
    %4385 = vmatmul.mubr.bf16.gmra.mxu0 %v4156
    %v4386 = vpop.f32.mrf.mxu0
    %v4387 = vadd.f32 0.0, %v4386
    %v4388 = vpop.f32.mrf.mxu0
    %v4389 = vpop.f32.mrf.mxu0
    %v4390 = vadd.f32 0.0, %v4389
    %v4391 = vpop.f32.mrf.mxu0
    %4392 = vdwg.mxu0
    %4393 = vmatprep.subr.bf16.mxu0 0
    %4394 = vmatpush1.bf16.msra.mxu0 %v4327
    %4395 = vmatprep.subr.bf16.mxu0 0
    %4396 = vmatpush1.bf16.msra.mxu0 %v4326
    %4397 = vmatprep.subr.bf16.mxu0 0
    %4398 = vmatpush1.bf16.msra.mxu0 %v4325
    %4399 = vmatprep.subr.bf16.mxu0 0
    %4400 = vmatpush1.bf16.msra.mxu0 %v4324
    %4401 = vmatprep.subr.bf16.mxu0 0
    %4402 = vmatpush1.bf16.msra.mxu0 %v4323
    %4403 = vmatprep.subr.bf16.mxu0 0
    %4404 = vmatpush1.bf16.msra.mxu0 %v4322
    %4405 = vmatprep.subr.bf16.mxu0 0
    %4406 = vmatpush1.bf16.msra.mxu0 %v4321
    %4407 = vmatprep.subr.bf16.mxu0 0
    %4408 = vmatpush1.bf16.msra.mxu0 %v4320
    %4409 = vmatprep.subr.bf16.mxu0 0
    %4410 = vmatpush2.bf16.msra.mxu0 0
    %4411 = vmatprep.subr.bf16.mxu0 0
    %4412 = vmatpush2.bf16.msra.mxu0 0
    %4413 = vmatprep.subr.bf16.mxu0 0
    %4414 = vmatpush2.bf16.msra.mxu0 0
    %4415 = vmatprep.subr.bf16.mxu0 0
    %4416 = vmatpush2.bf16.msra.mxu0 0
    %4417 = vmatprep.subr.bf16.mxu0 0
    %4418 = vmatpush2.bf16.msra.mxu0 0
    %4419 = vmatprep.subr.bf16.mxu0 0
    %4420 = vmatpush2.bf16.msra.mxu0 0
    %4421 = vmatprep.subr.bf16.mxu0 0
    %4422 = vmatpush2.bf16.msra.mxu0 0
    %4423 = vmatprep.subr.bf16.mxu0 0
    %4424 = vmatpush2.bf16.msra.mxu0 0
    %4425 = vmatprep.mubr.bf16.mxu0 0
    %4426 = vmatmul.mubr.bf16.gmra.mxu0 %v4158
    %v4427 = vpop.f32.mrf.mxu0
    %v4428 = vadd.f32 %v4387, %v4427
    %v4429 = vpop.f32.mrf.mxu0
    %v4430 = vpop.f32.mrf.mxu0
    %v4431 = vadd.f32 %v4390, %v4430
    %v4432 = vpop.f32.mrf.mxu0
    %4433 = vdwg.mxu0
    %v4434 = vadd.f32 %v4136, %v4428
    %v4435 = vadd.f32 %v4137, %v4431
    %4436 = vset.pattern.permute.xlu0 14
    %4437 = vperm.xlu0 %4436, %v75
    %v4438 = vpop.permute.xlu0 %4437
    %4439 = vset.pattern.permute.xlu0 14
    %4440 = vperm.xlu0 %4439, %v76
    %v4441 = vpop.permute.xlu0 %4440
    %vm4442 = vcmp.eq.s32.totalorder %v78, %v4438
    %vm4443 = vcmp.eq.s32.totalorder %v263, %v4438
    %vm4444 = vcmp.eq.s32.totalorder %v264, %v4438
    %vm4445 = vcmp.eq.s32.totalorder %v78, %v4441
    %vm4446 = vcmp.eq.s32.totalorder %v263, %v4441
    %vm4447 = vcmp.eq.s32.totalorder %v264, %v4441
    %v4448 = vsel %vm4442, 1.0, 0.0
    %v4449 = vsel %vm4443, 1.0, 0.0
    %v4450 = vsel %vm4444, 1.0, 0.0
    %v4451 = vsel %vm4445, 1.0, 0.0
    %v4452 = vsel %vm4446, 1.0, 0.0
    %v4453 = vsel %vm4447, 1.0, 0.0
    %v4454 = vpack.c.bf16 %v4451, %v4448
    %v4455 = vpack.c.bf16 %v4452, %v4449
    %v4456 = vpack.c.bf16 %v4453, %v4450
    %s4457 = scalar_lea.vmem [#allocation5], 2688
    %v4458 = vld [vmem:[%s4457] sm:$0xf]
    %v4459 = vld [vmem:[%s4457 + $0x4] sm:$0xf]
    %v4460 = vld [vmem:[%s4457 + $0x8] sm:$0xf]
    %v4461 = vld [vmem:[%s4457 + $0xc] sm:$0xf]
    %v4462 = vld [vmem:[%s4457 + $0x10] sm:$0xf]
    %v4463 = vld [vmem:[%s4457 + $0x14] sm:$0xf]
    %v4464 = vld [vmem:[%s4457 + $0x18] sm:$0xf]
    %v4465 = vld [vmem:[%s4457 + $0x1c] sm:$0xf]
    %v4466 = vld [vmem:[%s4457 + $0x20] sm:$0xf]
    %v4467 = vld [vmem:[%s4457 + $0x24] sm:$0xf]
    %v4468 = vld [vmem:[%s4457 + $0x28] sm:$0xf]
    %v4469 = vld [vmem:[%s4457 + $0x2c] sm:$0xf]
    %v4470 = vld [vmem:[%s4457 + $0x30] sm:$0xf]
    %v4471 = vld [vmem:[%s4457 + $0x34] sm:$0xf]
    %v4472 = vld [vmem:[%s4457 + $0x38] sm:$0xf]
    %v4473 = vld [vmem:[%s4457 + $0x3c] sm:$0xf]
    %v4474 = vld [vmem:[%s4457 + $0x40] sm:$0xf]
    %v4475 = vld [vmem:[%s4457 + $0x44] sm:$0xf]
    %v4476 = vld [vmem:[%s4457 + $0x48] sm:$0xf]
    %v4477 = vld [vmem:[%s4457 + $0x4c] sm:$0xf]
    %v4478 = vld [vmem:[%s4457 + $0x50] sm:$0xf]
    %v4479 = vld [vmem:[%s4457 + $0x54] sm:$0xf]
    %v4480 = vld [vmem:[%s4457 + $0x58] sm:$0xf]
    %v4481 = vld [vmem:[%s4457 + $0x5c] sm:$0xf]
    %v4482 = vld [vmem:[%s4457 + $0x60] sm:$0xf]
    %v4483 = vld [vmem:[%s4457 + $0x64] sm:$0xf]
    %v4484 = vld [vmem:[%s4457 + $0x68] sm:$0xf]
    %v4485 = vld [vmem:[%s4457 + $0x6c] sm:$0xf]
    %v4486 = vld [vmem:[%s4457 + $0x70] sm:$0xf]
    %v4487 = vld [vmem:[%s4457 + $0x74] sm:$0xf]
    %v4488 = vld [vmem:[%s4457 + $0x78] sm:$0xf]
    %v4489 = vld [vmem:[%s4457 + $0x7c] sm:$0xf]
    %v4490 = vld [vmem:[%s4457 + $0x80] sm:$0xf]
    %v4491 = vld [vmem:[%s4457 + $0x84] sm:$0xf]
    %v4492 = vld [vmem:[%s4457 + $0x88] sm:$0xf]
    %v4493 = vld [vmem:[%s4457 + $0x8c] sm:$0xf]
    %v4494 = vld [vmem:[%s4457 + $0x90] sm:$0xf]
    %v4495 = vld [vmem:[%s4457 + $0x94] sm:$0xf]
    %v4496 = vld [vmem:[%s4457 + $0x98] sm:$0xf]
    %v4497 = vld [vmem:[%s4457 + $0x9c] sm:$0xf]
    %v4498 = vld [vmem:[%s4457 + $0xa0] sm:$0xf]
    %v4499 = vld [vmem:[%s4457 + $0xa4] sm:$0xf]
    %v4500 = vld [vmem:[%s4457 + $0xa8] sm:$0xf]
    %v4501 = vld [vmem:[%s4457 + $0xac] sm:$0xf]
    %v4502 = vld [vmem:[%s4457 + $0xb0] sm:$0xf]
    %v4503 = vld [vmem:[%s4457 + $0xb4] sm:$0xf]
    %v4504 = vld [vmem:[%s4457 + $0xb8] sm:$0xf]
    %v4505 = vld [vmem:[%s4457 + $0xbc] sm:$0xf]
    %v4554 = vunpack.c.l.b16 %v4458
    %v4555 = vunpack.c.l.b16 %v4459
    %v4556 = vunpack.c.l.b16 %v4460
    %v4557 = vunpack.c.l.b16 %v4461
    %v4558 = vunpack.c.l.b16 %v4462
    %v4559 = vunpack.c.l.b16 %v4463
    %v4560 = vunpack.c.l.b16 %v4464
    %v4561 = vunpack.c.l.b16 %v4465
    %v4562 = vunpack.c.l.b16 %v4466
    %v4563 = vunpack.c.l.b16 %v4467
    %v4564 = vunpack.c.l.b16 %v4468
    %v4565 = vunpack.c.l.b16 %v4469
    %v4566 = vunpack.c.l.b16 %v4470
    %v4567 = vunpack.c.l.b16 %v4471
    %v4568 = vunpack.c.l.b16 %v4472
    %v4569 = vunpack.c.l.b16 %v4473
    %v4570 = vunpack.c.l.b16 %v4474
    %v4571 = vunpack.c.l.b16 %v4475
    %v4572 = vunpack.c.l.b16 %v4476
    %v4573 = vunpack.c.l.b16 %v4477
    %v4574 = vunpack.c.l.b16 %v4478
    %v4575 = vunpack.c.l.b16 %v4479
    %v4576 = vunpack.c.l.b16 %v4480
    %v4577 = vunpack.c.l.b16 %v4481
    %v4578 = vunpack.c.l.b16 %v4482
    %v4579 = vunpack.c.l.b16 %v4483
    %v4580 = vunpack.c.l.b16 %v4484
    %v4581 = vunpack.c.l.b16 %v4485
    %v4582 = vunpack.c.l.b16 %v4486
    %v4583 = vunpack.c.l.b16 %v4487
    %v4584 = vunpack.c.l.b16 %v4488
    %v4585 = vunpack.c.l.b16 %v4489
    %v4586 = vunpack.c.l.b16 %v4490
    %v4587 = vunpack.c.l.b16 %v4491
    %v4588 = vunpack.c.l.b16 %v4492
    %v4589 = vunpack.c.l.b16 %v4493
    %v4590 = vunpack.c.l.b16 %v4494
    %v4591 = vunpack.c.l.b16 %v4495
    %v4592 = vunpack.c.l.b16 %v4496
    %v4593 = vunpack.c.l.b16 %v4497
    %v4594 = vunpack.c.l.b16 %v4498
    %v4595 = vunpack.c.l.b16 %v4499
    %v4596 = vunpack.c.l.b16 %v4500
    %v4597 = vunpack.c.l.b16 %v4501
    %v4598 = vunpack.c.l.b16 %v4502
    %v4599 = vunpack.c.l.b16 %v4503
    %v4600 = vunpack.c.l.b16 %v4504
    %v4601 = vunpack.c.l.b16 %v4505
    %v4602 = vpack.c.b16 %v4555, %v4554
    %v4603 = vpack.c.b16 %v4557, %v4556
    %v4604 = vpack.c.b16 %v4559, %v4558
    %v4605 = vpack.c.b16 %v4561, %v4560
    %v4606 = vpack.c.b16 %v4563, %v4562
    %v4607 = vpack.c.b16 %v4565, %v4564
    %v4608 = vpack.c.b16 %v4567, %v4566
    %v4609 = vpack.c.b16 %v4569, %v4568
    %v4610 = vpack.c.b16 %v4571, %v4570
    %v4611 = vpack.c.b16 %v4573, %v4572
    %v4612 = vpack.c.b16 %v4575, %v4574
    %v4613 = vpack.c.b16 %v4577, %v4576
    %v4614 = vpack.c.b16 %v4579, %v4578
    %v4615 = vpack.c.b16 %v4581, %v4580
    %v4616 = vpack.c.b16 %v4583, %v4582
    %v4617 = vpack.c.b16 %v4585, %v4584
    %v4618 = vpack.c.b16 %v4587, %v4586
    %v4619 = vpack.c.b16 %v4589, %v4588
    %v4620 = vpack.c.b16 %v4591, %v4590
    %v4621 = vpack.c.b16 %v4593, %v4592
    %v4622 = vpack.c.b16 %v4595, %v4594
    %v4623 = vpack.c.b16 %v4597, %v4596
    %v4624 = vpack.c.b16 %v4599, %v4598
    %v4625 = vpack.c.b16 %v4601, %v4600
    %4650 = vmatprep.subr.bf16.mxu0 0
    %4651 = vmatpush1.bf16.msra.mxu0 %v4609
    %4652 = vmatprep.subr.bf16.mxu0 0
    %4653 = vmatpush1.bf16.msra.mxu0 %v4608
    %4654 = vmatprep.subr.bf16.mxu0 0
    %4655 = vmatpush1.bf16.msra.mxu0 %v4607
    %4656 = vmatprep.subr.bf16.mxu0 0
    %4657 = vmatpush1.bf16.msra.mxu0 %v4606
    %4658 = vmatprep.subr.bf16.mxu0 0
    %4659 = vmatpush1.bf16.msra.mxu0 %v4605
    %4660 = vmatprep.subr.bf16.mxu0 0
    %4661 = vmatpush1.bf16.msra.mxu0 %v4604
    %4662 = vmatprep.subr.bf16.mxu0 0
    %4663 = vmatpush1.bf16.msra.mxu0 %v4603
    %4664 = vmatprep.subr.bf16.mxu0 0
    %4665 = vmatpush1.bf16.msra.mxu0 %v4602
    %4666 = vmatprep.subr.bf16.mxu0 0
    %4667 = vmatpush2.bf16.msra.mxu0 %v4617
    %4668 = vmatprep.subr.bf16.mxu0 0
    %4669 = vmatpush2.bf16.msra.mxu0 %v4616
    %4670 = vmatprep.subr.bf16.mxu0 0
    %4671 = vmatpush2.bf16.msra.mxu0 %v4615
    %4672 = vmatprep.subr.bf16.mxu0 0
    %4673 = vmatpush2.bf16.msra.mxu0 %v4614
    %4674 = vmatprep.subr.bf16.mxu0 0
    %4675 = vmatpush2.bf16.msra.mxu0 %v4613
    %4676 = vmatprep.subr.bf16.mxu0 0
    %4677 = vmatpush2.bf16.msra.mxu0 %v4612
    %4678 = vmatprep.subr.bf16.mxu0 0
    %4679 = vmatpush2.bf16.msra.mxu0 %v4611
    %4680 = vmatprep.subr.bf16.mxu0 0
    %4681 = vmatpush2.bf16.msra.mxu0 %v4610
    %4682 = vmatprep.mubr.bf16.mxu0 %v4455
    %4683 = vmatmul.mubr.bf16.gmra.mxu0 %v4454
    %v4684 = vpop.f32.mrf.mxu0
    %v4685 = vadd.f32 0.0, %v4684
    %v4686 = vpop.f32.mrf.mxu0
    %v4687 = vpop.f32.mrf.mxu0
    %v4688 = vadd.f32 0.0, %v4687
    %v4689 = vpop.f32.mrf.mxu0
    %4690 = vdwg.mxu0
    %4691 = vmatprep.subr.bf16.mxu0 0
    %4692 = vmatpush1.bf16.msra.mxu0 %v4625
    %4693 = vmatprep.subr.bf16.mxu0 0
    %4694 = vmatpush1.bf16.msra.mxu0 %v4624
    %4695 = vmatprep.subr.bf16.mxu0 0
    %4696 = vmatpush1.bf16.msra.mxu0 %v4623
    %4697 = vmatprep.subr.bf16.mxu0 0
    %4698 = vmatpush1.bf16.msra.mxu0 %v4622
    %4699 = vmatprep.subr.bf16.mxu0 0
    %4700 = vmatpush1.bf16.msra.mxu0 %v4621
    %4701 = vmatprep.subr.bf16.mxu0 0
    %4702 = vmatpush1.bf16.msra.mxu0 %v4620
    %4703 = vmatprep.subr.bf16.mxu0 0
    %4704 = vmatpush1.bf16.msra.mxu0 %v4619
    %4705 = vmatprep.subr.bf16.mxu0 0
    %4706 = vmatpush1.bf16.msra.mxu0 %v4618
    %4707 = vmatprep.subr.bf16.mxu0 0
    %4708 = vmatpush2.bf16.msra.mxu0 0
    %4709 = vmatprep.subr.bf16.mxu0 0
    %4710 = vmatpush2.bf16.msra.mxu0 0
    %4711 = vmatprep.subr.bf16.mxu0 0
    %4712 = vmatpush2.bf16.msra.mxu0 0
    %4713 = vmatprep.subr.bf16.mxu0 0
    %4714 = vmatpush2.bf16.msra.mxu0 0
    %4715 = vmatprep.subr.bf16.mxu0 0
    %4716 = vmatpush2.bf16.msra.mxu0 0
    %4717 = vmatprep.subr.bf16.mxu0 0
    %4718 = vmatpush2.bf16.msra.mxu0 0
    %4719 = vmatprep.subr.bf16.mxu0 0
    %4720 = vmatpush2.bf16.msra.mxu0 0
    %4721 = vmatprep.subr.bf16.mxu0 0
    %4722 = vmatpush2.bf16.msra.mxu0 0
    %4723 = vmatprep.mubr.bf16.mxu0 0
    %4724 = vmatmul.mubr.bf16.gmra.mxu0 %v4456
    %v4725 = vpop.f32.mrf.mxu0
    %v4726 = vadd.f32 %v4685, %v4725
    %v4727 = vpop.f32.mrf.mxu0
    %v4728 = vpop.f32.mrf.mxu0
    %v4729 = vadd.f32 %v4688, %v4728
    %v4730 = vpop.f32.mrf.mxu0
    %4731 = vdwg.mxu0
    %v4732 = vadd.f32 %v4434, %v4726
    %v4733 = vadd.f32 %v4435, %v4729
    %4734 = vset.pattern.permute.xlu0 15
    %4735 = vperm.xlu0 %4734, %v75
    %v4736 = vpop.permute.xlu0 %4735
    %4737 = vset.pattern.permute.xlu0 15
    %4738 = vperm.xlu0 %4737, %v76
    %v4739 = vpop.permute.xlu0 %4738
    %vm4740 = vcmp.eq.s32.totalorder %v78, %v4736
    %vm4741 = vcmp.eq.s32.totalorder %v263, %v4736
    %vm4742 = vcmp.eq.s32.totalorder %v264, %v4736
    %vm4743 = vcmp.eq.s32.totalorder %v78, %v4739
    %vm4744 = vcmp.eq.s32.totalorder %v263, %v4739
    %vm4745 = vcmp.eq.s32.totalorder %v264, %v4739
    %v4746 = vsel %vm4740, 1.0, 0.0
    %v4747 = vsel %vm4741, 1.0, 0.0
    %v4748 = vsel %vm4742, 1.0, 0.0
    %v4749 = vsel %vm4743, 1.0, 0.0
    %v4750 = vsel %vm4744, 1.0, 0.0
    %v4751 = vsel %vm4745, 1.0, 0.0
    %v4752 = vpack.c.bf16 %v4749, %v4746
    %v4753 = vpack.c.bf16 %v4750, %v4747
    %v4754 = vpack.c.bf16 %v4751, %v4748
    %s4755 = scalar_lea.vmem [#allocation5], 2880
    %v4756 = vld [vmem:[%s4755] sm:$0xf]
    %v4757 = vld [vmem:[%s4755 + $0x4] sm:$0xf]
    %v4758 = vld [vmem:[%s4755 + $0x8] sm:$0xf]
    %v4759 = vld [vmem:[%s4755 + $0xc] sm:$0xf]
    %v4760 = vld [vmem:[%s4755 + $0x10] sm:$0xf]
    %v4761 = vld [vmem:[%s4755 + $0x14] sm:$0xf]
    %v4762 = vld [vmem:[%s4755 + $0x18] sm:$0xf]
    %v4763 = vld [vmem:[%s4755 + $0x1c] sm:$0xf]
    %v4764 = vld [vmem:[%s4755 + $0x20] sm:$0xf]
    %v4765 = vld [vmem:[%s4755 + $0x24] sm:$0xf]
    %v4766 = vld [vmem:[%s4755 + $0x28] sm:$0xf]
    %v4767 = vld [vmem:[%s4755 + $0x2c] sm:$0xf]
    %v4768 = vld [vmem:[%s4755 + $0x30] sm:$0xf]
    %v4769 = vld [vmem:[%s4755 + $0x34] sm:$0xf]
    %v4770 = vld [vmem:[%s4755 + $0x38] sm:$0xf]
    %v4771 = vld [vmem:[%s4755 + $0x3c] sm:$0xf]
    %v4772 = vld [vmem:[%s4755 + $0x40] sm:$0xf]
    %v4773 = vld [vmem:[%s4755 + $0x44] sm:$0xf]
    %v4774 = vld [vmem:[%s4755 + $0x48] sm:$0xf]
    %v4775 = vld [vmem:[%s4755 + $0x4c] sm:$0xf]
    %v4776 = vld [vmem:[%s4755 + $0x50] sm:$0xf]
    %v4777 = vld [vmem:[%s4755 + $0x54] sm:$0xf]
    %v4778 = vld [vmem:[%s4755 + $0x58] sm:$0xf]
    %v4779 = vld [vmem:[%s4755 + $0x5c] sm:$0xf]
    %v4780 = vld [vmem:[%s4755 + $0x60] sm:$0xf]
    %v4781 = vld [vmem:[%s4755 + $0x64] sm:$0xf]
    %v4782 = vld [vmem:[%s4755 + $0x68] sm:$0xf]
    %v4783 = vld [vmem:[%s4755 + $0x6c] sm:$0xf]
    %v4784 = vld [vmem:[%s4755 + $0x70] sm:$0xf]
    %v4785 = vld [vmem:[%s4755 + $0x74] sm:$0xf]
    %v4786 = vld [vmem:[%s4755 + $0x78] sm:$0xf]
    %v4787 = vld [vmem:[%s4755 + $0x7c] sm:$0xf]
    %v4788 = vld [vmem:[%s4755 + $0x80] sm:$0xf]
    %v4789 = vld [vmem:[%s4755 + $0x84] sm:$0xf]
    %v4790 = vld [vmem:[%s4755 + $0x88] sm:$0xf]
    %v4791 = vld [vmem:[%s4755 + $0x8c] sm:$0xf]
    %v4792 = vld [vmem:[%s4755 + $0x90] sm:$0xf]
    %v4793 = vld [vmem:[%s4755 + $0x94] sm:$0xf]
    %v4794 = vld [vmem:[%s4755 + $0x98] sm:$0xf]
    %v4795 = vld [vmem:[%s4755 + $0x9c] sm:$0xf]
    %v4796 = vld [vmem:[%s4755 + $0xa0] sm:$0xf]
    %v4797 = vld [vmem:[%s4755 + $0xa4] sm:$0xf]
    %v4798 = vld [vmem:[%s4755 + $0xa8] sm:$0xf]
    %v4799 = vld [vmem:[%s4755 + $0xac] sm:$0xf]
    %v4800 = vld [vmem:[%s4755 + $0xb0] sm:$0xf]
    %v4801 = vld [vmem:[%s4755 + $0xb4] sm:$0xf]
    %v4802 = vld [vmem:[%s4755 + $0xb8] sm:$0xf]
    %v4803 = vld [vmem:[%s4755 + $0xbc] sm:$0xf]
    %v4852 = vunpack.c.l.b16 %v4756
    %v4853 = vunpack.c.l.b16 %v4757
    %v4854 = vunpack.c.l.b16 %v4758
    %v4855 = vunpack.c.l.b16 %v4759
    %v4856 = vunpack.c.l.b16 %v4760
    %v4857 = vunpack.c.l.b16 %v4761
    %v4858 = vunpack.c.l.b16 %v4762
    %v4859 = vunpack.c.l.b16 %v4763
    %v4860 = vunpack.c.l.b16 %v4764
    %v4861 = vunpack.c.l.b16 %v4765
    %v4862 = vunpack.c.l.b16 %v4766
    %v4863 = vunpack.c.l.b16 %v4767
    %v4864 = vunpack.c.l.b16 %v4768
    %v4865 = vunpack.c.l.b16 %v4769
    %v4866 = vunpack.c.l.b16 %v4770
    %v4867 = vunpack.c.l.b16 %v4771
    %v4868 = vunpack.c.l.b16 %v4772
    %v4869 = vunpack.c.l.b16 %v4773
    %v4870 = vunpack.c.l.b16 %v4774
    %v4871 = vunpack.c.l.b16 %v4775
    %v4872 = vunpack.c.l.b16 %v4776
    %v4873 = vunpack.c.l.b16 %v4777
    %v4874 = vunpack.c.l.b16 %v4778
    %v4875 = vunpack.c.l.b16 %v4779
    %v4876 = vunpack.c.l.b16 %v4780
    %v4877 = vunpack.c.l.b16 %v4781
    %v4878 = vunpack.c.l.b16 %v4782
    %v4879 = vunpack.c.l.b16 %v4783
    %v4880 = vunpack.c.l.b16 %v4784
    %v4881 = vunpack.c.l.b16 %v4785
    %v4882 = vunpack.c.l.b16 %v4786
    %v4883 = vunpack.c.l.b16 %v4787
    %v4884 = vunpack.c.l.b16 %v4788
    %v4885 = vunpack.c.l.b16 %v4789
    %v4886 = vunpack.c.l.b16 %v4790
    %v4887 = vunpack.c.l.b16 %v4791
    %v4888 = vunpack.c.l.b16 %v4792
    %v4889 = vunpack.c.l.b16 %v4793
    %v4890 = vunpack.c.l.b16 %v4794
    %v4891 = vunpack.c.l.b16 %v4795
    %v4892 = vunpack.c.l.b16 %v4796
    %v4893 = vunpack.c.l.b16 %v4797
    %v4894 = vunpack.c.l.b16 %v4798
    %v4895 = vunpack.c.l.b16 %v4799
    %v4896 = vunpack.c.l.b16 %v4800
    %v4897 = vunpack.c.l.b16 %v4801
    %v4898 = vunpack.c.l.b16 %v4802
    %v4899 = vunpack.c.l.b16 %v4803
    %v4900 = vpack.c.b16 %v4853, %v4852
    %v4901 = vpack.c.b16 %v4855, %v4854
    %v4902 = vpack.c.b16 %v4857, %v4856
    %v4903 = vpack.c.b16 %v4859, %v4858
    %v4904 = vpack.c.b16 %v4861, %v4860
    %v4905 = vpack.c.b16 %v4863, %v4862
    %v4906 = vpack.c.b16 %v4865, %v4864
    %v4907 = vpack.c.b16 %v4867, %v4866
    %v4908 = vpack.c.b16 %v4869, %v4868
    %v4909 = vpack.c.b16 %v4871, %v4870
    %v4910 = vpack.c.b16 %v4873, %v4872
    %v4911 = vpack.c.b16 %v4875, %v4874
    %v4912 = vpack.c.b16 %v4877, %v4876
    %v4913 = vpack.c.b16 %v4879, %v4878
    %v4914 = vpack.c.b16 %v4881, %v4880
    %v4915 = vpack.c.b16 %v4883, %v4882
    %v4916 = vpack.c.b16 %v4885, %v4884
    %v4917 = vpack.c.b16 %v4887, %v4886
    %v4918 = vpack.c.b16 %v4889, %v4888
    %v4919 = vpack.c.b16 %v4891, %v4890
    %v4920 = vpack.c.b16 %v4893, %v4892
    %v4921 = vpack.c.b16 %v4895, %v4894
    %v4922 = vpack.c.b16 %v4897, %v4896
    %v4923 = vpack.c.b16 %v4899, %v4898
    %4948 = vmatprep.subr.bf16.mxu0 0
    %4949 = vmatpush1.bf16.msra.mxu0 %v4907
    %4950 = vmatprep.subr.bf16.mxu0 0
    %4951 = vmatpush1.bf16.msra.mxu0 %v4906
    %4952 = vmatprep.subr.bf16.mxu0 0
    %4953 = vmatpush1.bf16.msra.mxu0 %v4905
    %4954 = vmatprep.subr.bf16.mxu0 0
    %4955 = vmatpush1.bf16.msra.mxu0 %v4904
    %4956 = vmatprep.subr.bf16.mxu0 0
    %4957 = vmatpush1.bf16.msra.mxu0 %v4903
    %4958 = vmatprep.subr.bf16.mxu0 0
    %4959 = vmatpush1.bf16.msra.mxu0 %v4902
    %4960 = vmatprep.subr.bf16.mxu0 0
    %4961 = vmatpush1.bf16.msra.mxu0 %v4901
    %4962 = vmatprep.subr.bf16.mxu0 0
    %4963 = vmatpush1.bf16.msra.mxu0 %v4900
    %4964 = vmatprep.subr.bf16.mxu0 0
    %4965 = vmatpush2.bf16.msra.mxu0 %v4915
    %4966 = vmatprep.subr.bf16.mxu0 0
    %4967 = vmatpush2.bf16.msra.mxu0 %v4914
    %4968 = vmatprep.subr.bf16.mxu0 0
    %4969 = vmatpush2.bf16.msra.mxu0 %v4913
    %4970 = vmatprep.subr.bf16.mxu0 0
    %4971 = vmatpush2.bf16.msra.mxu0 %v4912
    %4972 = vmatprep.subr.bf16.mxu0 0
    %4973 = vmatpush2.bf16.msra.mxu0 %v4911
    %4974 = vmatprep.subr.bf16.mxu0 0
    %4975 = vmatpush2.bf16.msra.mxu0 %v4910
    %4976 = vmatprep.subr.bf16.mxu0 0
    %4977 = vmatpush2.bf16.msra.mxu0 %v4909
    %4978 = vmatprep.subr.bf16.mxu0 0
    %4979 = vmatpush2.bf16.msra.mxu0 %v4908
    %4980 = vmatprep.mubr.bf16.mxu0 %v4753
    %4981 = vmatmul.mubr.bf16.gmra.mxu0 %v4752
    %v4982 = vpop.f32.mrf.mxu0
    %v4983 = vadd.f32 0.0, %v4982
    %v4984 = vpop.f32.mrf.mxu0
    %v4985 = vpop.f32.mrf.mxu0
    %v4986 = vadd.f32 0.0, %v4985
    %v4987 = vpop.f32.mrf.mxu0
    %4988 = vdwg.mxu0
    %4989 = vmatprep.subr.bf16.mxu0 0
    %4990 = vmatpush1.bf16.msra.mxu0 %v4923
    %4991 = vmatprep.subr.bf16.mxu0 0
    %4992 = vmatpush1.bf16.msra.mxu0 %v4922
    %4993 = vmatprep.subr.bf16.mxu0 0
    %4994 = vmatpush1.bf16.msra.mxu0 %v4921
    %4995 = vmatprep.subr.bf16.mxu0 0
    %4996 = vmatpush1.bf16.msra.mxu0 %v4920
    %4997 = vmatprep.subr.bf16.mxu0 0
    %4998 = vmatpush1.bf16.msra.mxu0 %v4919
    %4999 = vmatprep.subr.bf16.mxu0 0
    %5000 = vmatpush1.bf16.msra.mxu0 %v4918
    %5001 = vmatprep.subr.bf16.mxu0 0
    %5002 = vmatpush1.bf16.msra.mxu0 %v4917
    %5003 = vmatprep.subr.bf16.mxu0 0
    %5004 = vmatpush1.bf16.msra.mxu0 %v4916
    %5005 = vmatprep.subr.bf16.mxu0 0
    %5006 = vmatpush2.bf16.msra.mxu0 0
    %5007 = vmatprep.subr.bf16.mxu0 0
    %5008 = vmatpush2.bf16.msra.mxu0 0
    %5009 = vmatprep.subr.bf16.mxu0 0
    %5010 = vmatpush2.bf16.msra.mxu0 0
    %5011 = vmatprep.subr.bf16.mxu0 0
    %5012 = vmatpush2.bf16.msra.mxu0 0
    %5013 = vmatprep.subr.bf16.mxu0 0
    %5014 = vmatpush2.bf16.msra.mxu0 0
    %5015 = vmatprep.subr.bf16.mxu0 0
    %5016 = vmatpush2.bf16.msra.mxu0 0
    %5017 = vmatprep.subr.bf16.mxu0 0
    %5018 = vmatpush2.bf16.msra.mxu0 0
    %5019 = vmatprep.subr.bf16.mxu0 0
    %5020 = vmatpush2.bf16.msra.mxu0 0
    %5021 = vmatprep.mubr.bf16.mxu0 0
    %5022 = vmatmul.mubr.bf16.gmra.mxu0 %v4754
    %v5023 = vpop.f32.mrf.mxu0
    %v5024 = vadd.f32 %v4983, %v5023
    %v5025 = vpop.f32.mrf.mxu0
    %v5026 = vpop.f32.mrf.mxu0
    %v5027 = vadd.f32 %v4986, %v5026
    %v5028 = vpop.f32.mrf.mxu0
    %5029 = vdwg.mxu0
    %v5030 = vadd.f32 %v4732, %v5024
    %v5031 = vadd.f32 %v4733, %v5027
    %5032 = vst [vmem:[#allocation10] sm:$0xff] %v5030
    %5033 = vst [vmem:[#allocation10 + $0x8] sm:$0xff] %v5031
    // Predicated region
    $region34: #{tpu_custom_call.1} parent=1 // pred_check
      _
    $region35: #{tpu_custom_call.1} parent=1 // pred_check_branch
      %5035 = sbr.rel (0) target = $region37
    $region36: #{tpu_custom_call.1} parent=1 // pred_region
      %s5037 = ssub.s32 256, 256
      %5038 = vsyncadd [#allocation4], %s5037
      %s5039 = sshll.u32 [#allocation10], 4
      %s5040 = int_to_ptr.vmem [resolvable:$true] %s5039
      %5045 = dma.vmem_to_hbm [thread:$0]  %s5040, 256, %s4, [#allocation4], 128, 128, 8
    $region37: #{tpu_custom_call.1} parent=1 // pred_fallthru
      _
    // Predicated region
    $region38: #{tpu_custom_call.1} parent=1 // pred_check
      _
    $region39: #{tpu_custom_call.1} parent=1 // pred_check_branch
      %5047 = sbr.rel (0) target = $region41
    $region40: #{tpu_custom_call.1} parent=1 // pred_region
      %5048 = dma.done [#allocation4], 256
    $region41: #{tpu_custom_call.1} parent=1 // pred_fallthru
      _
    %5049 = vsyncpa [#allocation3], 1
    %5050 = vsyncpa [#allocation6], 1
    %5051 = vsyncpa [#allocation9], 1
    %5052 = vsyncpa [#allocation4], 1

</llo_original>
